<compile_context>
chip_gen: v6e
topology: v6e:2x2x1
jax: 0.10.0
libtpu: 0.0.40
codegen_flags: <defaults>
</compile_context>

<pallas_src>
import jax
import jax.numpy as jnp
from jax.experimental import pallas as pl
from jax.experimental.pallas import tpu as pltpu


# --------------------------------------------------------------------------- #
# Small static helpers
# --------------------------------------------------------------------------- #
def _round_up(n, m):
    return (n + m - 1) // m * m


def _time_chunk(T):
    """Largest divisor of T that is <= 8 (timesteps per projection chunk)."""
    for c in range(min(T, 8), 0, -1):
        if T % c == 0:
            return c
    return 1


# --------------------------------------------------------------------------- #
# Fused kernel: chunked input projection -> interleaved BiLSTM -> attention
#               -> projection head -> log_softmax
# --------------------------------------------------------------------------- #
def fused_metaphor_kernel(x_ref, len_ref, wih_ref, b_ref, whh_ref,
                          comb_f_ref, comb_b_ref, attb_ref, attv_ref,
                          pwc_f_ref, pwc_b_ref, pb_ref,
                          out_ref,
                          xg_f_scr, xg_b_scr, hf_scr, hb_scr, a_scr):
    T, bb, Dp = x_ref.shape
    H = whh_ref.shape[0] // 2           # whh is block-diagonal (2H, 8H)
    G = 4 * H
    A = attb_ref.shape[1]
    f32 = jnp.float32
    bf16 = jnp.bfloat16
    Tc = _time_chunk(T)

    len_col = len_ref[...]              # (bb, 1) int32 sequence lengths

    # ---- 1. Input-to-gate projection, chunked over T, written straight into
    #         bf16 gate scratch (no full-sequence f32 temp, no extra copy).
    w_in = wih_ref[...]                 # (Dp, 8H) bf16
    bias = b_ref[...]                   # (1, 8H)  f32

    def proj_chunk(c, _):
        t0 = pl.multiple_of(c * Tc, Tc)
        xc = x_ref[pl.ds(t0, Tc)]                               # (Tc, bb, Dp)
        g = jnp.dot(xc.reshape(Tc * bb, Dp), w_in,
                    preferred_element_type=f32) + bias          # (Tc*bb, 8H)
        g3 = g.reshape(Tc, bb, 2 * G)
        xg_f_scr[pl.ds(t0, Tc)] = g3[:, :, :G].astype(bf16)
        xg_b_scr[pl.ds(t0, Tc)] = g3[:, :, G:].astype(bf16)
        return 0

    jax.lax.fori_loop(0, T // Tc, proj_chunk, 0)

    # ---- 2. Bidirectional recurrence (fwd/bwd interleaved, fused matmul) ----
    def sig(v):
        # sigmoid(x) = 0.5 * (tanh(0.5 x) + 1): single EUP op per gate.
        return 0.5 * jnp.tanh(0.5 * v) + 0.5

    def gate_math(g, c):
        # PyTorch gate order: i, f, g, o.
        i_g = sig(g[:, 0 * H:1 * H])
        f_g = sig(g[:, 1 * H:2 * H])
        g_g = jnp.tanh(g[:, 2 * H:3 * H])
        o_g = sig(g[:, 3 * H:4 * H])
        c_new = f_g * c + i_g * g_g
        return o_g * jnp.tanh(c_new), c_new

    def lstm_step(t_f, t_b, carry):
        h_f, c_f, h_b, c_b = carry
        # One block-diagonal recurrent matmul for both directions.
        lhs = jnp.concatenate([h_f, h_b], axis=1).astype(bf16)        # (bb, 2H)
        r = jnp.dot(lhs, whh_ref[...], preferred_element_type=f32)    # (bb, 8H)
        gf = xg_f_scr[t_f].astype(f32) + r[:, :G]
        gb = xg_b_scr[t_b].astype(f32) + r[:, G:]
        hf_new, cf_new = gate_math(gf, c_f)
        hb_new, cb_new = gate_math(gb, c_b)
        vf = len_col > t_f                                            # (bb, 1)
        vb = len_col > t_b
        # Zero padded outputs (pack_padded_sequence semantics); bf16 stores.
        hf_scr[t_f] = jnp.where(vf, hf_new, 0.0).astype(bf16)
        hb_scr[t_b] = jnp.where(vb, hb_new, 0.0).astype(bf16)
        # Freeze state on padded positions.
        h_f = jnp.where(vf, hf_new, h_f)
        c_f = jnp.where(vf, cf_new, c_f)
        h_b = jnp.where(vb, hb_new, h_b)
        c_b = jnp.where(vb, cb_new, c_b)
        return (h_f, c_f, h_b, c_b)

    U = 4 if T % 4 == 0 else (2 if T % 2 == 0 else 1)

    def rec_body(i, carry):
        t0 = i * U
        for u in range(U):          # manual unroll: U fwd + U bwd cells / iter
            t = t0 + u
            carry = lstm_step(t, T - 1 - t, carry)
        return carry

    zero = jnp.zeros((bb, H), f32)
    _ = jax.lax.fori_loop(0, T // U, rec_body, (zero, zero, zero, zero))

    # ---- 3. Attention (k=0, focus sentence) + projection head --------------
    hf2 = hf_scr[...].reshape(T * bb, H)                        # bf16
    hb2 = hb_scr[...].reshape(T * bb, H)
    # Merged matmul: [att_w | proj_w_h] per direction -> (T*bb, A+2)
    z = (jnp.dot(hf2, comb_f_ref[...], preferred_element_type=f32)
         + jnp.dot(hb2, comb_b_ref[...], preferred_element_type=f32))
    u = jnp.tanh(z[:, :A] + attb_ref[...])                      # (T*bb, A)
    lg_h = z[:, A:]                                             # (T*bb, 2)

    s = jnp.sum(u.reshape(T, bb, A) * attv_ref[...],
                axis=-1, keepdims=True)                         # (T, bb, 1)
    valid = (jax.lax.broadcasted_iota(jnp.int32, (T, bb, 1), 0)
             < len_col[None, :, :])
    s = jnp.where(valid, s, -1e30)
    m = jnp.max(s, axis=0, keepdims=True)
    e = jnp.exp(s - m)
    denom = jnp.sum(e, axis=0, keepdims=True)
    a_scr[...] = e * pl.reciprocal(denom, approx=True)          # alpha (T,bb,1)

    # Context vector, accumulated in T-chunks (bounds the f32 temp).
    def ctx_chunk(c, acc):
        acc_f, acc_b = acc
        t0 = pl.multiple_of(c * Tc, Tc)
        ac = a_scr[pl.ds(t0, Tc)]                               # (Tc, bb, 1)
        hf_c = hf_scr[pl.ds(t0, Tc)].astype(f32)                # (Tc, bb, H)
        hb_c = hb_scr[pl.ds(t0, Tc)].astype(f32)
        acc_f = acc_f + jnp.sum(ac * hf_c, axis=0)
        acc_b = acc_b + jnp.sum(ac * hb_c, axis=0)
        return (acc_f, acc_b)

    zctx = jnp.zeros((bb, H), f32)
    ctx_f, ctx_b = jax.lax.fori_loop(0, T // Tc, ctx_chunk, (zctx, zctx))

    lg_c = (jnp.dot(ctx_f.astype(bf16), pwc_f_ref[...],
                    preferred_element_type=f32)
            + jnp.dot(ctx_b.astype(bf16), pwc_b_ref[...],
                      preferred_element_type=f32))              # (bb, 2)

    logits = lg_h.reshape(T, bb, 2) + lg_c[None, :, :] + pb_ref[...]
    zmax = jnp.max(logits, axis=-1, keepdims=True)
    zc = logits - zmax
    lse = jnp.log(jnp.sum(jnp.exp(zc), axis=-1, keepdims=True))
    out_ref[...] = zc - lse                                     # (T, bb, 2)


# --------------------------------------------------------------------------- #
# VMEM budgeting / batch-block selection
# --------------------------------------------------------------------------- #
def _vmem_budget_bytes():
    cap = 64 * 1024 * 1024                       # conservative fallback (v7x)
    try:
        cap = int(pltpu.get_tpu_info().vmem_capacity_bytes)
    except Exception:
        pass
    return int(cap * 0.8)                        # ~51 MiB v7x, ~102 MiB v5e/v6e


def _block_footprint_bytes(T, bb, Dp, H, A):
    """Rough per-grid-block VMEM footprint for this kernel."""
    Tc = _time_chunk(T)
    bf, f4 = 2, 4
    n = 2 * T * bb * Dp * bf                     # x tile (bf16), double-buffered
    n += 2 * T * bb * 128 * f4                   # (T, bb, 2) output, lane-padded, x2
    n += 2 * bb * 128 * f4                       # lengths block, lane-padded, x2
    n += 2 * T * bb * 4 * H * bf                 # fwd+bwd gate scratch (bf16)
    n += 2 * T * bb * H * bf                     # fwd+bwd hidden scratch (bf16)
    n += T * bb * 128 * f4                       # alpha scratch, lane-padded
    n += 2 * (Dp * 8 * H + 2 * H * 8 * H
              + 2 * H * (A + 2) + 2 * H * 2) * bf  # weights (double-buffered)
    n += Tc * bb * 8 * H * f4                    # chunked projection f32 temp
    n += 2 * Tc * bb * H * f4                    # chunked context f32 temps
    n += 3 * T * bb * max(A + 2, 128) * f4       # z / u / softmax value temps
    return n


def _pick_batch_block(B, T, Dp, H, A, budget):
    cands = [c for c in range(B, 0, -1)
             if B % c == 0 and (c == B or c % 8 == 0)]
    fitting = [c for c in cands
               if int(_block_footprint_bytes(T, c, Dp, H, A) * 1.15) <= budget]
    if not fitting:
        return cands[-1]                          # best effort
    multi = [c for c in fitting if B // c >= 2]   # prefer grid >= 2 (overlap /
    return multi[0] if multi else fitting[0]      # megacore sharding)


# --------------------------------------------------------------------------- #
# Wrapper
# --------------------------------------------------------------------------- #
def _metaphor_forward(x, lengths, kp, batch_block=None):
    """x: (B, T, D) embeddings, lengths: (B,) ints -> (B, T, 2) log-probs."""
    B, T, D = x.shape
    Dp, H8 = kp['wih'].shape
    H = H8 // 8
    A = kp['att_b'].shape[1]
    if D > Dp:
        raise ValueError("embedding dim larger than the prepared weights")

    budget = _vmem_budget_bytes()
    bb = (batch_block if batch_block is not None
          else _pick_batch_block(B, T, Dp, H, A, budget))
    if B % bb != 0 or (bb != B and bb % 8 != 0):
        raise ValueError("batch_block must divide B and be a multiple of 8 "
                         "(or equal B)")

    # Time-major (T, B, Dp) bf16 embeddings (zero-padded to a 128-multiple D).
    if D < Dp:
        x = jnp.pad(x, ((0, 0), (0, 0), (0, Dp - D)))
    x_tm = jnp.transpose(x, (1, 0, 2)).astype(jnp.bfloat16)
    len_col = lengths.astype(jnp.int32).reshape(B, 1)

    c2 = lambda g: (0, 0)
    c3 = lambda g: (0, 0, 0)
    in_specs = [
        pl.BlockSpec((T, bb, Dp), lambda g: (0, g, 0)),
        pl.BlockSpec((bb, 1), lambda g: (g, 0)),
        pl.BlockSpec(kp['wih'].shape, c2),
        pl.BlockSpec(kp['b'].shape, c2),
        pl.BlockSpec(kp['whh'].shape, c2),
        pl.BlockSpec(kp['comb_f'].shape, c2),
        pl.BlockSpec(kp['comb_b'].shape, c2),
        pl.BlockSpec(kp['att_b'].shape, c2),
        pl.BlockSpec(kp['att_v'].shape, c3),
        pl.BlockSpec(kp['pwc_f'].shape, c2),
        pl.BlockSpec(kp['pwc_b'].shape, c2),
        pl.BlockSpec(kp['pb'].shape, c3),
    ]

    flops = int(2 * T * B * Dp * 8 * H            # input projection
                + 2 * T * B * 2 * H * 8 * H       # recurrence
                + 2 * T * B * 2 * H * (A + 2)     # attention + head on h
                + 2 * T * B * 2 * H               # context weighted sum
                + 2 * B * 2 * H * 2)              # context head
    transcendentals = int(T * B * (10 * H + A + 5))
    bytes_accessed = int(T * B * Dp * 2 + T * B * 2 * 4 + B * 4
                         + 2 * (Dp * 8 * H + 2 * H * 8 * H
                                + 2 * H * (A + 2) + 2 * H * 2))

    out_tm = pl.pallas_call(
        fused_metaphor_kernel,
        out_shape=jax.ShapeDtypeStruct((T, B, 2), jnp.float32),
        grid=(B // bb,),
        in_specs=in_specs,
        out_specs=pl.BlockSpec((T, bb, 2), lambda g: (0, g, 0)),
        scratch_shapes=[
            pltpu.VMEM((T, bb, 4 * H), jnp.bfloat16),   # fwd gate scratch
            pltpu.VMEM((T, bb, 4 * H), jnp.bfloat16),   # bwd gate scratch
            pltpu.VMEM((T, bb, H), jnp.bfloat16),       # fwd hidden states
            pltpu.VMEM((T, bb, H), jnp.bfloat16),       # bwd hidden states
            pltpu.VMEM((T, bb, 1), jnp.float32),        # attention weights
        ],
        compiler_params=pltpu.CompilerParams(
            dimension_semantics=("parallel",),
            vmem_limit_bytes=budget,
        ),
        cost_estimate=pl.CostEstimate(flops=flops,
                                      transcendentals=transcendentals,
                                      bytes_accessed=bytes_accessed),
    )(x_tm, len_col, kp['wih'], kp['b'], kp['whh'],
      kp['comb_f'], kp['comb_b'], kp['att_b'], kp['att_v'],
      kp['pwc_f'], kp['pwc_b'], kp['pb'])

    # Tiny (T*B*2) transpose back to the module's batch-first convention.
    return jnp.transpose(out_tm, (1, 0, 2))


metaphor_forward = jax.jit(_metaphor_forward, static_argnames=("batch_block",))


# --------------------------------------------------------------------------- #
# Parameters: PyTorch layout -> one-time kernel layout (transpose/combine/cast)
# --------------------------------------------------------------------------- #
def init_params(key, emb_dim, hidden, att_dim):
    """Random parameters in the PyTorch nn.LSTM / nn.Linear layout."""
    ks = jax.random.split(key, 11)
    s = 0.1
    dbl = 2 * hidden
    n = lambda k, shape: jax.random.normal(k, shape, dtype=jnp.float32) * s
    return {
        'wih_f':  n(ks[0], (4 * hidden, emb_dim)),
        'whh_f':  n(ks[1], (4 * hidden, hidden)),
        'b_f':    n(ks[2], (4 * hidden,)),
        'wih_b':  n(ks[3], (4 * hidden, emb_dim)),
        'whh_b':  n(ks[4], (4 * hidden, hidden)),
        'b_b':    n(ks[5], (4 * hidden,)),
        'att_w':  n(ks[6], (dbl, att_dim)),
        'att_b':  n(ks[7], (att_dim,)),
        'att_v':  n(ks[8], (att_dim,)),
        'proj_w': n(ks[9], (2, 2 * dbl)),     # nn.Linear(double*2, 2) weight
        'proj_b': n(ks[10], (2,)),
    }


def prepare_params(p):
    """One-time transform: pad / transpose / combine / cast for the kernel."""
    H = p['whh_f'].shape[1]
    A = p['att_w'].shape[1]
    D = p['wih_f'].shape[1]
    Dp = _round_up(D, 128)
    Dh = 2 * H
    bf, f32 = jnp.bfloat16, jnp.float32

    wih = jnp.concatenate([p['wih_f'].T, p['wih_b'].T], axis=1)       # (D, 8H)
    wih = jnp.pad(wih, ((0, Dp - D), (0, 0)))                         # (Dp, 8H)

    zblk = jnp.zeros((H, 4 * H), f32)
    whh = jnp.concatenate(                                            # (2H, 8H)
        [jnp.concatenate([p['whh_f'].T, zblk], axis=1),
         jnp.concatenate([zblk, p['whh_b'].T], axis=1)], axis=0)

    pw = p['proj_w']                        # (2, 2*Dh)
    pwh = pw[:, :Dh].T                      # (2H, 2)  — acts on LSTM output h
    pwc = pw[:, Dh:].T                      # (2H, 2)  — acts on context vector
    comb = jnp.concatenate([p['att_w'], pwh], axis=1)                 # (2H, A+2)

    return {
        'wih':    wih.astype(bf),
        'b':      jnp.concatenate([p['b_f'], p['b_b']]).reshape(1, 8 * H).astype(f32),
        'whh':    whh.astype(bf),                          # block-diag fused
        'comb_f': comb[:H].astype(bf),                     # (H, A+2)
        'comb_b': comb[H:].astype(bf),
        'att_b':  p['att_b'].reshape(1, A).astype(f32),
        'att_v':  p['att_v'].reshape(1, 1, A).astype(f32),
        'pwc_f':  pwc[:H].astype(bf),                      # (H, 2)
        'pwc_b':  pwc[H:].astype(bf),
        'pb':     p['proj_b'].reshape(1, 1, 2).astype(f32),
    }


if __name__ == "__main__":
    # Small shapes consistent with the forward pass:
    #   B=2 sentences, T=8 max tokens, emb_dim=32 (stand-in for ELMo1024+GloVe300),
    #   hidden=16 (stand-in for 128), attention dim=16.
    B, T, D, H, A = 2, 8, 32, 16, 16
    key = jax.random.PRNGKey(0)
    kx, kpar = jax.random.split(key)

    x = jax.random.normal(kx, (B, T, D), dtype=jnp.float32)   # synthetic embeddings
    lengths = jnp.array([8, 5], dtype=jnp.int32)

    params = init_params(kpar, D, H, A)
    kparams = prepare_params(params)          # one-time layout transform

    out = metaphor_forward(x, lengths, kparams)
    jax.block_until_ready(out)

    assert out.shape == (B, T, 2)
    assert bool(jnp.all(jnp.isfinite(out)))
    # log_softmax rows must sum to 1 in probability space
    assert bool(jnp.allclose(jnp.sum(jnp.exp(out), axis=-1), 1.0, atol=1e-3))

    print("KERNEL_OK")
</pallas_src>

<mosaic_0001>
module attributes {stable_mosaic.version = 11 : i64} {
  func.func @fused_metaphor_kernel(%arg0: i32, %arg1: memref<8x2x128xbf16, #tpu.memory_space<vmem>>, %arg2: memref<2x1xi32, #tpu.memory_space<vmem>>, %arg3: memref<128x128xbf16, #tpu.memory_space<vmem>>, %arg4: memref<1x128xf32, #tpu.memory_space<vmem>>, %arg5: memref<32x128xbf16, #tpu.memory_space<vmem>>, %arg6: memref<16x18xbf16, #tpu.memory_space<vmem>>, %arg7: memref<16x18xbf16, #tpu.memory_space<vmem>>, %arg8: memref<1x16xf32, #tpu.memory_space<vmem>>, %arg9: memref<1x1x16xf32, #tpu.memory_space<vmem>>, %arg10: memref<16x2xbf16, #tpu.memory_space<vmem>>, %arg11: memref<16x2xbf16, #tpu.memory_space<vmem>>, %arg12: memref<1x1x2xf32, #tpu.memory_space<vmem>>, %arg13: memref<8x2x2xf32, #tpu.memory_space<vmem>>, %arg14: memref<8x2x64xbf16, #tpu.memory_space<vmem>>, %arg15: memref<8x2x64xbf16, #tpu.memory_space<vmem>>, %arg16: memref<8x2x16xbf16, #tpu.memory_space<vmem>>, %arg17: memref<8x2x16xbf16, #tpu.memory_space<vmem>>, %arg18: memref<8x2x1xf32, #tpu.memory_space<vmem>>) attributes {dimension_semantics = [#tpu.dimension_semantics<parallel>], iteration_bounds = array<i64: 1>, scalar_prefetch = 0 : i64, scratch_operands = 5 : i64, tpu.core_type = #tpu.core_type<tc>, window_params = [{transform_indices = @transform_0, window_bounds = array<i64: 8, 2, 128>}, {transform_indices = @transform_1, window_bounds = array<i64: 2, 1>}, {pipeline_mode = #tpu.pipeline_mode<synchronous>, transform_indices = @transform_2, window_bounds = array<i64: 128, 128>}, {pipeline_mode = #tpu.pipeline_mode<synchronous>, transform_indices = @transform_3, window_bounds = array<i64: 1, 128>}, {pipeline_mode = #tpu.pipeline_mode<synchronous>, transform_indices = @transform_4, window_bounds = array<i64: 32, 128>}, {pipeline_mode = #tpu.pipeline_mode<synchronous>, transform_indices = @transform_5, window_bounds = array<i64: 16, 18>}, {pipeline_mode = #tpu.pipeline_mode<synchronous>, transform_indices = @transform_6, window_bounds = array<i64: 16, 18>}, {pipeline_mode = #tpu.pipeline_mode<synchronous>, transform_indices = @transform_7, window_bounds = array<i64: 1, 16>}, {pipeline_mode = #tpu.pipeline_mode<synchronous>, transform_indices = @transform_8, window_bounds = array<i64: 1, 1, 16>}, {pipeline_mode = #tpu.pipeline_mode<synchronous>, transform_indices = @transform_9, window_bounds = array<i64: 16, 2>}, {pipeline_mode = #tpu.pipeline_mode<synchronous>, transform_indices = @transform_10, window_bounds = array<i64: 16, 2>}, {pipeline_mode = #tpu.pipeline_mode<synchronous>, transform_indices = @transform_11, window_bounds = array<i64: 1, 1, 2>}, {transform_indices = @transform_12, window_bounds = array<i64: 8, 2, 2>}]} {
    %c0 = arith.constant 0 : index
    %c0_0 = arith.constant 0 : index
    %0 = vector.load %arg2[%c0, %c0_0] : memref<2x1xi32, #tpu.memory_space<vmem>>, vector<2x1xi32>
    %c0_1 = arith.constant 0 : index
    %c0_2 = arith.constant 0 : index
    %1 = vector.load %arg3[%c0_1, %c0_2] : memref<128x128xbf16, #tpu.memory_space<vmem>>, vector<128x128xbf16>
    %c0_3 = arith.constant 0 : index
    %c0_4 = arith.constant 0 : index
    %2 = vector.load %arg4[%c0_3, %c0_4] : memref<1x128xf32, #tpu.memory_space<vmem>>, vector<1x128xf32>
    %c0_i32 = arith.constant 0 : i32
    %c8_i32 = arith.constant 8 : i32
    %3 = arith.muli %c0_i32, %c8_i32 : i32
    %4 = tpu.assume_multiple %3, 8 : i32
    %5 = arith.index_cast %4 : i32 to index
    %c0_5 = arith.constant 0 : index
    %c0_6 = arith.constant 0 : index
    %6 = vector.load %arg1[%5, %c0_5, %c0_6] : memref<8x2x128xbf16, #tpu.memory_space<vmem>>, vector<8x2x128xbf16>
    %7 = vector.shape_cast %6 : vector<8x2x128xbf16> to vector<16x128xbf16>
    %cst = arith.constant dense<0.000000e+00> : vector<16x128xf32>
    %8 = tpu.matmul %7, %1, %cst {dimension_numbers = #tpu.dot_dimension_numbers<[1], [0], [0], [1], [0, 0, 1, 1], [], []>} : vector<16x128xbf16>, vector<128x128xbf16>, vector<16x128xf32> -> vector<16x128xf32>
    %9 = vector.broadcast %2 : vector<1x128xf32> to vector<16x128xf32>
    %10 = arith.addf %8, %9 : vector<16x128xf32>
    %11 = vector.shape_cast %10 : vector<16x128xf32> to vector<8x2x128xf32>
    %12 = vector.extract_strided_slice %11 {offsets = [0, 0, 0], sizes = [8, 2, 64], strides = [1, 1, 1]} : vector<8x2x128xf32> to vector<8x2x64xf32>
    %13 = arith.truncf %12 : vector<8x2x64xf32> to vector<8x2x64xbf16>
    %14 = arith.index_cast %4 : i32 to index
    %c0_7 = arith.constant 0 : index
    %c0_8 = arith.constant 0 : index
    %15 = vector.load %arg14[%14, %c0_7, %c0_8] : memref<8x2x64xbf16, #tpu.memory_space<vmem>>, vector<8x2x64xbf16>
    tpu.vector_store %arg14[%14, %c0_7, %c0_8], %13 {strides = array<i32>} : memref<8x2x64xbf16, #tpu.memory_space<vmem>>, vector<8x2x64xbf16>,
    %16 = vector.extract_strided_slice %11 {offsets = [0, 0, 64], sizes = [8, 2, 64], strides = [1, 1, 1]} : vector<8x2x128xf32> to vector<8x2x64xf32>
    %17 = arith.truncf %16 : vector<8x2x64xf32> to vector<8x2x64xbf16>
    %18 = arith.index_cast %4 : i32 to index
    %c0_9 = arith.constant 0 : index
    %c0_10 = arith.constant 0 : index
    %19 = vector.load %arg15[%18, %c0_9, %c0_10] : memref<8x2x64xbf16, #tpu.memory_space<vmem>>, vector<8x2x64xbf16>
    tpu.vector_store %arg15[%18, %c0_9, %c0_10], %17 {strides = array<i32>} : memref<8x2x64xbf16, #tpu.memory_space<vmem>>, vector<8x2x64xbf16>,
    %c1_i32 = arith.constant 1 : i32
    %cst_11 = arith.constant 0.000000e+00 : f32
    %20 = vector.broadcast %cst_11 : f32 to vector<2x16xf32>
    %c0_i32_12 = arith.constant 0 : i32
    %c2_i32 = arith.constant 2 : i32
    %21 = arith.addi %c0_i32_12, %c2_i32 : i32
    %c1_i32_13 = arith.constant 1 : i32
    %22:4 = scf.for %arg19 = %c0_i32_12 to %21 step %c1_i32_13 iter_args(%arg20 = %20, %arg21 = %20, %arg22 = %20, %arg23 = %20) -> (vector<2x16xf32>, vector<2x16xf32>, vector<2x16xf32>, vector<2x16xf32>)  : i32 {
      %c4_i32 = arith.constant 4 : i32
      %105 = arith.muli %arg19, %c4_i32 : i32
      %c0_i32_65 = arith.constant 0 : i32
      %106 = arith.addi %105, %c0_i32_65 : i32
      %c7_i32 = arith.constant 7 : i32
      %107 = arith.subi %c7_i32, %106 : i32
      %108 = tpu.concatenate %arg20, %arg22 in 1 : vector<2x16xf32>, vector<2x16xf32> -> vector<2x32xf32>
      %109 = arith.truncf %108 : vector<2x32xf32> to vector<2x32xbf16>
      %c0_66 = arith.constant 0 : index
      %c0_67 = arith.constant 0 : index
      %110 = vector.load %arg5[%c0_66, %c0_67] : memref<32x128xbf16, #tpu.memory_space<vmem>>, vector<32x128xbf16>
      %cst_68 = arith.constant dense<0.000000e+00> : vector<2x128xf32>
      %111 = tpu.matmul %109, %110, %cst_68 {dimension_numbers = #tpu.dot_dimension_numbers<[1], [0], [0], [1], [0, 0, 1, 1], [], []>} : vector<2x32xbf16>, vector<32x128xbf16>, vector<2x128xf32> -> vector<2x128xf32>
      %112 = arith.index_cast %106 : i32 to index
      %c0_69 = arith.constant 0 : index
      %c0_70 = arith.constant 0 : index
      %113 = vector.load %arg14[%112, %c0_69, %c0_70] : memref<8x2x64xbf16, #tpu.memory_space<vmem>>, vector<1x2x64xbf16>
      %114 = vector.shape_cast %113 : vector<1x2x64xbf16> to vector<2x64xbf16>
      %115 = arith.extf %114 : vector<2x64xbf16> to vector<2x64xf32>
      %116 = vector.extract_strided_slice %111 {offsets = [0, 0], sizes = [2, 64], strides = [1, 1]} : vector<2x128xf32> to vector<2x64xf32>
      %117 = arith.addf %115, %116 : vector<2x64xf32>
      %118 = arith.index_cast %107 : i32 to index
      %c0_71 = arith.constant 0 : index
      %c0_72 = arith.constant 0 : index
      %119 = vector.load %arg15[%118, %c0_71, %c0_72] : memref<8x2x64xbf16, #tpu.memory_space<vmem>>, vector<1x2x64xbf16>
      %120 = vector.shape_cast %119 : vector<1x2x64xbf16> to vector<2x64xbf16>
      %121 = arith.extf %120 : vector<2x64xbf16> to vector<2x64xf32>
      %122 = vector.extract_strided_slice %111 {offsets = [0, 64], sizes = [2, 64], strides = [1, 1]} : vector<2x128xf32> to vector<2x64xf32>
      %123 = arith.addf %121, %122 : vector<2x64xf32>
      %124 = vector.extract_strided_slice %117 {offsets = [0, 0], sizes = [2, 16], strides = [1, 1]} : vector<2x64xf32> to vector<2x16xf32>
      %cst_73 = arith.constant 5.000000e-01 : f32
      %125 = vector.broadcast %cst_73 : f32 to vector<2x16xf32>
      %126 = arith.mulf %125, %124 : vector<2x16xf32>
      %127 = math.tanh %126 : vector<2x16xf32>
      %cst_74 = arith.constant 5.000000e-01 : f32
      %128 = vector.broadcast %cst_74 : f32 to vector<2x16xf32>
      %129 = arith.mulf %128, %127 : vector<2x16xf32>
      %cst_75 = arith.constant 5.000000e-01 : f32
      %130 = vector.broadcast %cst_75 : f32 to vector<2x16xf32>
      %131 = arith.addf %129, %130 : vector<2x16xf32>
      %132 = vector.extract_strided_slice %117 {offsets = [0, 16], sizes = [2, 16], strides = [1, 1]} : vector<2x64xf32> to vector<2x16xf32>
      %cst_76 = arith.constant 5.000000e-01 : f32
      %133 = vector.broadcast %cst_76 : f32 to vector<2x16xf32>
      %134 = arith.mulf %133, %132 : vector<2x16xf32>
      %135 = math.tanh %134 : vector<2x16xf32>
      %cst_77 = arith.constant 5.000000e-01 : f32
      %136 = vector.broadcast %cst_77 : f32 to vector<2x16xf32>
      %137 = arith.mulf %136, %135 : vector<2x16xf32>
      %cst_78 = arith.constant 5.000000e-01 : f32
      %138 = vector.broadcast %cst_78 : f32 to vector<2x16xf32>
      %139 = arith.addf %137, %138 : vector<2x16xf32>
      %140 = vector.extract_strided_slice %117 {offsets = [0, 32], sizes = [2, 16], strides = [1, 1]} : vector<2x64xf32> to vector<2x16xf32>
      %141 = math.tanh %140 : vector<2x16xf32>
      %142 = vector.extract_strided_slice %117 {offsets = [0, 48], sizes = [2, 16], strides = [1, 1]} : vector<2x64xf32> to vector<2x16xf32>
      %cst_79 = arith.constant 5.000000e-01 : f32
      %143 = vector.broadcast %cst_79 : f32 to vector<2x16xf32>
      %144 = arith.mulf %143, %142 : vector<2x16xf32>
      %145 = math.tanh %144 : vector<2x16xf32>
      %cst_80 = arith.constant 5.000000e-01 : f32
      %146 = vector.broadcast %cst_80 : f32 to vector<2x16xf32>
      %147 = arith.mulf %146, %145 : vector<2x16xf32>
      %cst_81 = arith.constant 5.000000e-01 : f32
      %148 = vector.broadcast %cst_81 : f32 to vector<2x16xf32>
      %149 = arith.addf %147, %148 : vector<2x16xf32>
      %150 = arith.mulf %139, %arg21 : vector<2x16xf32>
      %151 = arith.mulf %131, %141 : vector<2x16xf32>
      %152 = arith.addf %150, %151 : vector<2x16xf32>
      %153 = math.tanh %152 : vector<2x16xf32>
      %154 = arith.mulf %149, %153 : vector<2x16xf32>
      %155 = vector.extract_strided_slice %123 {offsets = [0, 0], sizes = [2, 16], strides = [1, 1]} : vector<2x64xf32> to vector<2x16xf32>
      %cst_82 = arith.constant 5.000000e-01 : f32
      %156 = vector.broadcast %cst_82 : f32 to vector<2x16xf32>
      %157 = arith.mulf %156, %155 : vector<2x16xf32>
      %158 = math.tanh %157 : vector<2x16xf32>
      %cst_83 = arith.constant 5.000000e-01 : f32
      %159 = vector.broadcast %cst_83 : f32 to vector<2x16xf32>
      %160 = arith.mulf %159, %158 : vector<2x16xf32>
      %cst_84 = arith.constant 5.000000e-01 : f32
      %161 = vector.broadcast %cst_84 : f32 to vector<2x16xf32>
      %162 = arith.addf %160, %161 : vector<2x16xf32>
      %163 = vector.extract_strided_slice %123 {offsets = [0, 16], sizes = [2, 16], strides = [1, 1]} : vector<2x64xf32> to vector<2x16xf32>
      %cst_85 = arith.constant 5.000000e-01 : f32
      %164 = vector.broadcast %cst_85 : f32 to vector<2x16xf32>
      %165 = arith.mulf %164, %163 : vector<2x16xf32>
      %166 = math.tanh %165 : vector<2x16xf32>
      %cst_86 = arith.constant 5.000000e-01 : f32
      %167 = vector.broadcast %cst_86 : f32 to vector<2x16xf32>
      %168 = arith.mulf %167, %166 : vector<2x16xf32>
      %cst_87 = arith.constant 5.000000e-01 : f32
      %169 = vector.broadcast %cst_87 : f32 to vector<2x16xf32>
      %170 = arith.addf %168, %169 : vector<2x16xf32>
      %171 = vector.extract_strided_slice %123 {offsets = [0, 32], sizes = [2, 16], strides = [1, 1]} : vector<2x64xf32> to vector<2x16xf32>
      %172 = math.tanh %171 : vector<2x16xf32>
      %173 = vector.extract_strided_slice %123 {offsets = [0, 48], sizes = [2, 16], strides = [1, 1]} : vector<2x64xf32> to vector<2x16xf32>
      %cst_88 = arith.constant 5.000000e-01 : f32
      %174 = vector.broadcast %cst_88 : f32 to vector<2x16xf32>
      %175 = arith.mulf %174, %173 : vector<2x16xf32>
      %176 = math.tanh %175 : vector<2x16xf32>
      %cst_89 = arith.constant 5.000000e-01 : f32
      %177 = vector.broadcast %cst_89 : f32 to vector<2x16xf32>
      %178 = arith.mulf %177, %176 : vector<2x16xf32>
      %cst_90 = arith.constant 5.000000e-01 : f32
      %179 = vector.broadcast %cst_90 : f32 to vector<2x16xf32>
      %180 = arith.addf %178, %179 : vector<2x16xf32>
      %181 = arith.mulf %170, %arg23 : vector<2x16xf32>
      %182 = arith.mulf %162, %172 : vector<2x16xf32>
      %183 = arith.addf %181, %182 : vector<2x16xf32>
      %184 = math.tanh %183 : vector<2x16xf32>
      %185 = arith.mulf %180, %184 : vector<2x16xf32>
      %186 = vector.broadcast %106 : i32 to vector<2x1xi32>
      %187 = arith.cmpi sgt, %0, %186 : vector<2x1xi32>
      %188 = vector.broadcast %107 : i32 to vector<2x1xi32>
      %189 = arith.cmpi sgt, %0, %188 : vector<2x1xi32>
      %cst_91 = arith.constant 0.000000e+00 : f32
      %190 = vector.shape_cast %187 : vector<2x1xi1> to vector<2x1xi1>
      %191 = vector.broadcast %190 : vector<2x1xi1> to vector<2x16xi1>
      %192 = vector.broadcast %cst_91 : f32 to vector<2x16xf32>
      %193 = arith.select %191, %154, %192 : vector<2x16xi1>, vector<2x16xf32>
      %194 = arith.truncf %193 : vector<2x16xf32> to vector<2x16xbf16>
      %195 = arith.index_cast %106 : i32 to index
      %c0_92 = arith.constant 0 : index
      %c0_93 = arith.constant 0 : index
      %196 = vector.load %arg16[%195, %c0_92, %c0_93] : memref<8x2x16xbf16, #tpu.memory_space<vmem>>, vector<1x2x16xbf16>
      %197 = vector.shape_cast %196 : vector<1x2x16xbf16> to vector<2x16xbf16>
      %198 = vector.shape_cast %194 : vector<2x16xbf16> to vector<1x2x16xbf16>
      tpu.vector_store %arg16[%195, %c0_92, %c0_93], %198 {strides = array<i32>} : memref<8x2x16xbf16, #tpu.memory_space<vmem>>, vector<1x2x16xbf16>,
      %cst_94 = arith.constant 0.000000e+00 : f32
      %199 = vector.shape_cast %189 : vector<2x1xi1> to vector<2x1xi1>
      %200 = vector.broadcast %199 : vector<2x1xi1> to vector<2x16xi1>
      %201 = vector.broadcast %cst_94 : f32 to vector<2x16xf32>
      %202 = arith.select %200, %185, %201 : vector<2x16xi1>, vector<2x16xf32>
      %203 = arith.truncf %202 : vector<2x16xf32> to vector<2x16xbf16>
      %204 = arith.index_cast %107 : i32 to index
      %c0_95 = arith.constant 0 : index
      %c0_96 = arith.constant 0 : index
      %205 = vector.load %arg17[%204, %c0_95, %c0_96] : memref<8x2x16xbf16, #tpu.memory_space<vmem>>, vector<1x2x16xbf16>
      %206 = vector.shape_cast %205 : vector<1x2x16xbf16> to vector<2x16xbf16>
      %207 = vector.shape_cast %203 : vector<2x16xbf16> to vector<1x2x16xbf16>
      tpu.vector_store %arg17[%204, %c0_95, %c0_96], %207 {strides = array<i32>} : memref<8x2x16xbf16, #tpu.memory_space<vmem>>, vector<1x2x16xbf16>,
      %208 = vector.shape_cast %187 : vector<2x1xi1> to vector<2x1xi1>
      %209 = vector.broadcast %208 : vector<2x1xi1> to vector<2x16xi1>
      %210 = arith.select %209, %154, %arg20 : vector<2x16xi1>, vector<2x16xf32>
      %211 = vector.shape_cast %187 : vector<2x1xi1> to vector<2x1xi1>
      %212 = vector.broadcast %211 : vector<2x1xi1> to vector<2x16xi1>
      %213 = arith.select %212, %152, %arg21 : vector<2x16xi1>, vector<2x16xf32>
      %214 = vector.shape_cast %189 : vector<2x1xi1> to vector<2x1xi1>
      %215 = vector.broadcast %214 : vector<2x1xi1> to vector<2x16xi1>
      %216 = arith.select %215, %185, %arg22 : vector<2x16xi1>, vector<2x16xf32>
      %217 = vector.shape_cast %189 : vector<2x1xi1> to vector<2x1xi1>
      %218 = vector.broadcast %217 : vector<2x1xi1> to vector<2x16xi1>
      %219 = arith.select %218, %183, %arg23 : vector<2x16xi1>, vector<2x16xf32>
      %c1_i32_97 = arith.constant 1 : i32
      %220 = arith.addi %105, %c1_i32_97 : i32
      %c7_i32_98 = arith.constant 7 : i32
      %221 = arith.subi %c7_i32_98, %220 : i32
      %222 = tpu.concatenate %210, %216 in 1 : vector<2x16xf32>, vector<2x16xf32> -> vector<2x32xf32>
      %223 = arith.truncf %222 : vector<2x32xf32> to vector<2x32xbf16>
      %c0_99 = arith.constant 0 : index
      %c0_100 = arith.constant 0 : index
      %224 = vector.load %arg5[%c0_99, %c0_100] : memref<32x128xbf16, #tpu.memory_space<vmem>>, vector<32x128xbf16>
      %cst_101 = arith.constant dense<0.000000e+00> : vector<2x128xf32>
      %225 = tpu.matmul %223, %224, %cst_101 {dimension_numbers = #tpu.dot_dimension_numbers<[1], [0], [0], [1], [0, 0, 1, 1], [], []>} : vector<2x32xbf16>, vector<32x128xbf16>, vector<2x128xf32> -> vector<2x128xf32>
      %226 = arith.index_cast %220 : i32 to index
      %c0_102 = arith.constant 0 : index
      %c0_103 = arith.constant 0 : index
      %227 = vector.load %arg14[%226, %c0_102, %c0_103] : memref<8x2x64xbf16, #tpu.memory_space<vmem>>, vector<1x2x64xbf16>
      %228 = vector.shape_cast %227 : vector<1x2x64xbf16> to vector<2x64xbf16>
      %229 = arith.extf %228 : vector<2x64xbf16> to vector<2x64xf32>
      %230 = vector.extract_strided_slice %225 {offsets = [0, 0], sizes = [2, 64], strides = [1, 1]} : vector<2x128xf32> to vector<2x64xf32>
      %231 = arith.addf %229, %230 : vector<2x64xf32>
      %232 = arith.index_cast %221 : i32 to index
      %c0_104 = arith.constant 0 : index
      %c0_105 = arith.constant 0 : index
      %233 = vector.load %arg15[%232, %c0_104, %c0_105] : memref<8x2x64xbf16, #tpu.memory_space<vmem>>, vector<1x2x64xbf16>
      %234 = vector.shape_cast %233 : vector<1x2x64xbf16> to vector<2x64xbf16>
      %235 = arith.extf %234 : vector<2x64xbf16> to vector<2x64xf32>
      %236 = vector.extract_strided_slice %225 {offsets = [0, 64], sizes = [2, 64], strides = [1, 1]} : vector<2x128xf32> to vector<2x64xf32>
      %237 = arith.addf %235, %236 : vector<2x64xf32>
      %238 = vector.extract_strided_slice %231 {offsets = [0, 0], sizes = [2, 16], strides = [1, 1]} : vector<2x64xf32> to vector<2x16xf32>
      %cst_106 = arith.constant 5.000000e-01 : f32
      %239 = vector.broadcast %cst_106 : f32 to vector<2x16xf32>
      %240 = arith.mulf %239, %238 : vector<2x16xf32>
      %241 = math.tanh %240 : vector<2x16xf32>
      %cst_107 = arith.constant 5.000000e-01 : f32
      %242 = vector.broadcast %cst_107 : f32 to vector<2x16xf32>
      %243 = arith.mulf %242, %241 : vector<2x16xf32>
      %cst_108 = arith.constant 5.000000e-01 : f32
      %244 = vector.broadcast %cst_108 : f32 to vector<2x16xf32>
      %245 = arith.addf %243, %244 : vector<2x16xf32>
      %246 = vector.extract_strided_slice %231 {offsets = [0, 16], sizes = [2, 16], strides = [1, 1]} : vector<2x64xf32> to vector<2x16xf32>
      %cst_109 = arith.constant 5.000000e-01 : f32
      %247 = vector.broadcast %cst_109 : f32 to vector<2x16xf32>
      %248 = arith.mulf %247, %246 : vector<2x16xf32>
      %249 = math.tanh %248 : vector<2x16xf32>
      %cst_110 = arith.constant 5.000000e-01 : f32
      %250 = vector.broadcast %cst_110 : f32 to vector<2x16xf32>
      %251 = arith.mulf %250, %249 : vector<2x16xf32>
      %cst_111 = arith.constant 5.000000e-01 : f32
      %252 = vector.broadcast %cst_111 : f32 to vector<2x16xf32>
      %253 = arith.addf %251, %252 : vector<2x16xf32>
      %254 = vector.extract_strided_slice %231 {offsets = [0, 32], sizes = [2, 16], strides = [1, 1]} : vector<2x64xf32> to vector<2x16xf32>
      %255 = math.tanh %254 : vector<2x16xf32>
      %256 = vector.extract_strided_slice %231 {offsets = [0, 48], sizes = [2, 16], strides = [1, 1]} : vector<2x64xf32> to vector<2x16xf32>
      %cst_112 = arith.constant 5.000000e-01 : f32
      %257 = vector.broadcast %cst_112 : f32 to vector<2x16xf32>
      %258 = arith.mulf %257, %256 : vector<2x16xf32>
      %259 = math.tanh %258 : vector<2x16xf32>
      %cst_113 = arith.constant 5.000000e-01 : f32
      %260 = vector.broadcast %cst_113 : f32 to vector<2x16xf32>
      %261 = arith.mulf %260, %259 : vector<2x16xf32>
      %cst_114 = arith.constant 5.000000e-01 : f32
      %262 = vector.broadcast %cst_114 : f32 to vector<2x16xf32>
      %263 = arith.addf %261, %262 : vector<2x16xf32>
      %264 = arith.mulf %253, %213 : vector<2x16xf32>
      %265 = arith.mulf %245, %255 : vector<2x16xf32>
      %266 = arith.addf %264, %265 : vector<2x16xf32>
      %267 = math.tanh %266 : vector<2x16xf32>
      %268 = arith.mulf %263, %267 : vector<2x16xf32>
      %269 = vector.extract_strided_slice %237 {offsets = [0, 0], sizes = [2, 16], strides = [1, 1]} : vector<2x64xf32> to vector<2x16xf32>
      %cst_115 = arith.constant 5.000000e-01 : f32
      %270 = vector.broadcast %cst_115 : f32 to vector<2x16xf32>
      %271 = arith.mulf %270, %269 : vector<2x16xf32>
      %272 = math.tanh %271 : vector<2x16xf32>
      %cst_116 = arith.constant 5.000000e-01 : f32
      %273 = vector.broadcast %cst_116 : f32 to vector<2x16xf32>
      %274 = arith.mulf %273, %272 : vector<2x16xf32>
      %cst_117 = arith.constant 5.000000e-01 : f32
      %275 = vector.broadcast %cst_117 : f32 to vector<2x16xf32>
      %276 = arith.addf %274, %275 : vector<2x16xf32>
      %277 = vector.extract_strided_slice %237 {offsets = [0, 16], sizes = [2, 16], strides = [1, 1]} : vector<2x64xf32> to vector<2x16xf32>
      %cst_118 = arith.constant 5.000000e-01 : f32
      %278 = vector.broadcast %cst_118 : f32 to vector<2x16xf32>
      %279 = arith.mulf %278, %277 : vector<2x16xf32>
      %280 = math.tanh %279 : vector<2x16xf32>
      %cst_119 = arith.constant 5.000000e-01 : f32
      %281 = vector.broadcast %cst_119 : f32 to vector<2x16xf32>
      %282 = arith.mulf %281, %280 : vector<2x16xf32>
      %cst_120 = arith.constant 5.000000e-01 : f32
      %283 = vector.broadcast %cst_120 : f32 to vector<2x16xf32>
      %284 = arith.addf %282, %283 : vector<2x16xf32>
      %285 = vector.extract_strided_slice %237 {offsets = [0, 32], sizes = [2, 16], strides = [1, 1]} : vector<2x64xf32> to vector<2x16xf32>
      %286 = math.tanh %285 : vector<2x16xf32>
      %287 = vector.extract_strided_slice %237 {offsets = [0, 48], sizes = [2, 16], strides = [1, 1]} : vector<2x64xf32> to vector<2x16xf32>
      %cst_121 = arith.constant 5.000000e-01 : f32
      %288 = vector.broadcast %cst_121 : f32 to vector<2x16xf32>
      %289 = arith.mulf %288, %287 : vector<2x16xf32>
      %290 = math.tanh %289 : vector<2x16xf32>
      %cst_122 = arith.constant 5.000000e-01 : f32
      %291 = vector.broadcast %cst_122 : f32 to vector<2x16xf32>
      %292 = arith.mulf %291, %290 : vector<2x16xf32>
      %cst_123 = arith.constant 5.000000e-01 : f32
      %293 = vector.broadcast %cst_123 : f32 to vector<2x16xf32>
      %294 = arith.addf %292, %293 : vector<2x16xf32>
      %295 = arith.mulf %284, %219 : vector<2x16xf32>
      %296 = arith.mulf %276, %286 : vector<2x16xf32>
      %297 = arith.addf %295, %296 : vector<2x16xf32>
      %298 = math.tanh %297 : vector<2x16xf32>
      %299 = arith.mulf %294, %298 : vector<2x16xf32>
      %300 = vector.broadcast %220 : i32 to vector<2x1xi32>
      %301 = arith.cmpi sgt, %0, %300 : vector<2x1xi32>
      %302 = vector.broadcast %221 : i32 to vector<2x1xi32>
      %303 = arith.cmpi sgt, %0, %302 : vector<2x1xi32>
      %cst_124 = arith.constant 0.000000e+00 : f32
      %304 = vector.shape_cast %301 : vector<2x1xi1> to vector<2x1xi1>
      %305 = vector.broadcast %304 : vector<2x1xi1> to vector<2x16xi1>
      %306 = vector.broadcast %cst_124 : f32 to vector<2x16xf32>
      %307 = arith.select %305, %268, %306 : vector<2x16xi1>, vector<2x16xf32>
      %308 = arith.truncf %307 : vector<2x16xf32> to vector<2x16xbf16>
      %309 = arith.index_cast %220 : i32 to index
      %c0_125 = arith.constant 0 : index
      %c0_126 = arith.constant 0 : index
      %310 = vector.load %arg16[%309, %c0_125, %c0_126] : memref<8x2x16xbf16, #tpu.memory_space<vmem>>, vector<1x2x16xbf16>
      %311 = vector.shape_cast %310 : vector<1x2x16xbf16> to vector<2x16xbf16>
      %312 = vector.shape_cast %308 : vector<2x16xbf16> to vector<1x2x16xbf16>
      tpu.vector_store %arg16[%309, %c0_125, %c0_126], %312 {strides = array<i32>} : memref<8x2x16xbf16, #tpu.memory_space<vmem>>, vector<1x2x16xbf16>,
      %cst_127 = arith.constant 0.000000e+00 : f32
      %313 = vector.shape_cast %303 : vector<2x1xi1> to vector<2x1xi1>
      %314 = vector.broadcast %313 : vector<2x1xi1> to vector<2x16xi1>
      %315 = vector.broadcast %cst_127 : f32 to vector<2x16xf32>
      %316 = arith.select %314, %299, %315 : vector<2x16xi1>, vector<2x16xf32>
      %317 = arith.truncf %316 : vector<2x16xf32> to vector<2x16xbf16>
      %318 = arith.index_cast %221 : i32 to index
      %c0_128 = arith.constant 0 : index
      %c0_129 = arith.constant 0 : index
      %319 = vector.load %arg17[%318, %c0_128, %c0_129] : memref<8x2x16xbf16, #tpu.memory_space<vmem>>, vector<1x2x16xbf16>
      %320 = vector.shape_cast %319 : vector<1x2x16xbf16> to vector<2x16xbf16>
      %321 = vector.shape_cast %317 : vector<2x16xbf16> to vector<1x2x16xbf16>
      tpu.vector_store %arg17[%318, %c0_128, %c0_129], %321 {strides = array<i32>} : memref<8x2x16xbf16, #tpu.memory_space<vmem>>, vector<1x2x16xbf16>,
      %322 = vector.shape_cast %301 : vector<2x1xi1> to vector<2x1xi1>
      %323 = vector.broadcast %322 : vector<2x1xi1> to vector<2x16xi1>
      %324 = arith.select %323, %268, %210 : vector<2x16xi1>, vector<2x16xf32>
      %325 = vector.shape_cast %301 : vector<2x1xi1> to vector<2x1xi1>
      %326 = vector.broadcast %325 : vector<2x1xi1> to vector<2x16xi1>
      %327 = arith.select %326, %266, %213 : vector<2x16xi1>, vector<2x16xf32>
      %328 = vector.shape_cast %303 : vector<2x1xi1> to vector<2x1xi1>
      %329 = vector.broadcast %328 : vector<2x1xi1> to vector<2x16xi1>
      %330 = arith.select %329, %299, %216 : vector<2x16xi1>, vector<2x16xf32>
      %331 = vector.shape_cast %303 : vector<2x1xi1> to vector<2x1xi1>
      %332 = vector.broadcast %331 : vector<2x1xi1> to vector<2x16xi1>
      %333 = arith.select %332, %297, %219 : vector<2x16xi1>, vector<2x16xf32>
      %c2_i32_130 = arith.constant 2 : i32
      %334 = arith.addi %105, %c2_i32_130 : i32
      %c7_i32_131 = arith.constant 7 : i32
      %335 = arith.subi %c7_i32_131, %334 : i32
      %336 = tpu.concatenate %324, %330 in 1 : vector<2x16xf32>, vector<2x16xf32> -> vector<2x32xf32>
      %337 = arith.truncf %336 : vector<2x32xf32> to vector<2x32xbf16>
      %c0_132 = arith.constant 0 : index
      %c0_133 = arith.constant 0 : index
      %338 = vector.load %arg5[%c0_132, %c0_133] : memref<32x128xbf16, #tpu.memory_space<vmem>>, vector<32x128xbf16>
      %cst_134 = arith.constant dense<0.000000e+00> : vector<2x128xf32>
      %339 = tpu.matmul %337, %338, %cst_134 {dimension_numbers = #tpu.dot_dimension_numbers<[1], [0], [0], [1], [0, 0, 1, 1], [], []>} : vector<2x32xbf16>, vector<32x128xbf16>, vector<2x128xf32> -> vector<2x128xf32>
      %340 = arith.index_cast %334 : i32 to index
      %c0_135 = arith.constant 0 : index
      %c0_136 = arith.constant 0 : index
      %341 = vector.load %arg14[%340, %c0_135, %c0_136] : memref<8x2x64xbf16, #tpu.memory_space<vmem>>, vector<1x2x64xbf16>
      %342 = vector.shape_cast %341 : vector<1x2x64xbf16> to vector<2x64xbf16>
      %343 = arith.extf %342 : vector<2x64xbf16> to vector<2x64xf32>
      %344 = vector.extract_strided_slice %339 {offsets = [0, 0], sizes = [2, 64], strides = [1, 1]} : vector<2x128xf32> to vector<2x64xf32>
      %345 = arith.addf %343, %344 : vector<2x64xf32>
      %346 = arith.index_cast %335 : i32 to index
      %c0_137 = arith.constant 0 : index
      %c0_138 = arith.constant 0 : index
      %347 = vector.load %arg15[%346, %c0_137, %c0_138] : memref<8x2x64xbf16, #tpu.memory_space<vmem>>, vector<1x2x64xbf16>
      %348 = vector.shape_cast %347 : vector<1x2x64xbf16> to vector<2x64xbf16>
      %349 = arith.extf %348 : vector<2x64xbf16> to vector<2x64xf32>
      %350 = vector.extract_strided_slice %339 {offsets = [0, 64], sizes = [2, 64], strides = [1, 1]} : vector<2x128xf32> to vector<2x64xf32>
      %351 = arith.addf %349, %350 : vector<2x64xf32>
      %352 = vector.extract_strided_slice %345 {offsets = [0, 0], sizes = [2, 16], strides = [1, 1]} : vector<2x64xf32> to vector<2x16xf32>
      %cst_139 = arith.constant 5.000000e-01 : f32
      %353 = vector.broadcast %cst_139 : f32 to vector<2x16xf32>
      %354 = arith.mulf %353, %352 : vector<2x16xf32>
      %355 = math.tanh %354 : vector<2x16xf32>
      %cst_140 = arith.constant 5.000000e-01 : f32
      %356 = vector.broadcast %cst_140 : f32 to vector<2x16xf32>
      %357 = arith.mulf %356, %355 : vector<2x16xf32>
      %cst_141 = arith.constant 5.000000e-01 : f32
      %358 = vector.broadcast %cst_141 : f32 to vector<2x16xf32>
      %359 = arith.addf %357, %358 : vector<2x16xf32>
      %360 = vector.extract_strided_slice %345 {offsets = [0, 16], sizes = [2, 16], strides = [1, 1]} : vector<2x64xf32> to vector<2x16xf32>
      %cst_142 = arith.constant 5.000000e-01 : f32
      %361 = vector.broadcast %cst_142 : f32 to vector<2x16xf32>
      %362 = arith.mulf %361, %360 : vector<2x16xf32>
      %363 = math.tanh %362 : vector<2x16xf32>
      %cst_143 = arith.constant 5.000000e-01 : f32
      %364 = vector.broadcast %cst_143 : f32 to vector<2x16xf32>
      %365 = arith.mulf %364, %363 : vector<2x16xf32>
      %cst_144 = arith.constant 5.000000e-01 : f32
      %366 = vector.broadcast %cst_144 : f32 to vector<2x16xf32>
      %367 = arith.addf %365, %366 : vector<2x16xf32>
      %368 = vector.extract_strided_slice %345 {offsets = [0, 32], sizes = [2, 16], strides = [1, 1]} : vector<2x64xf32> to vector<2x16xf32>
      %369 = math.tanh %368 : vector<2x16xf32>
      %370 = vector.extract_strided_slice %345 {offsets = [0, 48], sizes = [2, 16], strides = [1, 1]} : vector<2x64xf32> to vector<2x16xf32>
      %cst_145 = arith.constant 5.000000e-01 : f32
      %371 = vector.broadcast %cst_145 : f32 to vector<2x16xf32>
      %372 = arith.mulf %371, %370 : vector<2x16xf32>
      %373 = math.tanh %372 : vector<2x16xf32>
      %cst_146 = arith.constant 5.000000e-01 : f32
      %374 = vector.broadcast %cst_146 : f32 to vector<2x16xf32>
      %375 = arith.mulf %374, %373 : vector<2x16xf32>
      %cst_147 = arith.constant 5.000000e-01 : f32
      %376 = vector.broadcast %cst_147 : f32 to vector<2x16xf32>
      %377 = arith.addf %375, %376 : vector<2x16xf32>
      %378 = arith.mulf %367, %327 : vector<2x16xf32>
      %379 = arith.mulf %359, %369 : vector<2x16xf32>
      %380 = arith.addf %378, %379 : vector<2x16xf32>
      %381 = math.tanh %380 : vector<2x16xf32>
      %382 = arith.mulf %377, %381 : vector<2x16xf32>
      %383 = vector.extract_strided_slice %351 {offsets = [0, 0], sizes = [2, 16], strides = [1, 1]} : vector<2x64xf32> to vector<2x16xf32>
      %cst_148 = arith.constant 5.000000e-01 : f32
      %384 = vector.broadcast %cst_148 : f32 to vector<2x16xf32>
      %385 = arith.mulf %384, %383 : vector<2x16xf32>
      %386 = math.tanh %385 : vector<2x16xf32>
      %cst_149 = arith.constant 5.000000e-01 : f32
      %387 = vector.broadcast %cst_149 : f32 to vector<2x16xf32>
      %388 = arith.mulf %387, %386 : vector<2x16xf32>
      %cst_150 = arith.constant 5.000000e-01 : f32
      %389 = vector.broadcast %cst_150 : f32 to vector<2x16xf32>
      %390 = arith.addf %388, %389 : vector<2x16xf32>
      %391 = vector.extract_strided_slice %351 {offsets = [0, 16], sizes = [2, 16], strides = [1, 1]} : vector<2x64xf32> to vector<2x16xf32>
      %cst_151 = arith.constant 5.000000e-01 : f32
      %392 = vector.broadcast %cst_151 : f32 to vector<2x16xf32>
      %393 = arith.mulf %392, %391 : vector<2x16xf32>
      %394 = math.tanh %393 : vector<2x16xf32>
      %cst_152 = arith.constant 5.000000e-01 : f32
      %395 = vector.broadcast %cst_152 : f32 to vector<2x16xf32>
      %396 = arith.mulf %395, %394 : vector<2x16xf32>
      %cst_153 = arith.constant 5.000000e-01 : f32
      %397 = vector.broadcast %cst_153 : f32 to vector<2x16xf32>
      %398 = arith.addf %396, %397 : vector<2x16xf32>
      %399 = vector.extract_strided_slice %351 {offsets = [0, 32], sizes = [2, 16], strides = [1, 1]} : vector<2x64xf32> to vector<2x16xf32>
      %400 = math.tanh %399 : vector<2x16xf32>
      %401 = vector.extract_strided_slice %351 {offsets = [0, 48], sizes = [2, 16], strides = [1, 1]} : vector<2x64xf32> to vector<2x16xf32>
      %cst_154 = arith.constant 5.000000e-01 : f32
      %402 = vector.broadcast %cst_154 : f32 to vector<2x16xf32>
      %403 = arith.mulf %402, %401 : vector<2x16xf32>
      %404 = math.tanh %403 : vector<2x16xf32>
      %cst_155 = arith.constant 5.000000e-01 : f32
      %405 = vector.broadcast %cst_155 : f32 to vector<2x16xf32>
      %406 = arith.mulf %405, %404 : vector<2x16xf32>
      %cst_156 = arith.constant 5.000000e-01 : f32
      %407 = vector.broadcast %cst_156 : f32 to vector<2x16xf32>
      %408 = arith.addf %406, %407 : vector<2x16xf32>
      %409 = arith.mulf %398, %333 : vector<2x16xf32>
      %410 = arith.mulf %390, %400 : vector<2x16xf32>
      %411 = arith.addf %409, %410 : vector<2x16xf32>
      %412 = math.tanh %411 : vector<2x16xf32>
      %413 = arith.mulf %408, %412 : vector<2x16xf32>
      %414 = vector.broadcast %334 : i32 to vector<2x1xi32>
      %415 = arith.cmpi sgt, %0, %414 : vector<2x1xi32>
      %416 = vector.broadcast %335 : i32 to vector<2x1xi32>
      %417 = arith.cmpi sgt, %0, %416 : vector<2x1xi32>
      %cst_157 = arith.constant 0.000000e+00 : f32
      %418 = vector.shape_cast %415 : vector<2x1xi1> to vector<2x1xi1>
      %419 = vector.broadcast %418 : vector<2x1xi1> to vector<2x16xi1>
      %420 = vector.broadcast %cst_157 : f32 to vector<2x16xf32>
      %421 = arith.select %419, %382, %420 : vector<2x16xi1>, vector<2x16xf32>
      %422 = arith.truncf %421 : vector<2x16xf32> to vector<2x16xbf16>
      %423 = arith.index_cast %334 : i32 to index
      %c0_158 = arith.constant 0 : index
      %c0_159 = arith.constant 0 : index
      %424 = vector.load %arg16[%423, %c0_158, %c0_159] : memref<8x2x16xbf16, #tpu.memory_space<vmem>>, vector<1x2x16xbf16>
      %425 = vector.shape_cast %424 : vector<1x2x16xbf16> to vector<2x16xbf16>
      %426 = vector.shape_cast %422 : vector<2x16xbf16> to vector<1x2x16xbf16>
      tpu.vector_store %arg16[%423, %c0_158, %c0_159], %426 {strides = array<i32>} : memref<8x2x16xbf16, #tpu.memory_space<vmem>>, vector<1x2x16xbf16>,
      %cst_160 = arith.constant 0.000000e+00 : f32
      %427 = vector.shape_cast %417 : vector<2x1xi1> to vector<2x1xi1>
      %428 = vector.broadcast %427 : vector<2x1xi1> to vector<2x16xi1>
      %429 = vector.broadcast %cst_160 : f32 to vector<2x16xf32>
      %430 = arith.select %428, %413, %429 : vector<2x16xi1>, vector<2x16xf32>
      %431 = arith.truncf %430 : vector<2x16xf32> to vector<2x16xbf16>
      %432 = arith.index_cast %335 : i32 to index
      %c0_161 = arith.constant 0 : index
      %c0_162 = arith.constant 0 : index
      %433 = vector.load %arg17[%432, %c0_161, %c0_162] : memref<8x2x16xbf16, #tpu.memory_space<vmem>>, vector<1x2x16xbf16>
      %434 = vector.shape_cast %433 : vector<1x2x16xbf16> to vector<2x16xbf16>
      %435 = vector.shape_cast %431 : vector<2x16xbf16> to vector<1x2x16xbf16>
      tpu.vector_store %arg17[%432, %c0_161, %c0_162], %435 {strides = array<i32>} : memref<8x2x16xbf16, #tpu.memory_space<vmem>>, vector<1x2x16xbf16>,
      %436 = vector.shape_cast %415 : vector<2x1xi1> to vector<2x1xi1>
      %437 = vector.broadcast %436 : vector<2x1xi1> to vector<2x16xi1>
      %438 = arith.select %437, %382, %324 : vector<2x16xi1>, vector<2x16xf32>
      %439 = vector.shape_cast %415 : vector<2x1xi1> to vector<2x1xi1>
      %440 = vector.broadcast %439 : vector<2x1xi1> to vector<2x16xi1>
      %441 = arith.select %440, %380, %327 : vector<2x16xi1>, vector<2x16xf32>
      %442 = vector.shape_cast %417 : vector<2x1xi1> to vector<2x1xi1>
      %443 = vector.broadcast %442 : vector<2x1xi1> to vector<2x16xi1>
      %444 = arith.select %443, %413, %330 : vector<2x16xi1>, vector<2x16xf32>
      %445 = vector.shape_cast %417 : vector<2x1xi1> to vector<2x1xi1>
      %446 = vector.broadcast %445 : vector<2x1xi1> to vector<2x16xi1>
      %447 = arith.select %446, %411, %333 : vector<2x16xi1>, vector<2x16xf32>
      %c3_i32 = arith.constant 3 : i32
      %448 = arith.addi %105, %c3_i32 : i32
      %c7_i32_163 = arith.constant 7 : i32
      %449 = arith.subi %c7_i32_163, %448 : i32
      %450 = tpu.concatenate %438, %444 in 1 : vector<2x16xf32>, vector<2x16xf32> -> vector<2x32xf32>
      %451 = arith.truncf %450 : vector<2x32xf32> to vector<2x32xbf16>
      %c0_164 = arith.constant 0 : index
      %c0_165 = arith.constant 0 : index
      %452 = vector.load %arg5[%c0_164, %c0_165] : memref<32x128xbf16, #tpu.memory_space<vmem>>, vector<32x128xbf16>
      %cst_166 = arith.constant dense<0.000000e+00> : vector<2x128xf32>
      %453 = tpu.matmul %451, %452, %cst_166 {dimension_numbers = #tpu.dot_dimension_numbers<[1], [0], [0], [1], [0, 0, 1, 1], [], []>} : vector<2x32xbf16>, vector<32x128xbf16>, vector<2x128xf32> -> vector<2x128xf32>
      %454 = arith.index_cast %448 : i32 to index
      %c0_167 = arith.constant 0 : index
      %c0_168 = arith.constant 0 : index
      %455 = vector.load %arg14[%454, %c0_167, %c0_168] : memref<8x2x64xbf16, #tpu.memory_space<vmem>>, vector<1x2x64xbf16>
      %456 = vector.shape_cast %455 : vector<1x2x64xbf16> to vector<2x64xbf16>
      %457 = arith.extf %456 : vector<2x64xbf16> to vector<2x64xf32>
      %458 = vector.extract_strided_slice %453 {offsets = [0, 0], sizes = [2, 64], strides = [1, 1]} : vector<2x128xf32> to vector<2x64xf32>
      %459 = arith.addf %457, %458 : vector<2x64xf32>
      %460 = arith.index_cast %449 : i32 to index
      %c0_169 = arith.constant 0 : index
      %c0_170 = arith.constant 0 : index
      %461 = vector.load %arg15[%460, %c0_169, %c0_170] : memref<8x2x64xbf16, #tpu.memory_space<vmem>>, vector<1x2x64xbf16>
      %462 = vector.shape_cast %461 : vector<1x2x64xbf16> to vector<2x64xbf16>
      %463 = arith.extf %462 : vector<2x64xbf16> to vector<2x64xf32>
      %464 = vector.extract_strided_slice %453 {offsets = [0, 64], sizes = [2, 64], strides = [1, 1]} : vector<2x128xf32> to vector<2x64xf32>
      %465 = arith.addf %463, %464 : vector<2x64xf32>
      %466 = vector.extract_strided_slice %459 {offsets = [0, 0], sizes = [2, 16], strides = [1, 1]} : vector<2x64xf32> to vector<2x16xf32>
      %cst_171 = arith.constant 5.000000e-01 : f32
      %467 = vector.broadcast %cst_171 : f32 to vector<2x16xf32>
      %468 = arith.mulf %467, %466 : vector<2x16xf32>
      %469 = math.tanh %468 : vector<2x16xf32>
      %cst_172 = arith.constant 5.000000e-01 : f32
      %470 = vector.broadcast %cst_172 : f32 to vector<2x16xf32>
      %471 = arith.mulf %470, %469 : vector<2x16xf32>
      %cst_173 = arith.constant 5.000000e-01 : f32
      %472 = vector.broadcast %cst_173 : f32 to vector<2x16xf32>
      %473 = arith.addf %471, %472 : vector<2x16xf32>
      %474 = vector.extract_strided_slice %459 {offsets = [0, 16], sizes = [2, 16], strides = [1, 1]} : vector<2x64xf32> to vector<2x16xf32>
      %cst_174 = arith.constant 5.000000e-01 : f32
      %475 = vector.broadcast %cst_174 : f32 to vector<2x16xf32>
      %476 = arith.mulf %475, %474 : vector<2x16xf32>
      %477 = math.tanh %476 : vector<2x16xf32>
      %cst_175 = arith.constant 5.000000e-01 : f32
      %478 = vector.broadcast %cst_175 : f32 to vector<2x16xf32>
      %479 = arith.mulf %478, %477 : vector<2x16xf32>
      %cst_176 = arith.constant 5.000000e-01 : f32
      %480 = vector.broadcast %cst_176 : f32 to vector<2x16xf32>
      %481 = arith.addf %479, %480 : vector<2x16xf32>
      %482 = vector.extract_strided_slice %459 {offsets = [0, 32], sizes = [2, 16], strides = [1, 1]} : vector<2x64xf32> to vector<2x16xf32>
      %483 = math.tanh %482 : vector<2x16xf32>
      %484 = vector.extract_strided_slice %459 {offsets = [0, 48], sizes = [2, 16], strides = [1, 1]} : vector<2x64xf32> to vector<2x16xf32>
      %cst_177 = arith.constant 5.000000e-01 : f32
      %485 = vector.broadcast %cst_177 : f32 to vector<2x16xf32>
      %486 = arith.mulf %485, %484 : vector<2x16xf32>
      %487 = math.tanh %486 : vector<2x16xf32>
      %cst_178 = arith.constant 5.000000e-01 : f32
      %488 = vector.broadcast %cst_178 : f32 to vector<2x16xf32>
      %489 = arith.mulf %488, %487 : vector<2x16xf32>
      %cst_179 = arith.constant 5.000000e-01 : f32
      %490 = vector.broadcast %cst_179 : f32 to vector<2x16xf32>
      %491 = arith.addf %489, %490 : vector<2x16xf32>
      %492 = arith.mulf %481, %441 : vector<2x16xf32>
      %493 = arith.mulf %473, %483 : vector<2x16xf32>
      %494 = arith.addf %492, %493 : vector<2x16xf32>
      %495 = math.tanh %494 : vector<2x16xf32>
      %496 = arith.mulf %491, %495 : vector<2x16xf32>
      %497 = vector.extract_strided_slice %465 {offsets = [0, 0], sizes = [2, 16], strides = [1, 1]} : vector<2x64xf32> to vector<2x16xf32>
      %cst_180 = arith.constant 5.000000e-01 : f32
      %498 = vector.broadcast %cst_180 : f32 to vector<2x16xf32>
      %499 = arith.mulf %498, %497 : vector<2x16xf32>
      %500 = math.tanh %499 : vector<2x16xf32>
      %cst_181 = arith.constant 5.000000e-01 : f32
      %501 = vector.broadcast %cst_181 : f32 to vector<2x16xf32>
      %502 = arith.mulf %501, %500 : vector<2x16xf32>
      %cst_182 = arith.constant 5.000000e-01 : f32
      %503 = vector.broadcast %cst_182 : f32 to vector<2x16xf32>
      %504 = arith.addf %502, %503 : vector<2x16xf32>
      %505 = vector.extract_strided_slice %465 {offsets = [0, 16], sizes = [2, 16], strides = [1, 1]} : vector<2x64xf32> to vector<2x16xf32>
      %cst_183 = arith.constant 5.000000e-01 : f32
      %506 = vector.broadcast %cst_183 : f32 to vector<2x16xf32>
      %507 = arith.mulf %506, %505 : vector<2x16xf32>
      %508 = math.tanh %507 : vector<2x16xf32>
      %cst_184 = arith.constant 5.000000e-01 : f32
      %509 = vector.broadcast %cst_184 : f32 to vector<2x16xf32>
      %510 = arith.mulf %509, %508 : vector<2x16xf32>
      %cst_185 = arith.constant 5.000000e-01 : f32
      %511 = vector.broadcast %cst_185 : f32 to vector<2x16xf32>
      %512 = arith.addf %510, %511 : vector<2x16xf32>
      %513 = vector.extract_strided_slice %465 {offsets = [0, 32], sizes = [2, 16], strides = [1, 1]} : vector<2x64xf32> to vector<2x16xf32>
      %514 = math.tanh %513 : vector<2x16xf32>
      %515 = vector.extract_strided_slice %465 {offsets = [0, 48], sizes = [2, 16], strides = [1, 1]} : vector<2x64xf32> to vector<2x16xf32>
      %cst_186 = arith.constant 5.000000e-01 : f32
      %516 = vector.broadcast %cst_186 : f32 to vector<2x16xf32>
      %517 = arith.mulf %516, %515 : vector<2x16xf32>
      %518 = math.tanh %517 : vector<2x16xf32>
      %cst_187 = arith.constant 5.000000e-01 : f32
      %519 = vector.broadcast %cst_187 : f32 to vector<2x16xf32>
      %520 = arith.mulf %519, %518 : vector<2x16xf32>
      %cst_188 = arith.constant 5.000000e-01 : f32
      %521 = vector.broadcast %cst_188 : f32 to vector<2x16xf32>
      %522 = arith.addf %520, %521 : vector<2x16xf32>
      %523 = arith.mulf %512, %447 : vector<2x16xf32>
      %524 = arith.mulf %504, %514 : vector<2x16xf32>
      %525 = arith.addf %523, %524 : vector<2x16xf32>
      %526 = math.tanh %525 : vector<2x16xf32>
      %527 = arith.mulf %522, %526 : vector<2x16xf32>
      %528 = vector.broadcast %448 : i32 to vector<2x1xi32>
      %529 = arith.cmpi sgt, %0, %528 : vector<2x1xi32>
      %530 = vector.broadcast %449 : i32 to vector<2x1xi32>
      %531 = arith.cmpi sgt, %0, %530 : vector<2x1xi32>
      %cst_189 = arith.constant 0.000000e+00 : f32
      %532 = vector.shape_cast %529 : vector<2x1xi1> to vector<2x1xi1>
      %533 = vector.broadcast %532 : vector<2x1xi1> to vector<2x16xi1>
      %534 = vector.broadcast %cst_189 : f32 to vector<2x16xf32>
      %535 = arith.select %533, %496, %534 : vector<2x16xi1>, vector<2x16xf32>
      %536 = arith.truncf %535 : vector<2x16xf32> to vector<2x16xbf16>
      %537 = arith.index_cast %448 : i32 to index
      %c0_190 = arith.constant 0 : index
      %c0_191 = arith.constant 0 : index
      %538 = vector.load %arg16[%537, %c0_190, %c0_191] : memref<8x2x16xbf16, #tpu.memory_space<vmem>>, vector<1x2x16xbf16>
      %539 = vector.shape_cast %538 : vector<1x2x16xbf16> to vector<2x16xbf16>
      %540 = vector.shape_cast %536 : vector<2x16xbf16> to vector<1x2x16xbf16>
      tpu.vector_store %arg16[%537, %c0_190, %c0_191], %540 {strides = array<i32>} : memref<8x2x16xbf16, #tpu.memory_space<vmem>>, vector<1x2x16xbf16>,
      %cst_192 = arith.constant 0.000000e+00 : f32
      %541 = vector.shape_cast %531 : vector<2x1xi1> to vector<2x1xi1>
      %542 = vector.broadcast %541 : vector<2x1xi1> to vector<2x16xi1>
      %543 = vector.broadcast %cst_192 : f32 to vector<2x16xf32>
      %544 = arith.select %542, %527, %543 : vector<2x16xi1>, vector<2x16xf32>
      %545 = arith.truncf %544 : vector<2x16xf32> to vector<2x16xbf16>
      %546 = arith.index_cast %449 : i32 to index
      %c0_193 = arith.constant 0 : index
      %c0_194 = arith.constant 0 : index
      %547 = vector.load %arg17[%546, %c0_193, %c0_194] : memref<8x2x16xbf16, #tpu.memory_space<vmem>>, vector<1x2x16xbf16>
      %548 = vector.shape_cast %547 : vector<1x2x16xbf16> to vector<2x16xbf16>
      %549 = vector.shape_cast %545 : vector<2x16xbf16> to vector<1x2x16xbf16>
      tpu.vector_store %arg17[%546, %c0_193, %c0_194], %549 {strides = array<i32>} : memref<8x2x16xbf16, #tpu.memory_space<vmem>>, vector<1x2x16xbf16>,
      %550 = vector.shape_cast %529 : vector<2x1xi1> to vector<2x1xi1>
      %551 = vector.broadcast %550 : vector<2x1xi1> to vector<2x16xi1>
      %552 = arith.select %551, %496, %438 : vector<2x16xi1>, vector<2x16xf32>
      %553 = vector.shape_cast %529 : vector<2x1xi1> to vector<2x1xi1>
      %554 = vector.broadcast %553 : vector<2x1xi1> to vector<2x16xi1>
      %555 = arith.select %554, %494, %441 : vector<2x16xi1>, vector<2x16xf32>
      %556 = vector.shape_cast %531 : vector<2x1xi1> to vector<2x1xi1>
      %557 = vector.broadcast %556 : vector<2x1xi1> to vector<2x16xi1>
      %558 = arith.select %557, %527, %444 : vector<2x16xi1>, vector<2x16xf32>
      %559 = vector.shape_cast %531 : vector<2x1xi1> to vector<2x1xi1>
      %560 = vector.broadcast %559 : vector<2x1xi1> to vector<2x16xi1>
      %561 = arith.select %560, %525, %447 : vector<2x16xi1>, vector<2x16xf32>
      scf.yield %552, %555, %558, %561 : vector<2x16xf32>, vector<2x16xf32>, vector<2x16xf32>, vector<2x16xf32>
    }
    %c2_i32_14 = arith.constant 2 : i32
    %c0_15 = arith.constant 0 : index
    %c0_16 = arith.constant 0 : index
    %c0_17 = arith.constant 0 : index
    %23 = vector.load %arg16[%c0_15, %c0_16, %c0_17] : memref<8x2x16xbf16, #tpu.memory_space<vmem>>, vector<8x2x16xbf16>
    %24 = vector.shape_cast %23 : vector<8x2x16xbf16> to vector<16x16xbf16>
    %c0_18 = arith.constant 0 : index
    %c0_19 = arith.constant 0 : index
    %c0_20 = arith.constant 0 : index
    %25 = vector.load %arg17[%c0_18, %c0_19, %c0_20] : memref<8x2x16xbf16, #tpu.memory_space<vmem>>, vector<8x2x16xbf16>
    %26 = vector.shape_cast %25 : vector<8x2x16xbf16> to vector<16x16xbf16>
    %c0_21 = arith.constant 0 : index
    %c0_22 = arith.constant 0 : index
    %27 = vector.load %arg6[%c0_21, %c0_22] : memref<16x18xbf16, #tpu.memory_space<vmem>>, vector<16x18xbf16>
    %cst_23 = arith.constant dense<0.000000e+00> : vector<16x18xf32>
    %28 = tpu.matmul %24, %27, %cst_23 {dimension_numbers = #tpu.dot_dimension_numbers<[1], [0], [0], [1], [0, 0, 1, 1], [], []>} : vector<16x16xbf16>, vector<16x18xbf16>, vector<16x18xf32> -> vector<16x18xf32>
    %c0_24 = arith.constant 0 : index
    %c0_25 = arith.constant 0 : index
    %29 = vector.load %arg7[%c0_24, %c0_25] : memref<16x18xbf16, #tpu.memory_space<vmem>>, vector<16x18xbf16>
    %cst_26 = arith.constant dense<0.000000e+00> : vector<16x18xf32>
    %30 = tpu.matmul %26, %29, %cst_26 {dimension_numbers = #tpu.dot_dimension_numbers<[1], [0], [0], [1], [0, 0, 1, 1], [], []>} : vector<16x16xbf16>, vector<16x18xbf16>, vector<16x18xf32> -> vector<16x18xf32>
    %31 = arith.addf %28, %30 : vector<16x18xf32>
    %32 = vector.extract_strided_slice %31 {offsets = [0, 0], sizes = [16, 16], strides = [1, 1]} : vector<16x18xf32> to vector<16x16xf32>
    %c0_27 = arith.constant 0 : index
    %c0_28 = arith.constant 0 : index
    %33 = vector.load %arg8[%c0_27, %c0_28] : memref<1x16xf32, #tpu.memory_space<vmem>>, vector<1x16xf32>
    %34 = vector.broadcast %33 : vector<1x16xf32> to vector<16x16xf32>
    %35 = arith.addf %32, %34 : vector<16x16xf32>
    %36 = math.tanh %35 : vector<16x16xf32>
    %37 = vector.extract_strided_slice %31 {offsets = [0, 16], sizes = [16, 2], strides = [1, 1]} : vector<16x18xf32> to vector<16x2xf32>
    %38 = vector.shape_cast %36 : vector<16x16xf32> to vector<8x2x16xf32>
    %c0_29 = arith.constant 0 : index
    %c0_30 = arith.constant 0 : index
    %c0_31 = arith.constant 0 : index
    %39 = vector.load %arg9[%c0_29, %c0_30, %c0_31] : memref<1x1x16xf32, #tpu.memory_space<vmem>>, vector<1x1x16xf32>
    %40 = vector.broadcast %39 : vector<1x1x16xf32> to vector<8x2x16xf32>
    %41 = arith.mulf %38, %40 : vector<8x2x16xf32>
    %cst_32 = arith.constant dense<0.000000e+00> : vector<8x2xf32>
    %42 = vector.multi_reduction <add>, %41, %cst_32 [2] : vector<8x2x16xf32> to vector<8x2xf32>
    %43 = vector.shape_cast %42 : vector<8x2xf32> to vector<8x2x1xf32>
    %44 = tpu.iota {dimensions = array<i32: 0>} : vector<8x2x1xi32>
    %45 = vector.shape_cast %0 : vector<2x1xi32> to vector<1x2x1xi32>
    %46 = vector.broadcast %45 : vector<1x2x1xi32> to vector<8x2x1xi32>
    %47 = arith.cmpi slt, %44, %46 : vector<8x2x1xi32>
    %cst_33 = arith.constant -1.000000e+30 : f32
    %48 = vector.broadcast %cst_33 : f32 to vector<8x2x1xf32>
    %49 = arith.select %47, %43, %48 : vector<8x2x1xi1>, vector<8x2x1xf32>
    %cst_34 = arith.constant dense<0xFF800000> : vector<2x1xf32>
    %50 = vector.multi_reduction <maximumf>, %49, %cst_34 [0] : vector<8x2x1xf32> to vector<2x1xf32>
    %51 = vector.shape_cast %50 : vector<2x1xf32> to vector<1x2x1xf32>
    %52 = vector.broadcast %51 : vector<1x2x1xf32> to vector<8x2x1xf32>
    %53 = arith.subf %49, %52 : vector<8x2x1xf32>
    %54 = math.exp %53 : vector<8x2x1xf32>
    %cst_35 = arith.constant dense<0.000000e+00> : vector<2x1xf32>
    %55 = vector.multi_reduction <add>, %54, %cst_35 [0] : vector<8x2x1xf32> to vector<2x1xf32>
    %56 = vector.shape_cast %55 : vector<2x1xf32> to vector<1x2x1xf32>
    %57 = tpu.reciprocal %56 {approx = true} : vector<1x2x1xf32> -> vector<1x2x1xf32>
    %58 = vector.broadcast %57 : vector<1x2x1xf32> to vector<8x2x1xf32>
    %59 = arith.mulf %54, %58 : vector<8x2x1xf32>
    %c0_36 = arith.constant 0 : index
    %c0_37 = arith.constant 0 : index
    %c0_38 = arith.constant 0 : index
    %60 = vector.load %arg18[%c0_36, %c0_37, %c0_38] : memref<8x2x1xf32, #tpu.memory_space<vmem>>, vector<8x2x1xf32>
    tpu.vector_store %arg18[%c0_36, %c0_37, %c0_38], %59 {strides = array<i32>} : memref<8x2x1xf32, #tpu.memory_space<vmem>>, vector<8x2x1xf32>,
    %cst_39 = arith.constant 0.000000e+00 : f32
    %61 = vector.broadcast %cst_39 : f32 to vector<2x16xf32>
    %c0_i32_40 = arith.constant 0 : i32
    %c8_i32_41 = arith.constant 8 : i32
    %62 = arith.muli %c0_i32_40, %c8_i32_41 : i32
    %63 = tpu.assume_multiple %62, 8 : i32
    %64 = arith.index_cast %63 : i32 to index
    %c0_42 = arith.constant 0 : index
    %c0_43 = arith.constant 0 : index
    %65 = vector.load %arg18[%64, %c0_42, %c0_43] : memref<8x2x1xf32, #tpu.memory_space<vmem>>, vector<8x2x1xf32>
    %66 = arith.index_cast %63 : i32 to index
    %c0_44 = arith.constant 0 : index
    %c0_45 = arith.constant 0 : index
    %67 = vector.load %arg16[%66, %c0_44, %c0_45] : memref<8x2x16xbf16, #tpu.memory_space<vmem>>, vector<8x2x16xbf16>
    %68 = arith.extf %67 : vector<8x2x16xbf16> to vector<8x2x16xf32>
    %69 = arith.index_cast %63 : i32 to index
    %c0_46 = arith.constant 0 : index
    %c0_47 = arith.constant 0 : index
    %70 = vector.load %arg17[%69, %c0_46, %c0_47] : memref<8x2x16xbf16, #tpu.memory_space<vmem>>, vector<8x2x16xbf16>
    %71 = arith.extf %70 : vector<8x2x16xbf16> to vector<8x2x16xf32>
    %72 = vector.broadcast %65 : vector<8x2x1xf32> to vector<8x2x16xf32>
    %73 = arith.mulf %72, %68 : vector<8x2x16xf32>
    %cst_48 = arith.constant dense<0.000000e+00> : vector<2x16xf32>
    %74 = vector.multi_reduction <add>, %73, %cst_48 [0] : vector<8x2x16xf32> to vector<2x16xf32>
    %75 = arith.addf %61, %74 : vector<2x16xf32>
    %76 = vector.broadcast %65 : vector<8x2x1xf32> to vector<8x2x16xf32>
    %77 = arith.mulf %76, %71 : vector<8x2x16xf32>
    %cst_49 = arith.constant dense<0.000000e+00> : vector<2x16xf32>
    %78 = vector.multi_reduction <add>, %77, %cst_49 [0] : vector<8x2x16xf32> to vector<2x16xf32>
    %79 = arith.addf %61, %78 : vector<2x16xf32>
    %c1_i32_50 = arith.constant 1 : i32
    %80 = arith.truncf %75 : vector<2x16xf32> to vector<2x16xbf16>
    %c0_51 = arith.constant 0 : index
    %c0_52 = arith.constant 0 : index
    %81 = vector.load %arg10[%c0_51, %c0_52] : memref<16x2xbf16, #tpu.memory_space<vmem>>, vector<16x2xbf16>
    %cst_53 = arith.constant dense<0.000000e+00> : vector<2x2xf32>
    %82 = tpu.matmul %80, %81, %cst_53 {dimension_numbers = #tpu.dot_dimension_numbers<[1], [0], [0], [1], [0, 0, 1, 1], [], []>} : vector<2x16xbf16>, vector<16x2xbf16>, vector<2x2xf32> -> vector<2x2xf32>
    %83 = arith.truncf %79 : vector<2x16xf32> to vector<2x16xbf16>
    %c0_54 = arith.constant 0 : index
    %c0_55 = arith.constant 0 : index
    %84 = vector.load %arg11[%c0_54, %c0_55] : memref<16x2xbf16, #tpu.memory_space<vmem>>, vector<16x2xbf16>
    %cst_56 = arith.constant dense<0.000000e+00> : vector<2x2xf32>
    %85 = tpu.matmul %83, %84, %cst_56 {dimension_numbers = #tpu.dot_dimension_numbers<[1], [0], [0], [1], [0, 0, 1, 1], [], []>} : vector<2x16xbf16>, vector<16x2xbf16>, vector<2x2xf32> -> vector<2x2xf32>
    %86 = arith.addf %82, %85 : vector<2x2xf32>
    %87 = vector.shape_cast %37 : vector<16x2xf32> to vector<8x2x2xf32>
    %88 = vector.shape_cast %86 : vector<2x2xf32> to vector<1x2x2xf32>
    %89 = vector.broadcast %88 : vector<1x2x2xf32> to vector<8x2x2xf32>
    %90 = arith.addf %87, %89 : vector<8x2x2xf32>
    %c0_57 = arith.constant 0 : index
    %c0_58 = arith.constant 0 : index
    %c0_59 = arith.constant 0 : index
    %91 = vector.load %arg12[%c0_57, %c0_58, %c0_59] : memref<1x1x2xf32, #tpu.memory_space<vmem>>, vector<1x1x2xf32>
    %92 = vector.broadcast %91 : vector<1x1x2xf32> to vector<8x2x2xf32>
    %93 = arith.addf %90, %92 : vector<8x2x2xf32>
    %cst_60 = arith.constant dense<0xFF800000> : vector<8x2xf32>
    %94 = vector.multi_reduction <maximumf>, %93, %cst_60 [2] : vector<8x2x2xf32> to vector<8x2xf32>
    %95 = vector.shape_cast %94 : vector<8x2xf32> to vector<8x2x1xf32>
    %96 = vector.broadcast %95 : vector<8x2x1xf32> to vector<8x2x2xf32>
    %97 = arith.subf %93, %96 : vector<8x2x2xf32>
    %98 = math.exp %97 : vector<8x2x2xf32>
    %cst_61 = arith.constant dense<0.000000e+00> : vector<8x2xf32>
    %99 = vector.multi_reduction <add>, %98, %cst_61 [2] : vector<8x2x2xf32> to vector<8x2xf32>
    %100 = vector.shape_cast %99 : vector<8x2xf32> to vector<8x2x1xf32>
    %101 = math.log %100 : vector<8x2x1xf32>
    %102 = vector.broadcast %101 : vector<8x2x1xf32> to vector<8x2x2xf32>
    %103 = arith.subf %97, %102 : vector<8x2x2xf32>
    %c0_62 = arith.constant 0 : index
    %c0_63 = arith.constant 0 : index
    %c0_64 = arith.constant 0 : index
    %104 = vector.load %arg13[%c0_62, %c0_63, %c0_64] : memref<8x2x2xf32, #tpu.memory_space<vmem>>, vector<8x2x2xf32>
    tpu.vector_store %arg13[%c0_62, %c0_63, %c0_64], %103 {strides = array<i32>} : memref<8x2x2xf32, #tpu.memory_space<vmem>>, vector<8x2x2xf32>,
    return
  }
  func.func @transform_0(%arg0: i32) -> (i32, i32, i32) {
    %c0_i32 = arith.constant 0 : i32
    %c0_i32_0 = arith.constant 0 : i32
    %c0_i32_1 = arith.constant 0 : i32
    return %c0_i32, %arg0, %c0_i32_0 : i32, i32, i32
  }
  func.func @transform_1(%arg0: i32) -> (i32, i32) {
    %c0_i32 = arith.constant 0 : i32
    %c0_i32_0 = arith.constant 0 : i32
    return %arg0, %c0_i32 : i32, i32
  }
  func.func @transform_2(%arg0: i32) -> (i32, i32) {
    %c0_i32 = arith.constant 0 : i32
    %c0_i32_0 = arith.constant 0 : i32
    %c0_i32_1 = arith.constant 0 : i32
    return %c0_i32, %c0_i32_0 : i32, i32
  }
  func.func @transform_3(%arg0: i32) -> (i32, i32) {
    %c0_i32 = arith.constant 0 : i32
    %c0_i32_0 = arith.constant 0 : i32
    %c0_i32_1 = arith.constant 0 : i32
    return %c0_i32, %c0_i32_0 : i32, i32
  }
  func.func @transform_4(%arg0: i32) -> (i32, i32) {
    %c0_i32 = arith.constant 0 : i32
    %c0_i32_0 = arith.constant 0 : i32
    %c0_i32_1 = arith.constant 0 : i32
    return %c0_i32, %c0_i32_0 : i32, i32
  }
  func.func @transform_5(%arg0: i32) -> (i32, i32) {
    %c0_i32 = arith.constant 0 : i32
    %c0_i32_0 = arith.constant 0 : i32
    %c0_i32_1 = arith.constant 0 : i32
    return %c0_i32, %c0_i32_0 : i32, i32
  }
  func.func @transform_6(%arg0: i32) -> (i32, i32) {
    %c0_i32 = arith.constant 0 : i32
    %c0_i32_0 = arith.constant 0 : i32
    %c0_i32_1 = arith.constant 0 : i32
    return %c0_i32, %c0_i32_0 : i32, i32
  }
  func.func @transform_7(%arg0: i32) -> (i32, i32) {
    %c0_i32 = arith.constant 0 : i32
    %c0_i32_0 = arith.constant 0 : i32
    %c0_i32_1 = arith.constant 0 : i32
    return %c0_i32, %c0_i32_0 : i32, i32
  }
  func.func @transform_8(%arg0: i32) -> (i32, i32, i32) {
    %c0_i32 = arith.constant 0 : i32
    %c0_i32_0 = arith.constant 0 : i32
    %c0_i32_1 = arith.constant 0 : i32
    %c0_i32_2 = arith.constant 0 : i32
    return %c0_i32, %c0_i32_0, %c0_i32_1 : i32, i32, i32
  }
  func.func @transform_9(%arg0: i32) -> (i32, i32) {
    %c0_i32 = arith.constant 0 : i32
    %c0_i32_0 = arith.constant 0 : i32
    %c0_i32_1 = arith.constant 0 : i32
    return %c0_i32, %c0_i32_0 : i32, i32
  }
  func.func @transform_10(%arg0: i32) -> (i32, i32) {
    %c0_i32 = arith.constant 0 : i32
    %c0_i32_0 = arith.constant 0 : i32
    %c0_i32_1 = arith.constant 0 : i32
    return %c0_i32, %c0_i32_0 : i32, i32
  }
  func.func @transform_11(%arg0: i32) -> (i32, i32, i32) {
    %c0_i32 = arith.constant 0 : i32
    %c0_i32_0 = arith.constant 0 : i32
    %c0_i32_1 = arith.constant 0 : i32
    %c0_i32_2 = arith.constant 0 : i32
    return %c0_i32, %c0_i32_0, %c0_i32_1 : i32, i32, i32
  }
  func.func @transform_12(%arg0: i32) -> (i32, i32, i32) {
    %c0_i32 = arith.constant 0 : i32
    %c0_i32_0 = arith.constant 0 : i32
    %c0_i32_1 = arith.constant 0 : i32
    return %c0_i32, %arg0, %c0_i32_0 : i32, i32, i32
  }
}

</mosaic_0001>

<llo_original>
// kernel: _metaphor_forward.1
$region0: #{_metaphor_forward.1}
  #allocation0 [shape = 'u32[]', space=smem, size = 0x4, offset = 0x4, fixed_abs, tag = 'smem constant byte address 0x4 - core index']
  #allocation1 [shape = 'u32[144,128]{1,0:T(1,128)}', space=vmem, size = 0x12000, scoped, tag = 'internal scratch']
  #allocation2 [shape = 'bf16[8,2,64]{2,1,0:T(2,128)(2,1)}', space=vmem, size = 0x1000, scoped, tag = 'scratch operand']
  #allocation3 [shape = 'bf16[8,2,64]{2,1,0:T(2,128)(2,1)}', space=vmem, size = 0x1000, scoped, tag = 'scratch operand']
  #allocation4 [shape = 'bf16[8,2,16]{2,1,0:T(2,128)(2,1)}', space=vmem, size = 0x1000, scoped, tag = 'scratch operand']
  #allocation5 [shape = 'bf16[8,2,16]{2,1,0:T(2,128)(2,1)}', space=vmem, size = 0x1000, scoped, tag = 'scratch operand']
  #allocation6 [shape = 'f32[8,2,1]{2,1,0:T(2,128)}', space=vmem, size = 0x2000, scoped, tag = 'scratch operand']
  %s0 = inlined_call_operand.vmem [shape: bf16[8,2,128], index: 0, kind: input, shape index: {}]
  %s1 = inlined_call_operand.vmem [shape: s32[2,1], index: 1, kind: input, shape index: {}]
  %s2 = inlined_call_operand.vmem [shape: bf16[128,128], index: 2, kind: input, shape index: {}]
  %s3 = inlined_call_operand.vmem [shape: f32[1,128], index: 3, kind: input, shape index: {}]
  %s4 = inlined_call_operand.vmem [shape: bf16[32,128], index: 4, kind: input, shape index: {}]
  %s5 = inlined_call_operand.hbm [shape: bf16[16,18], index: 5, kind: input, shape index: {}]
  %s6 = inlined_call_operand.hbm [shape: bf16[16,18], index: 6, kind: input, shape index: {}]
  %s7 = inlined_call_operand.hbm [shape: f32[1,16], index: 7, kind: input, shape index: {}]
  %s8 = inlined_call_operand.hbm [shape: f32[1,1,16], index: 8, kind: input, shape index: {}]
  %s9 = inlined_call_operand.vmem [shape: bf16[16,2], index: 9, kind: input, shape index: {}]
  %s10 = inlined_call_operand.vmem [shape: bf16[16,2], index: 10, kind: input, shape index: {}]
  %s11 = inlined_call_operand.hbm [shape: f32[1,1,2], index: 11, kind: input, shape index: {}]
  %s12 = inlined_call_operand.vmem [shape: f32[8,2,2], index: 12, kind: output, shape index: {}]
  %s13 = sld [smem:[#allocation0]]
  $region85: #{_metaphor_forward.1} parent=0
    _
  %s15 = ssub.s32 1, %s13
  %s16 = scalar_select 0, %s15, %s13
  $region1: #{_metaphor_forward.1} parent=0
    #allocation7 [shape = 'u8[4096]{0}', space=vmem, size = 0x1000, scoped, tag = 'input window, operand 5, single buffered']
    #allocation8 [shape = 's32[1]{0}', space=sflag, size = 0x4, scoped, tag = 'scoped memory for _metaphor_forward.1']
    #allocation9 [shape = 'u8[4096]{0}', space=vmem, size = 0x1000, scoped, tag = 'input window, operand 6, single buffered']
    #allocation10 [shape = 's32[1]{0}', space=sflag, size = 0x4, scoped, tag = 'scoped memory for _metaphor_forward.1']
    #allocation11 [shape = 'u8[512]{0}', space=vmem, size = 0x400, scoped, tag = 'input window, operand 7, single buffered']
    #allocation12 [shape = 'u8[512]{0}', space=vmem, size = 0x400, scoped, tag = 'input window, operand 8, single buffered']
    #allocation13 [shape = 's32[1]{0}', space=sflag, size = 0x4, scoped, tag = 'scoped memory for _metaphor_forward.1']
    #allocation14 [shape = 'u8[512]{0}', space=vmem, size = 0x400, scoped, tag = 'input window, operand 11, single buffered']
    %17 = vsyncpa [#allocation8], 0
    %18 = vsyncpa [#allocation10], 0
    %19 = vsyncpa [#allocation13], 0
    // Predicated region
    $region2: #{_metaphor_forward.1} parent=1 // pred_check
      _
    $region3: #{_metaphor_forward.1} parent=1 // pred_check_branch
      %21 = sbr.rel (0) target = $region5
    $region4: #{_metaphor_forward.1} parent=1 // pred_region
      _
    $region5: #{_metaphor_forward.1} parent=1 // pred_fallthru
      _
    // Predicated region
    $region6: #{_metaphor_forward.1} parent=1 // pred_check
      _
    $region7: #{_metaphor_forward.1} parent=1 // pred_check_branch
      %23 = sbr.rel (0) target = $region9
    $region8: #{_metaphor_forward.1} parent=1 // pred_region
      _
    $region9: #{_metaphor_forward.1} parent=1 // pred_fallthru
      _
    // Predicated region
    $region10: #{_metaphor_forward.1} parent=1 // pred_check
      _
    $region11: #{_metaphor_forward.1} parent=1 // pred_check_branch
      %25 = sbr.rel (0) target = $region13
    $region12: #{_metaphor_forward.1} parent=1 // pred_region
      _
    $region13: #{_metaphor_forward.1} parent=1 // pred_fallthru
      _
    // Predicated region
    $region14: #{_metaphor_forward.1} parent=1 // pred_check
      _
    $region15: #{_metaphor_forward.1} parent=1 // pred_check_branch
      %27 = sbr.rel (0) target = $region17
    $region16: #{_metaphor_forward.1} parent=1 // pred_region
      _
    $region17: #{_metaphor_forward.1} parent=1 // pred_fallthru
      _
    // Predicated region
    $region18: #{_metaphor_forward.1} parent=1 // pred_check
      _
    $region19: #{_metaphor_forward.1} parent=1 // pred_check_branch
      %29 = sbr.rel (0) target = $region21
    $region20: #{_metaphor_forward.1} parent=1 // pred_region
      _
    $region21: #{_metaphor_forward.1} parent=1 // pred_fallthru
      _
    // Predicated region
    $region22: #{_metaphor_forward.1} parent=1 // pred_check
      _
    $region23: #{_metaphor_forward.1} parent=1 // pred_check_branch
      %31 = sbr.rel (0) target = $region25
    $region24: #{_metaphor_forward.1} parent=1 // pred_region
      %s33 = ssub.s32 128, 128
      %34 = vsyncadd [#allocation8], %s33
      %s35 = sshll.u32 [#allocation7], 4
      %s36 = int_to_ptr.vmem [resolvable:$true] %s35
      %41 = dma.hbm_to_vmem [thread:$0]  %s5, 128, %s36, [#allocation8], 64, 64, 4
    $region25: #{_metaphor_forward.1} parent=1 // pred_fallthru
      _
    // Predicated region
    $region26: #{_metaphor_forward.1} parent=1 // pred_check
      _
    $region27: #{_metaphor_forward.1} parent=1 // pred_check_branch
      %43 = sbr.rel (0) target = $region29
    $region28: #{_metaphor_forward.1} parent=1 // pred_region
      %s45 = ssub.s32 128, 128
      %46 = vsyncadd [#allocation10], %s45
      %s47 = sshll.u32 [#allocation9], 4
      %s48 = int_to_ptr.vmem [resolvable:$true] %s47
      %53 = dma.hbm_to_vmem [thread:$0]  %s6, 128, %s48, [#allocation10], 64, 64, 4
    $region29: #{_metaphor_forward.1} parent=1 // pred_fallthru
      _
    // Predicated region
    $region30: #{_metaphor_forward.1} parent=1 // pred_check
      _
    $region31: #{_metaphor_forward.1} parent=1 // pred_check_branch
      %55 = sbr.rel (0) target = $region33
    $region32: #{_metaphor_forward.1} parent=1 // pred_region
      %s57 = ssub.s32 16, 16
      %58 = vsyncadd [#allocation10], %s57
      %s60 = sshll.u32 [#allocation11], 4
      %s61 = int_to_ptr.vmem [resolvable:$true] %s60
      %63 = dma.hbm_to_vmem [thread:$0]  %s7, 16, %s61, [#allocation10]
    $region33: #{_metaphor_forward.1} parent=1 // pred_fallthru
      _
    // Predicated region
    $region34: #{_metaphor_forward.1} parent=1 // pred_check
      _
    $region35: #{_metaphor_forward.1} parent=1 // pred_check_branch
      %65 = sbr.rel (0) target = $region37
    $region36: #{_metaphor_forward.1} parent=1 // pred_region
      %s67 = ssub.s32 16, 16
      %68 = vsyncadd [#allocation13], %s67
      %s70 = sshll.u32 [#allocation12], 4
      %s71 = int_to_ptr.vmem [resolvable:$true] %s70
      %73 = dma.hbm_to_vmem [thread:$0]  %s8, 16, %s71, [#allocation13]
    $region37: #{_metaphor_forward.1} parent=1 // pred_fallthru
      _
    // Predicated region
    $region38: #{_metaphor_forward.1} parent=1 // pred_check
      _
    $region39: #{_metaphor_forward.1} parent=1 // pred_check_branch
      %75 = sbr.rel (0) target = $region41
    $region40: #{_metaphor_forward.1} parent=1 // pred_region
      _
    $region41: #{_metaphor_forward.1} parent=1 // pred_fallthru
      _
    // Predicated region
    $region42: #{_metaphor_forward.1} parent=1 // pred_check
      _
    $region43: #{_metaphor_forward.1} parent=1 // pred_check_branch
      %77 = sbr.rel (0) target = $region45
    $region44: #{_metaphor_forward.1} parent=1 // pred_region
      _
    $region45: #{_metaphor_forward.1} parent=1 // pred_fallthru
      _
    // Predicated region
    $region46: #{_metaphor_forward.1} parent=1 // pred_check
      _
    $region47: #{_metaphor_forward.1} parent=1 // pred_check_branch
      %79 = sbr.rel (0) target = $region49
    $region48: #{_metaphor_forward.1} parent=1 // pred_region
      %s81 = ssub.s32 16, 16
      %82 = vsyncadd [#allocation13], %s81
      %s84 = sshll.u32 [#allocation14], 4
      %s85 = int_to_ptr.vmem [resolvable:$true] %s84
      %87 = dma.hbm_to_vmem [thread:$0]  %s11, 16, %s85, [#allocation13]
    $region49: #{_metaphor_forward.1} parent=1 // pred_fallthru
      _
    // Predicated region
    $region50: #{_metaphor_forward.1} parent=1 // pred_check
      _
    $region51: #{_metaphor_forward.1} parent=1 // pred_check_branch
      %89 = sbr.rel (0) target = $region53
    $region52: #{_metaphor_forward.1} parent=1 // pred_region
      %90 = dma.done [#allocation8], 128
    $region53: #{_metaphor_forward.1} parent=1 // pred_fallthru
      _
    // Predicated region
    $region54: #{_metaphor_forward.1} parent=1 // pred_check
      _
    $region55: #{_metaphor_forward.1} parent=1 // pred_check_branch
      %92 = sbr.rel (0) target = $region57
    $region56: #{_metaphor_forward.1} parent=1 // pred_region
      %93 = dma.done [#allocation10], 128
    $region57: #{_metaphor_forward.1} parent=1 // pred_fallthru
      _
    // Predicated region
    $region58: #{_metaphor_forward.1} parent=1 // pred_check
      _
    $region59: #{_metaphor_forward.1} parent=1 // pred_check_branch
      %95 = sbr.rel (0) target = $region61
    $region60: #{_metaphor_forward.1} parent=1 // pred_region
      %96 = dma.done [#allocation10], 16
    $region61: #{_metaphor_forward.1} parent=1 // pred_fallthru
      _
    // Predicated region
    $region62: #{_metaphor_forward.1} parent=1 // pred_check
      _
    $region63: #{_metaphor_forward.1} parent=1 // pred_check_branch
      %98 = sbr.rel (0) target = $region65
    $region64: #{_metaphor_forward.1} parent=1 // pred_region
      %99 = dma.done [#allocation13], 16
    $region65: #{_metaphor_forward.1} parent=1 // pred_fallthru
      _
    // Predicated region
    $region66: #{_metaphor_forward.1} parent=1 // pred_check
      _
    $region67: #{_metaphor_forward.1} parent=1 // pred_check_branch
      %101 = sbr.rel (0) target = $region69
    $region68: #{_metaphor_forward.1} parent=1 // pred_region
      %102 = dma.done [#allocation13], 16
    $region69: #{_metaphor_forward.1} parent=1 // pred_fallthru
      _
    %v104 = vld [vmem:[%s1] sm:$0x3]
    %v105 = vld [vmem:[%s2] sm:$0xf]
    %v106 = vld [vmem:[%s2 + $0x4] sm:$0xf]
    %v107 = vld [vmem:[%s2 + $0x8] sm:$0xf]
    %v108 = vld [vmem:[%s2 + $0xc] sm:$0xf]
    %v109 = vld [vmem:[%s2 + $0x10] sm:$0xf]
    %v110 = vld [vmem:[%s2 + $0x14] sm:$0xf]
    %v111 = vld [vmem:[%s2 + $0x18] sm:$0xf]
    %v112 = vld [vmem:[%s2 + $0x1c] sm:$0xf]
    %v113 = vld [vmem:[%s2 + $0x20] sm:$0xf]
    %v114 = vld [vmem:[%s2 + $0x24] sm:$0xf]
    %v115 = vld [vmem:[%s2 + $0x28] sm:$0xf]
    %v116 = vld [vmem:[%s2 + $0x2c] sm:$0xf]
    %v117 = vld [vmem:[%s2 + $0x30] sm:$0xf]
    %v118 = vld [vmem:[%s2 + $0x34] sm:$0xf]
    %v119 = vld [vmem:[%s2 + $0x38] sm:$0xf]
    %v120 = vld [vmem:[%s2 + $0x3c] sm:$0xf]
    %v121 = vld [vmem:[%s3] sm:$0x1]
    %v122 = vld [vmem:[%s0] sm:$0x1]
    %v123 = vld [vmem:[%s0 + $0x1] sm:$0x1]
    %v124 = vld [vmem:[%s0 + $0x2] sm:$0x1]
    %v125 = vld [vmem:[%s0 + $0x3] sm:$0x1]
    %v126 = vld [vmem:[%s0 + $0x4] sm:$0x1]
    %v127 = vld [vmem:[%s0 + $0x5] sm:$0x1]
    %v128 = vld [vmem:[%s0 + $0x6] sm:$0x1]
    %v129 = vld [vmem:[%s0 + $0x7] sm:$0x1]
    %v131 = vlaneseq
    %v132 = vshrl.u32 %v131, 7
    %v133 = vsub.s32 0, %v132
    %v134 = vrot.slane %v121, %v133
    %v144 = vcombine.low %v122, %v123
    %v145 = vcombine.low %v124, %v125
    %v146 = vcombine.low %v126, %v127
    %v147 = vcombine.low %v128, %v129
    %v149 = vunpack.c.l.s4 1966171168
    %v150 = vunpack.c.0.s8 %v149
    %v151 = vlaneseq
    %v152 = vshrl.u32 %v151, 7
    %v153 = vsub.s32 %v150, %v152
    %v154 = vrot.slane %v144, %v153
    %v156 = vunpack.c.l.s4 1966171168
    %v157 = vunpack.c.0.s8 %v156
    %v158 = vlaneseq
    %v159 = vshrl.u32 %v158, 7
    %v160 = vsub.s32 %v157, %v159
    %v161 = vrot.slane %v145, %v160
    %v163 = vunpack.c.l.s4 1966171168
    %v164 = vunpack.c.0.s8 %v163
    %v165 = vlaneseq
    %v166 = vshrl.u32 %v165, 7
    %v167 = vsub.s32 %v164, %v166
    %v168 = vrot.slane %v146, %v167
    %v170 = vunpack.c.l.s4 1966171168
    %v171 = vunpack.c.0.s8 %v170
    %v172 = vlaneseq
    %v173 = vshrl.u32 %v172, 7
    %v174 = vsub.s32 %v171, %v173
    %v175 = vrot.slane %v147, %v174
    %v176 = vcombine.low %v154, %v161
    %v177 = vcombine.low %v168, %v175
    %v179 = vunpack.c.l.s4 1966171168
    %v180 = vunpack.c.0.s8 %v179
    %v181 = vlaneseq
    %v182 = vshrl.u32 %v181, 7
    %v183 = vsub.s32 %v180, %v182
    %v184 = vrot.slane %v176, %v183
    %v186 = vunpack.c.l.s4 1966171168
    %v187 = vunpack.c.0.s8 %v186
    %v188 = vlaneseq
    %v189 = vshrl.u32 %v188, 7
    %v190 = vsub.s32 %v187, %v189
    %v191 = vrot.slane %v177, %v190
    %v192 = vcombine.low %v184, %v191
    %v210 = vunpack.c.l.b16 %v105
    %v211 = vunpack.c.l.b16 %v106
    %v212 = vunpack.c.l.b16 %v107
    %v213 = vunpack.c.l.b16 %v108
    %v214 = vunpack.c.l.b16 %v109
    %v215 = vunpack.c.l.b16 %v110
    %v216 = vunpack.c.l.b16 %v111
    %v217 = vunpack.c.l.b16 %v112
    %v218 = vunpack.c.l.b16 %v113
    %v219 = vunpack.c.l.b16 %v114
    %v220 = vunpack.c.l.b16 %v115
    %v221 = vunpack.c.l.b16 %v116
    %v222 = vunpack.c.l.b16 %v117
    %v223 = vunpack.c.l.b16 %v118
    %v224 = vunpack.c.l.b16 %v119
    %v225 = vunpack.c.l.b16 %v120
    %v226 = vpack.c.b16 %v211, %v210
    %v227 = vpack.c.b16 %v213, %v212
    %v228 = vpack.c.b16 %v215, %v214
    %v229 = vpack.c.b16 %v217, %v216
    %v230 = vpack.c.b16 %v219, %v218
    %v231 = vpack.c.b16 %v221, %v220
    %v232 = vpack.c.b16 %v223, %v222
    %v233 = vpack.c.b16 %v225, %v224
    %242 = vmatprep.subr.bf16.mxu0 0
    %243 = vmatpush1.bf16.msra.mxu0 %v233
    %244 = vmatprep.subr.bf16.mxu0 0
    %245 = vmatpush1.bf16.msra.mxu0 %v232
    %246 = vmatprep.subr.bf16.mxu0 0
    %247 = vmatpush1.bf16.msra.mxu0 %v231
    %248 = vmatprep.subr.bf16.mxu0 0
    %249 = vmatpush1.bf16.msra.mxu0 %v230
    %250 = vmatprep.subr.bf16.mxu0 0
    %251 = vmatpush1.bf16.msra.mxu0 %v229
    %252 = vmatprep.subr.bf16.mxu0 0
    %253 = vmatpush1.bf16.msra.mxu0 %v228
    %254 = vmatprep.subr.bf16.mxu0 0
    %255 = vmatpush1.bf16.msra.mxu0 %v227
    %256 = vmatprep.subr.bf16.mxu0 0
    %257 = vmatpush1.bf16.msra.mxu0 %v226
    %258 = vmatprep.subr.bf16.mxu0 0
    %259 = vmatpush2.bf16.msra.mxu0 0
    %260 = vmatprep.subr.bf16.mxu0 0
    %261 = vmatpush2.bf16.msra.mxu0 0
    %262 = vmatprep.subr.bf16.mxu0 0
    %263 = vmatpush2.bf16.msra.mxu0 0
    %264 = vmatprep.subr.bf16.mxu0 0
    %265 = vmatpush2.bf16.msra.mxu0 0
    %266 = vmatprep.subr.bf16.mxu0 0
    %267 = vmatpush2.bf16.msra.mxu0 0
    %268 = vmatprep.subr.bf16.mxu0 0
    %269 = vmatpush2.bf16.msra.mxu0 0
    %270 = vmatprep.subr.bf16.mxu0 0
    %271 = vmatpush2.bf16.msra.mxu0 0
    %272 = vmatprep.subr.bf16.mxu0 0
    %273 = vmatpush2.bf16.msra.mxu0 0
    %274 = vmatprep.mubr.bf16.mxu0 0
    %275 = vmatmul.mubr.bf16.gmra.mxu0 %v192
    %v276 = vpop.f32.mrf.mxu0
    %v277 = vadd.f32 %v134, %v276
    %v278 = vpop.f32.mrf.mxu0
    %v279 = vpop.f32.mrf.mxu0
    %v280 = vadd.f32 %v134, %v279
    %v281 = vpop.f32.mrf.mxu0
    %282 = vdwg.mxu0
    %v285 = vcombine.high %v277, %v277
    %v287 = vunpack.c.l.s4 1983009808
    %v288 = vunpack.c.0.s8 %v287
    %v289 = vlaneseq
    %v290 = vshrl.u32 %v289, 7
    %v291 = vsub.s32 %v288, %v290
    %v292 = vrot.slane %v277, %v291
    %v294 = vunpack.c.l.s4 1983009808
    %v295 = vunpack.c.0.s8 %v294
    %v296 = vlaneseq
    %v297 = vshrl.u32 %v296, 7
    %v298 = vsub.s32 %v295, %v297
    %v299 = vrot.slane %v285, %v298
    %v300 = vcombine.high %v292, %v292
    %v301 = vcombine.high %v299, %v299
    %v302 = vcombine.high %v280, %v280
    %v304 = vunpack.c.l.s4 1983009808
    %v305 = vunpack.c.0.s8 %v304
    %v306 = vlaneseq
    %v307 = vshrl.u32 %v306, 7
    %v308 = vsub.s32 %v305, %v307
    %v309 = vrot.slane %v280, %v308
    %v311 = vunpack.c.l.s4 1983009808
    %v312 = vunpack.c.0.s8 %v311
    %v313 = vlaneseq
    %v314 = vshrl.u32 %v313, 7
    %v315 = vsub.s32 %v312, %v314
    %v316 = vrot.slane %v302, %v315
    %v317 = vcombine.high %v309, %v309
    %v318 = vcombine.high %v316, %v316
    %v327 = vpack.c.bf16 %v292, %v292
    %v328 = vpack.c.bf16 %v300, %v300
    %v329 = vpack.c.bf16 %v299, %v299
    %v330 = vpack.c.bf16 %v301, %v301
    %v331 = vpack.c.bf16 %v309, %v309
    %v332 = vpack.c.bf16 %v317, %v317
    %v333 = vpack.c.bf16 %v316, %v316
    %v334 = vpack.c.bf16 %v318, %v318
    %vm335 = vcmask 516096
    %336 = vst.msk [vmem:[#allocation2] sm:$0x1] %vm335, %v327
    %337 = vst.msk [vmem:[#allocation2 + $0x1] sm:$0x1] %vm335, %v328
    %338 = vst.msk [vmem:[#allocation2 + $0x2] sm:$0x1] %vm335, %v329
    %339 = vst.msk [vmem:[#allocation2 + $0x3] sm:$0x1] %vm335, %v330
    %340 = vst.msk [vmem:[#allocation2 + $0x4] sm:$0x1] %vm335, %v331
    %341 = vst.msk [vmem:[#allocation2 + $0x5] sm:$0x1] %vm335, %v332
    %342 = vst.msk [vmem:[#allocation2 + $0x6] sm:$0x1] %vm335, %v333
    %343 = vst.msk [vmem:[#allocation2 + $0x7] sm:$0x1] %vm335, %v334
    %v353 = vunpack.c.l.s4 1966171168
    %v354 = vunpack.c.0.s8 %v353
    %v355 = vlaneseq
    %v356 = vshrl.u32 %v355, 7
    %v357 = vsub.s32 %v354, %v356
    %v358 = vrot.slane %v327, %v357
    %v360 = vunpack.c.l.s4 1966171168
    %v361 = vunpack.c.0.s8 %v360
    %v362 = vlaneseq
    %v363 = vshrl.u32 %v362, 7
    %v364 = vsub.s32 %v361, %v363
    %v365 = vrot.slane %v358, %v364
    %v367 = vunpack.c.l.s4 1966171168
    %v368 = vunpack.c.0.s8 %v367
    %v369 = vlaneseq
    %v370 = vshrl.u32 %v369, 7
    %v371 = vsub.s32 %v368, %v370
    %v372 = vrot.slane %v328, %v371
    %v374 = vunpack.c.l.s4 1966171168
    %v375 = vunpack.c.0.s8 %v374
    %v376 = vlaneseq
    %v377 = vshrl.u32 %v376, 7
    %v378 = vsub.s32 %v375, %v377
    %v379 = vrot.slane %v372, %v378
    %v381 = vunpack.c.l.s4 1966171168
    %v382 = vunpack.c.0.s8 %v381
    %v383 = vlaneseq
    %v384 = vshrl.u32 %v383, 7
    %v385 = vsub.s32 %v382, %v384
    %v386 = vrot.slane %v329, %v385
    %v388 = vunpack.c.l.s4 1966171168
    %v389 = vunpack.c.0.s8 %v388
    %v390 = vlaneseq
    %v391 = vshrl.u32 %v390, 7
    %v392 = vsub.s32 %v389, %v391
    %v393 = vrot.slane %v386, %v392
    %v395 = vunpack.c.l.s4 1966171168
    %v396 = vunpack.c.0.s8 %v395
    %v397 = vlaneseq
    %v398 = vshrl.u32 %v397, 7
    %v399 = vsub.s32 %v396, %v398
    %v400 = vrot.slane %v330, %v399
    %v402 = vunpack.c.l.s4 1966171168
    %v403 = vunpack.c.0.s8 %v402
    %v404 = vlaneseq
    %v405 = vshrl.u32 %v404, 7
    %v406 = vsub.s32 %v403, %v405
    %v407 = vrot.slane %v400, %v406
    %v409 = vunpack.c.l.s4 1966171168
    %v410 = vunpack.c.0.s8 %v409
    %v411 = vlaneseq
    %v412 = vshrl.u32 %v411, 7
    %v413 = vsub.s32 %v410, %v412
    %v414 = vrot.slane %v331, %v413
    %v416 = vunpack.c.l.s4 1966171168
    %v417 = vunpack.c.0.s8 %v416
    %v418 = vlaneseq
    %v419 = vshrl.u32 %v418, 7
    %v420 = vsub.s32 %v417, %v419
    %v421 = vrot.slane %v414, %v420
    %v423 = vunpack.c.l.s4 1966171168
    %v424 = vunpack.c.0.s8 %v423
    %v425 = vlaneseq
    %v426 = vshrl.u32 %v425, 7
    %v427 = vsub.s32 %v424, %v426
    %v428 = vrot.slane %v332, %v427
    %v430 = vunpack.c.l.s4 1966171168
    %v431 = vunpack.c.0.s8 %v430
    %v432 = vlaneseq
    %v433 = vshrl.u32 %v432, 7
    %v434 = vsub.s32 %v431, %v433
    %v435 = vrot.slane %v428, %v434
    %v437 = vunpack.c.l.s4 1966171168
    %v438 = vunpack.c.0.s8 %v437
    %v439 = vlaneseq
    %v440 = vshrl.u32 %v439, 7
    %v441 = vsub.s32 %v438, %v440
    %v442 = vrot.slane %v333, %v441
    %v444 = vunpack.c.l.s4 1966171168
    %v445 = vunpack.c.0.s8 %v444
    %v446 = vlaneseq
    %v447 = vshrl.u32 %v446, 7
    %v448 = vsub.s32 %v445, %v447
    %v449 = vrot.slane %v442, %v448
    %v451 = vunpack.c.l.s4 1966171168
    %v452 = vunpack.c.0.s8 %v451
    %v453 = vlaneseq
    %v454 = vshrl.u32 %v453, 7
    %v455 = vsub.s32 %v452, %v454
    %v456 = vrot.slane %v334, %v455
    %v458 = vunpack.c.l.s4 1966171168
    %v459 = vunpack.c.0.s8 %v458
    %v460 = vlaneseq
    %v461 = vshrl.u32 %v460, 7
    %v462 = vsub.s32 %v459, %v461
    %v463 = vrot.slane %v456, %v462
    %464 = vrot.lane.b32.xlu0 %v365, 64
    %v465 = vpop.permute.xlu0 %464
    %466 = vrot.lane.b32.xlu0 %v379, 64
    %v467 = vpop.permute.xlu0 %466
    %468 = vrot.lane.b32.xlu0 %v393, 64
    %v469 = vpop.permute.xlu0 %468
    %470 = vrot.lane.b32.xlu0 %v407, 64
    %v471 = vpop.permute.xlu0 %470
    %472 = vrot.lane.b32.xlu0 %v421, 64
    %v473 = vpop.permute.xlu0 %472
    %474 = vrot.lane.b32.xlu0 %v435, 64
    %v475 = vpop.permute.xlu0 %474
    %476 = vrot.lane.b32.xlu0 %v449, 64
    %v477 = vpop.permute.xlu0 %476
    %478 = vrot.lane.b32.xlu0 %v463, 64
    %v479 = vpop.permute.xlu0 %478
    %488 = vst.msk [vmem:[#allocation3] sm:$0x1] %vm335, %v465
    %489 = vst.msk [vmem:[#allocation3 + $0x1] sm:$0x1] %vm335, %v467
    %490 = vst.msk [vmem:[#allocation3 + $0x2] sm:$0x1] %vm335, %v469
    %491 = vst.msk [vmem:[#allocation3 + $0x3] sm:$0x1] %vm335, %v471
    %492 = vst.msk [vmem:[#allocation3 + $0x4] sm:$0x1] %vm335, %v473
    %493 = vst.msk [vmem:[#allocation3 + $0x5] sm:$0x1] %vm335, %v475
    %494 = vst.msk [vmem:[#allocation3 + $0x6] sm:$0x1] %vm335, %v477
    %495 = vst.msk [vmem:[#allocation3 + $0x7] sm:$0x1] %vm335, %v479
    loop: start=0, step=1, limit=2
    $region70: #{_metaphor_forward.1} parent=1 // loop_pre_header
      _
    $region71: #{_metaphor_forward.1} parent=1 // loop_header
      %s497 = sphi 0, %s501
      %p498 = scmp.ge.s32.totalorder %s497, 2
      %v502 = vphi 0.0, %v1371
      %v503 = vphi 0.0, %v1383
      %v504 = vphi 0.0, %v1384
      %v505 = vphi 0.0, %v1396
    $region72: #{_metaphor_forward.1} parent=1 // loop_header_branch
      %500 = sbr.rel (%p498) target = $region76
    $region73: #{_metaphor_forward.1} parent=1 // loop_body
      %s506 = smul.u32 %s497, 4
      %s507 = ssub.s32 7, %s506
      %509 = vrot.lane.b32.xlu0 %v504, 16
      %v510 = vpop.permute.xlu0 %509
      %vm512 = vcmask 130048
      %v513 = vsel %vm512, %v502, %v510
      %v514 = vpack.c.bf16 %v513, %v513
      %v515 = vld [vmem:[%s4] sm:$0xf]
      %v516 = vld [vmem:[%s4 + $0x4] sm:$0xf]
      %v517 = vld [vmem:[%s4 + $0x8] sm:$0xf]
      %v518 = vld [vmem:[%s4 + $0xc] sm:$0xf]
      %v523 = vunpack.c.l.b16 %v515
      %v524 = vunpack.c.l.b16 %v516
      %v525 = vunpack.c.l.b16 %v517
      %v526 = vunpack.c.l.b16 %v518
      %v527 = vpack.c.b16 %v524, %v523
      %v528 = vpack.c.b16 %v526, %v525
      %vm531 = vcmask 261120
      %v533 = vsel %vm531, %v514, 0
      %535 = vmatprep.subr.bf16.mxu0 0
      %536 = vmatpush1.bf16.msra.mxu0 0
      %537 = vmatprep.subr.bf16.mxu0 0
      %538 = vmatpush1.bf16.msra.mxu0 0
      %539 = vmatprep.subr.bf16.mxu0 0
      %540 = vmatpush1.bf16.msra.mxu0 0
      %541 = vmatprep.subr.bf16.mxu0 0
      %542 = vmatpush1.bf16.msra.mxu0 0
      %543 = vmatprep.subr.bf16.mxu0 0
      %544 = vmatpush1.bf16.msra.mxu0 0
      %545 = vmatprep.subr.bf16.mxu0 0
      %546 = vmatpush1.bf16.msra.mxu0 0
      %547 = vmatprep.subr.bf16.mxu0 0
      %548 = vmatpush1.bf16.msra.mxu0 %v528
      %549 = vmatprep.subr.bf16.mxu0 0
      %550 = vmatpush1.bf16.msra.mxu0 %v527
      %551 = vmatprep.subr.bf16.mxu0 0
      %552 = vmatpush2.bf16.msra.mxu0 0
      %553 = vmatprep.subr.bf16.mxu0 0
      %554 = vmatpush2.bf16.msra.mxu0 0
      %555 = vmatprep.subr.bf16.mxu0 0
      %556 = vmatpush2.bf16.msra.mxu0 0
      %557 = vmatprep.subr.bf16.mxu0 0
      %558 = vmatpush2.bf16.msra.mxu0 0
      %559 = vmatprep.subr.bf16.mxu0 0
      %560 = vmatpush2.bf16.msra.mxu0 0
      %561 = vmatprep.subr.bf16.mxu0 0
      %562 = vmatpush2.bf16.msra.mxu0 0
      %563 = vmatprep.subr.bf16.mxu0 0
      %564 = vmatpush2.bf16.msra.mxu0 0
      %565 = vmatprep.subr.bf16.mxu0 0
      %566 = vmatpush2.bf16.msra.mxu0 0
      %567 = vmatprep.mubr.bf16.mxu0 0
      %568 = vmatmul.mubr.bf16.gmra.mxu0 %v533
      %v569 = vpop.f32.mrf.mxu0
      %v570 = vadd.f32 0.0, %v569
      %v571 = vpop.f32.mrf.mxu0
      %v572 = vpop.f32.mrf.mxu0
      %v573 = vpop.f32.mrf.mxu0
      %574 = vdwg.mxu0
      %s575 = scalar_lea.vmem [#allocation2], %s506
      %v576 = vld [vmem:[%s575] sm:$0x1]
      %v577 = vunpack.c.l.bf16 %v576
      %v578 = vadd.f32 %v577, %v570
      %s579 = scalar_lea.vmem [#allocation3], %s507
      %v580 = vld [vmem:[%s579] sm:$0x1]
      %v581 = vunpack.c.l.bf16 %v580
      %v584 = vunpack.c.l.s4 1983009808
      %v585 = vunpack.c.0.s8 %v584
      %v586 = vlaneseq
      %v587 = vshrl.u32 %v586, 7
      %v588 = vsub.s32 %v585, %v587
      %v589 = vrot.slane %v570, %v588
      %590 = vrot.lane.b32.xlu0 %v589, 64
      %v591 = vpop.permute.xlu0 %590
      %v593 = vadd.f32 %v581, %v591
      %v594 = vmul.f32 %v578, 0.5
      %v595 = vtanh.pop %v594
      %v596 = vmul.f32 %v595, 0.5
      %v597 = vadd.f32 %v596, 0.5
      %v598 = vtanh.pop %v578
      %v601 = vunpack.c.l.s4 1983009808
      %v602 = vunpack.c.0.s8 %v601
      %v603 = vlaneseq
      %v604 = vshrl.u32 %v603, 7
      %v605 = vsub.s32 %v602, %v604
      %v606 = vrot.slane %v503, %v605
      %607 = vrot.lane.b32.xlu0 %v606, 16
      %v608 = vpop.permute.xlu0 %607
      %v610 = vmul.f32 %v597, %v608
      %612 = vrot.lane.b32.xlu0 %v598, 96
      %v613 = vpop.permute.xlu0 %612
      %v615 = vmul.f32 %v597, %v613
      %617 = vrot.lane.b32.xlu0 %v615, 16
      %v618 = vpop.permute.xlu0 %617
      %v620 = vadd.f32 %v610, %v618
      %v621 = vtanh.pop %v620
      %623 = vrot.lane.b32.xlu0 %v621, 32
      %v624 = vpop.permute.xlu0 %623
      %v626 = vmul.f32 %v597, %v624
      %v627 = vmul.f32 %v593, 0.5
      %v628 = vtanh.pop %v627
      %v629 = vmul.f32 %v628, 0.5
      %v630 = vadd.f32 %v629, 0.5
      %v631 = vtanh.pop %v593
      %v634 = vunpack.c.l.s4 1983009808
      %v635 = vunpack.c.0.s8 %v634
      %v636 = vlaneseq
      %v637 = vshrl.u32 %v636, 7
      %v638 = vsub.s32 %v635, %v637
      %v639 = vrot.slane %v505, %v638
      %640 = vrot.lane.b32.xlu0 %v639, 16
      %v641 = vpop.permute.xlu0 %640
      %v643 = vmul.f32 %v630, %v641
      %645 = vrot.lane.b32.xlu0 %v631, 96
      %v646 = vpop.permute.xlu0 %645
      %v648 = vmul.f32 %v630, %v646
      %650 = vrot.lane.b32.xlu0 %v648, 16
      %v651 = vpop.permute.xlu0 %650
      %v653 = vadd.f32 %v643, %v651
      %v654 = vtanh.pop %v653
      %656 = vrot.lane.b32.xlu0 %v654, 32
      %v657 = vpop.permute.xlu0 %656
      %v659 = vmul.f32 %v630, %v657
      %v660 = vstv %s506
      %vm661 = vcmp.gt.s32.totalorder %v104, %v660
      %v662 = vstv %s507
      %vm663 = vcmp.gt.s32.totalorder %v104, %v662
      %v664 = vsel %vm661, 1, 0
      %665 = vset.pattern.permute.xlu0 0
      %666 = vperm.xlu0 %665, %v664
      %v667 = vpop.permute.xlu0 %666
      %vm668 = vcmp.eq.s32.totalorder %v667, 1
      %v671 = vunpack.c.l.s4 1983009808
      %v672 = vunpack.c.0.s8 %v671
      %v673 = vlaneseq
      %v674 = vshrl.u32 %v673, 7
      %v675 = vsub.s32 %v672, %v674
      %v676 = vrot.slane %v626, %v675
      %677 = vrot.lane.b32.xlu0 %v676, 80
      %v678 = vpop.permute.xlu0 %677
      %v680 = vsel %vm668, %v678, 0.0
      %v681 = vpack.c.bf16 %v680, %v680
      %s682 = scalar_lea.vmem [#allocation4], %s506
      %vm683 = vcmask 122880
      %684 = vst.msk [vmem:[%s682] sm:$0x1] %vm683, %v681
      %v685 = vsel %vm663, 1, 0
      %686 = vset.pattern.permute.xlu0 0
      %687 = vperm.xlu0 %686, %v685
      %v688 = vpop.permute.xlu0 %687
      %vm689 = vcmp.eq.s32.totalorder %v688, 1
      %v692 = vunpack.c.l.s4 1983009808
      %v693 = vunpack.c.0.s8 %v692
      %v694 = vlaneseq
      %v695 = vshrl.u32 %v694, 7
      %v696 = vsub.s32 %v693, %v695
      %v697 = vrot.slane %v659, %v696
      %698 = vrot.lane.b32.xlu0 %v697, 80
      %v699 = vpop.permute.xlu0 %698
      %v701 = vsel %vm689, %v699, 0.0
      %v702 = vpack.c.bf16 %v701, %v701
      %s703 = scalar_lea.vmem [#allocation5], %s507
      %704 = vst.msk [vmem:[%s703] sm:$0x1] %vm683, %v702
      %v705 = vsel %vm668, %v678, %v502
      %v708 = vunpack.c.l.s4 1983009808
      %v709 = vunpack.c.0.s8 %v708
      %v710 = vlaneseq
      %v711 = vshrl.u32 %v710, 7
      %v712 = vsub.s32 %v709, %v711
      %v713 = vrot.slane %v620, %v712
      %714 = vrot.lane.b32.xlu0 %v713, 112
      %v715 = vpop.permute.xlu0 %714
      %v717 = vsel %vm668, %v715, %v503
      %v718 = vsel %vm689, %v699, %v504
      %v721 = vunpack.c.l.s4 1983009808
      %v722 = vunpack.c.0.s8 %v721
      %v723 = vlaneseq
      %v724 = vshrl.u32 %v723, 7
      %v725 = vsub.s32 %v722, %v724
      %v726 = vrot.slane %v653, %v725
      %727 = vrot.lane.b32.xlu0 %v726, 112
      %v728 = vpop.permute.xlu0 %727
      %v730 = vsel %vm689, %v728, %v505
      %s731 = sadd.s32 %s506, 1
      %s732 = ssub.s32 6, %s506
      %734 = vrot.lane.b32.xlu0 %v718, 16
      %v735 = vpop.permute.xlu0 %734
      %v737 = vsel %vm512, %v705, %v735
      %v738 = vpack.c.bf16 %v737, %v737
      %v739 = vld [vmem:[%s4] sm:$0xf]
      %v740 = vld [vmem:[%s4 + $0x4] sm:$0xf]
      %v741 = vld [vmem:[%s4 + $0x8] sm:$0xf]
      %v742 = vld [vmem:[%s4 + $0xc] sm:$0xf]
      %v747 = vunpack.c.l.b16 %v739
      %v748 = vunpack.c.l.b16 %v740
      %v749 = vunpack.c.l.b16 %v741
      %v750 = vunpack.c.l.b16 %v742
      %v751 = vpack.c.b16 %v748, %v747
      %v752 = vpack.c.b16 %v750, %v749
      %v756 = vsel %vm531, %v738, 0
      %758 = vmatprep.subr.bf16.mxu0 0
      %759 = vmatpush1.bf16.msra.mxu0 0
      %760 = vmatprep.subr.bf16.mxu0 0
      %761 = vmatpush1.bf16.msra.mxu0 0
      %762 = vmatprep.subr.bf16.mxu0 0
      %763 = vmatpush1.bf16.msra.mxu0 0
      %764 = vmatprep.subr.bf16.mxu0 0
      %765 = vmatpush1.bf16.msra.mxu0 0
      %766 = vmatprep.subr.bf16.mxu0 0
      %767 = vmatpush1.bf16.msra.mxu0 0
      %768 = vmatprep.subr.bf16.mxu0 0
      %769 = vmatpush1.bf16.msra.mxu0 0
      %770 = vmatprep.subr.bf16.mxu0 0
      %771 = vmatpush1.bf16.msra.mxu0 %v752
      %772 = vmatprep.subr.bf16.mxu0 0
      %773 = vmatpush1.bf16.msra.mxu0 %v751
      %774 = vmatprep.subr.bf16.mxu0 0
      %775 = vmatpush2.bf16.msra.mxu0 0
      %776 = vmatprep.subr.bf16.mxu0 0
      %777 = vmatpush2.bf16.msra.mxu0 0
      %778 = vmatprep.subr.bf16.mxu0 0
      %779 = vmatpush2.bf16.msra.mxu0 0
      %780 = vmatprep.subr.bf16.mxu0 0
      %781 = vmatpush2.bf16.msra.mxu0 0
      %782 = vmatprep.subr.bf16.mxu0 0
      %783 = vmatpush2.bf16.msra.mxu0 0
      %784 = vmatprep.subr.bf16.mxu0 0
      %785 = vmatpush2.bf16.msra.mxu0 0
      %786 = vmatprep.subr.bf16.mxu0 0
      %787 = vmatpush2.bf16.msra.mxu0 0
      %788 = vmatprep.subr.bf16.mxu0 0
      %789 = vmatpush2.bf16.msra.mxu0 0
      %790 = vmatprep.mubr.bf16.mxu0 0
      %791 = vmatmul.mubr.bf16.gmra.mxu0 %v756
      %v792 = vpop.f32.mrf.mxu0
      %v793 = vadd.f32 0.0, %v792
      %v794 = vpop.f32.mrf.mxu0
      %v795 = vpop.f32.mrf.mxu0
      %v796 = vpop.f32.mrf.mxu0
      %797 = vdwg.mxu0
      %s798 = scalar_lea.vmem [#allocation2], %s731
      %v799 = vld [vmem:[%s798] sm:$0x1]
      %v800 = vunpack.c.l.bf16 %v799
      %v801 = vadd.f32 %v800, %v793
      %s802 = scalar_lea.vmem [#allocation3], %s732
      %v803 = vld [vmem:[%s802] sm:$0x1]
      %v804 = vunpack.c.l.bf16 %v803
      %v807 = vunpack.c.l.s4 1983009808
      %v808 = vunpack.c.0.s8 %v807
      %v809 = vlaneseq
      %v810 = vshrl.u32 %v809, 7
      %v811 = vsub.s32 %v808, %v810
      %v812 = vrot.slane %v793, %v811
      %813 = vrot.lane.b32.xlu0 %v812, 64
      %v814 = vpop.permute.xlu0 %813
      %v816 = vadd.f32 %v804, %v814
      %v817 = vmul.f32 %v801, 0.5
      %v818 = vtanh.pop %v817
      %v819 = vmul.f32 %v818, 0.5
      %v820 = vadd.f32 %v819, 0.5
      %v821 = vtanh.pop %v801
      %v824 = vunpack.c.l.s4 1983009808
      %v825 = vunpack.c.0.s8 %v824
      %v826 = vlaneseq
      %v827 = vshrl.u32 %v826, 7
      %v828 = vsub.s32 %v825, %v827
      %v829 = vrot.slane %v717, %v828
      %830 = vrot.lane.b32.xlu0 %v829, 16
      %v831 = vpop.permute.xlu0 %830
      %v833 = vmul.f32 %v820, %v831
      %835 = vrot.lane.b32.xlu0 %v821, 96
      %v836 = vpop.permute.xlu0 %835
      %v838 = vmul.f32 %v820, %v836
      %840 = vrot.lane.b32.xlu0 %v838, 16
      %v841 = vpop.permute.xlu0 %840
      %v843 = vadd.f32 %v833, %v841
      %v844 = vtanh.pop %v843
      %846 = vrot.lane.b32.xlu0 %v844, 32
      %v847 = vpop.permute.xlu0 %846
      %v849 = vmul.f32 %v820, %v847
      %v850 = vmul.f32 %v816, 0.5
      %v851 = vtanh.pop %v850
      %v852 = vmul.f32 %v851, 0.5
      %v853 = vadd.f32 %v852, 0.5
      %v854 = vtanh.pop %v816
      %v857 = vunpack.c.l.s4 1983009808
      %v858 = vunpack.c.0.s8 %v857
      %v859 = vlaneseq
      %v860 = vshrl.u32 %v859, 7
      %v861 = vsub.s32 %v858, %v860
      %v862 = vrot.slane %v730, %v861
      %863 = vrot.lane.b32.xlu0 %v862, 16
      %v864 = vpop.permute.xlu0 %863
      %v866 = vmul.f32 %v853, %v864
      %868 = vrot.lane.b32.xlu0 %v854, 96
      %v869 = vpop.permute.xlu0 %868
      %v871 = vmul.f32 %v853, %v869
      %873 = vrot.lane.b32.xlu0 %v871, 16
      %v874 = vpop.permute.xlu0 %873
      %v876 = vadd.f32 %v866, %v874
      %v877 = vtanh.pop %v876
      %879 = vrot.lane.b32.xlu0 %v877, 32
      %v880 = vpop.permute.xlu0 %879
      %v882 = vmul.f32 %v853, %v880
      %v883 = vstv %s731
      %vm884 = vcmp.gt.s32.totalorder %v104, %v883
      %v885 = vstv %s732
      %vm886 = vcmp.gt.s32.totalorder %v104, %v885
      %v887 = vsel %vm884, 1, 0
      %888 = vset.pattern.permute.xlu0 0
      %889 = vperm.xlu0 %888, %v887
      %v890 = vpop.permute.xlu0 %889
      %vm891 = vcmp.eq.s32.totalorder %v890, 1
      %v894 = vunpack.c.l.s4 1983009808
      %v895 = vunpack.c.0.s8 %v894
      %v896 = vlaneseq
      %v897 = vshrl.u32 %v896, 7
      %v898 = vsub.s32 %v895, %v897
      %v899 = vrot.slane %v849, %v898
      %900 = vrot.lane.b32.xlu0 %v899, 80
      %v901 = vpop.permute.xlu0 %900
      %v903 = vsel %vm891, %v901, 0.0
      %v904 = vpack.c.bf16 %v903, %v903
      %s905 = scalar_lea.vmem [#allocation4], %s731
      %906 = vst.msk [vmem:[%s905] sm:$0x1] %vm683, %v904
      %v907 = vsel %vm886, 1, 0
      %908 = vset.pattern.permute.xlu0 0
      %909 = vperm.xlu0 %908, %v907
      %v910 = vpop.permute.xlu0 %909
      %vm911 = vcmp.eq.s32.totalorder %v910, 1
      %v914 = vunpack.c.l.s4 1983009808
      %v915 = vunpack.c.0.s8 %v914
      %v916 = vlaneseq
      %v917 = vshrl.u32 %v916, 7
      %v918 = vsub.s32 %v915, %v917
      %v919 = vrot.slane %v882, %v918
      %920 = vrot.lane.b32.xlu0 %v919, 80
      %v921 = vpop.permute.xlu0 %920
      %v923 = vsel %vm911, %v921, 0.0
      %v924 = vpack.c.bf16 %v923, %v923
      %s925 = scalar_lea.vmem [#allocation5], %s732
      %926 = vst.msk [vmem:[%s925] sm:$0x1] %vm683, %v924
      %v927 = vsel %vm891, %v901, %v705
      %v930 = vunpack.c.l.s4 1983009808
      %v931 = vunpack.c.0.s8 %v930
      %v932 = vlaneseq
      %v933 = vshrl.u32 %v932, 7
      %v934 = vsub.s32 %v931, %v933
      %v935 = vrot.slane %v843, %v934
      %936 = vrot.lane.b32.xlu0 %v935, 112
      %v937 = vpop.permute.xlu0 %936
      %v939 = vsel %vm891, %v937, %v717
      %v940 = vsel %vm911, %v921, %v718
      %v943 = vunpack.c.l.s4 1983009808
      %v944 = vunpack.c.0.s8 %v943
      %v945 = vlaneseq
      %v946 = vshrl.u32 %v945, 7
      %v947 = vsub.s32 %v944, %v946
      %v948 = vrot.slane %v876, %v947
      %949 = vrot.lane.b32.xlu0 %v948, 112
      %v950 = vpop.permute.xlu0 %949
      %v952 = vsel %vm911, %v950, %v730
      %s953 = sadd.s32 %s506, 2
      %s954 = ssub.s32 5, %s506
      %956 = vrot.lane.b32.xlu0 %v940, 16
      %v957 = vpop.permute.xlu0 %956
      %v959 = vsel %vm512, %v927, %v957
      %v960 = vpack.c.bf16 %v959, %v959
      %v961 = vld [vmem:[%s4] sm:$0xf]
      %v962 = vld [vmem:[%s4 + $0x4] sm:$0xf]
      %v963 = vld [vmem:[%s4 + $0x8] sm:$0xf]
      %v964 = vld [vmem:[%s4 + $0xc] sm:$0xf]
      %v969 = vunpack.c.l.b16 %v961
      %v970 = vunpack.c.l.b16 %v962
      %v971 = vunpack.c.l.b16 %v963
      %v972 = vunpack.c.l.b16 %v964
      %v973 = vpack.c.b16 %v970, %v969
      %v974 = vpack.c.b16 %v972, %v971
      %v978 = vsel %vm531, %v960, 0
      %980 = vmatprep.subr.bf16.mxu0 0
      %981 = vmatpush1.bf16.msra.mxu0 0
      %982 = vmatprep.subr.bf16.mxu0 0
      %983 = vmatpush1.bf16.msra.mxu0 0
      %984 = vmatprep.subr.bf16.mxu0 0
      %985 = vmatpush1.bf16.msra.mxu0 0
      %986 = vmatprep.subr.bf16.mxu0 0
      %987 = vmatpush1.bf16.msra.mxu0 0
      %988 = vmatprep.subr.bf16.mxu0 0
      %989 = vmatpush1.bf16.msra.mxu0 0
      %990 = vmatprep.subr.bf16.mxu0 0
      %991 = vmatpush1.bf16.msra.mxu0 0
      %992 = vmatprep.subr.bf16.mxu0 0
      %993 = vmatpush1.bf16.msra.mxu0 %v974
      %994 = vmatprep.subr.bf16.mxu0 0
      %995 = vmatpush1.bf16.msra.mxu0 %v973
      %996 = vmatprep.subr.bf16.mxu0 0
      %997 = vmatpush2.bf16.msra.mxu0 0
      %998 = vmatprep.subr.bf16.mxu0 0
      %999 = vmatpush2.bf16.msra.mxu0 0
      %1000 = vmatprep.subr.bf16.mxu0 0
      %1001 = vmatpush2.bf16.msra.mxu0 0
      %1002 = vmatprep.subr.bf16.mxu0 0
      %1003 = vmatpush2.bf16.msra.mxu0 0
      %1004 = vmatprep.subr.bf16.mxu0 0
      %1005 = vmatpush2.bf16.msra.mxu0 0
      %1006 = vmatprep.subr.bf16.mxu0 0
      %1007 = vmatpush2.bf16.msra.mxu0 0
      %1008 = vmatprep.subr.bf16.mxu0 0
      %1009 = vmatpush2.bf16.msra.mxu0 0
      %1010 = vmatprep.subr.bf16.mxu0 0
      %1011 = vmatpush2.bf16.msra.mxu0 0
      %1012 = vmatprep.mubr.bf16.mxu0 0
      %1013 = vmatmul.mubr.bf16.gmra.mxu0 %v978
      %v1014 = vpop.f32.mrf.mxu0
      %v1015 = vadd.f32 0.0, %v1014
      %v1016 = vpop.f32.mrf.mxu0
      %v1017 = vpop.f32.mrf.mxu0
      %v1018 = vpop.f32.mrf.mxu0
      %1019 = vdwg.mxu0
      %s1020 = scalar_lea.vmem [#allocation2], %s953
      %v1021 = vld [vmem:[%s1020] sm:$0x1]
      %v1022 = vunpack.c.l.bf16 %v1021
      %v1023 = vadd.f32 %v1022, %v1015
      %s1024 = scalar_lea.vmem [#allocation3], %s954
      %v1025 = vld [vmem:[%s1024] sm:$0x1]
      %v1026 = vunpack.c.l.bf16 %v1025
      %v1029 = vunpack.c.l.s4 1983009808
      %v1030 = vunpack.c.0.s8 %v1029
      %v1031 = vlaneseq
      %v1032 = vshrl.u32 %v1031, 7
      %v1033 = vsub.s32 %v1030, %v1032
      %v1034 = vrot.slane %v1015, %v1033
      %1035 = vrot.lane.b32.xlu0 %v1034, 64
      %v1036 = vpop.permute.xlu0 %1035
      %v1038 = vadd.f32 %v1026, %v1036
      %v1039 = vmul.f32 %v1023, 0.5
      %v1040 = vtanh.pop %v1039
      %v1041 = vmul.f32 %v1040, 0.5
      %v1042 = vadd.f32 %v1041, 0.5
      %v1043 = vtanh.pop %v1023
      %v1046 = vunpack.c.l.s4 1983009808
      %v1047 = vunpack.c.0.s8 %v1046
      %v1048 = vlaneseq
      %v1049 = vshrl.u32 %v1048, 7
      %v1050 = vsub.s32 %v1047, %v1049
      %v1051 = vrot.slane %v939, %v1050
      %1052 = vrot.lane.b32.xlu0 %v1051, 16
      %v1053 = vpop.permute.xlu0 %1052
      %v1055 = vmul.f32 %v1042, %v1053
      %1057 = vrot.lane.b32.xlu0 %v1043, 96
      %v1058 = vpop.permute.xlu0 %1057
      %v1060 = vmul.f32 %v1042, %v1058
      %1062 = vrot.lane.b32.xlu0 %v1060, 16
      %v1063 = vpop.permute.xlu0 %1062
      %v1065 = vadd.f32 %v1055, %v1063
      %v1066 = vtanh.pop %v1065
      %1068 = vrot.lane.b32.xlu0 %v1066, 32
      %v1069 = vpop.permute.xlu0 %1068
      %v1071 = vmul.f32 %v1042, %v1069
      %v1072 = vmul.f32 %v1038, 0.5
      %v1073 = vtanh.pop %v1072
      %v1074 = vmul.f32 %v1073, 0.5
      %v1075 = vadd.f32 %v1074, 0.5
      %v1076 = vtanh.pop %v1038
      %v1079 = vunpack.c.l.s4 1983009808
      %v1080 = vunpack.c.0.s8 %v1079
      %v1081 = vlaneseq
      %v1082 = vshrl.u32 %v1081, 7
      %v1083 = vsub.s32 %v1080, %v1082
      %v1084 = vrot.slane %v952, %v1083
      %1085 = vrot.lane.b32.xlu0 %v1084, 16
      %v1086 = vpop.permute.xlu0 %1085
      %v1088 = vmul.f32 %v1075, %v1086
      %1090 = vrot.lane.b32.xlu0 %v1076, 96
      %v1091 = vpop.permute.xlu0 %1090
      %v1093 = vmul.f32 %v1075, %v1091
      %1095 = vrot.lane.b32.xlu0 %v1093, 16
      %v1096 = vpop.permute.xlu0 %1095
      %v1098 = vadd.f32 %v1088, %v1096
      %v1099 = vtanh.pop %v1098
      %1101 = vrot.lane.b32.xlu0 %v1099, 32
      %v1102 = vpop.permute.xlu0 %1101
      %v1104 = vmul.f32 %v1075, %v1102
      %v1105 = vstv %s953
      %vm1106 = vcmp.gt.s32.totalorder %v104, %v1105
      %v1107 = vstv %s954
      %vm1108 = vcmp.gt.s32.totalorder %v104, %v1107
      %v1109 = vsel %vm1106, 1, 0
      %1110 = vset.pattern.permute.xlu0 0
      %1111 = vperm.xlu0 %1110, %v1109
      %v1112 = vpop.permute.xlu0 %1111
      %vm1113 = vcmp.eq.s32.totalorder %v1112, 1
      %v1116 = vunpack.c.l.s4 1983009808
      %v1117 = vunpack.c.0.s8 %v1116
      %v1118 = vlaneseq
      %v1119 = vshrl.u32 %v1118, 7
      %v1120 = vsub.s32 %v1117, %v1119
      %v1121 = vrot.slane %v1071, %v1120
      %1122 = vrot.lane.b32.xlu0 %v1121, 80
      %v1123 = vpop.permute.xlu0 %1122
      %v1125 = vsel %vm1113, %v1123, 0.0
      %v1126 = vpack.c.bf16 %v1125, %v1125
      %s1127 = scalar_lea.vmem [#allocation4], %s953
      %1128 = vst.msk [vmem:[%s1127] sm:$0x1] %vm683, %v1126
      %v1129 = vsel %vm1108, 1, 0
      %1130 = vset.pattern.permute.xlu0 0
      %1131 = vperm.xlu0 %1130, %v1129
      %v1132 = vpop.permute.xlu0 %1131
      %vm1133 = vcmp.eq.s32.totalorder %v1132, 1
      %v1136 = vunpack.c.l.s4 1983009808
      %v1137 = vunpack.c.0.s8 %v1136
      %v1138 = vlaneseq
      %v1139 = vshrl.u32 %v1138, 7
      %v1140 = vsub.s32 %v1137, %v1139
      %v1141 = vrot.slane %v1104, %v1140
      %1142 = vrot.lane.b32.xlu0 %v1141, 80
      %v1143 = vpop.permute.xlu0 %1142
      %v1145 = vsel %vm1133, %v1143, 0.0
      %v1146 = vpack.c.bf16 %v1145, %v1145
      %s1147 = scalar_lea.vmem [#allocation5], %s954
      %1148 = vst.msk [vmem:[%s1147] sm:$0x1] %vm683, %v1146
      %v1149 = vsel %vm1113, %v1123, %v927
      %v1152 = vunpack.c.l.s4 1983009808
      %v1153 = vunpack.c.0.s8 %v1152
      %v1154 = vlaneseq
      %v1155 = vshrl.u32 %v1154, 7
      %v1156 = vsub.s32 %v1153, %v1155
      %v1157 = vrot.slane %v1065, %v1156
      %1158 = vrot.lane.b32.xlu0 %v1157, 112
      %v1159 = vpop.permute.xlu0 %1158
      %v1161 = vsel %vm1113, %v1159, %v939
      %v1162 = vsel %vm1133, %v1143, %v940
      %v1165 = vunpack.c.l.s4 1983009808
      %v1166 = vunpack.c.0.s8 %v1165
      %v1167 = vlaneseq
      %v1168 = vshrl.u32 %v1167, 7
      %v1169 = vsub.s32 %v1166, %v1168
      %v1170 = vrot.slane %v1098, %v1169
      %1171 = vrot.lane.b32.xlu0 %v1170, 112
      %v1172 = vpop.permute.xlu0 %1171
      %v1174 = vsel %vm1133, %v1172, %v952
      %s1175 = sadd.s32 %s506, 3
      %s1176 = ssub.s32 4, %s506
      %1178 = vrot.lane.b32.xlu0 %v1162, 16
      %v1179 = vpop.permute.xlu0 %1178
      %v1181 = vsel %vm512, %v1149, %v1179
      %v1182 = vpack.c.bf16 %v1181, %v1181
      %v1183 = vld [vmem:[%s4] sm:$0xf]
      %v1184 = vld [vmem:[%s4 + $0x4] sm:$0xf]
      %v1185 = vld [vmem:[%s4 + $0x8] sm:$0xf]
      %v1186 = vld [vmem:[%s4 + $0xc] sm:$0xf]
      %v1191 = vunpack.c.l.b16 %v1183
      %v1192 = vunpack.c.l.b16 %v1184
      %v1193 = vunpack.c.l.b16 %v1185
      %v1194 = vunpack.c.l.b16 %v1186
      %v1195 = vpack.c.b16 %v1192, %v1191
      %v1196 = vpack.c.b16 %v1194, %v1193
      %v1200 = vsel %vm531, %v1182, 0
      %1202 = vmatprep.subr.bf16.mxu0 0
      %1203 = vmatpush1.bf16.msra.mxu0 0
      %1204 = vmatprep.subr.bf16.mxu0 0
      %1205 = vmatpush1.bf16.msra.mxu0 0
      %1206 = vmatprep.subr.bf16.mxu0 0
      %1207 = vmatpush1.bf16.msra.mxu0 0
      %1208 = vmatprep.subr.bf16.mxu0 0
      %1209 = vmatpush1.bf16.msra.mxu0 0
      %1210 = vmatprep.subr.bf16.mxu0 0
      %1211 = vmatpush1.bf16.msra.mxu0 0
      %1212 = vmatprep.subr.bf16.mxu0 0
      %1213 = vmatpush1.bf16.msra.mxu0 0
      %1214 = vmatprep.subr.bf16.mxu0 0
      %1215 = vmatpush1.bf16.msra.mxu0 %v1196
      %1216 = vmatprep.subr.bf16.mxu0 0
      %1217 = vmatpush1.bf16.msra.mxu0 %v1195
      %1218 = vmatprep.subr.bf16.mxu0 0
      %1219 = vmatpush2.bf16.msra.mxu0 0
      %1220 = vmatprep.subr.bf16.mxu0 0
      %1221 = vmatpush2.bf16.msra.mxu0 0
      %1222 = vmatprep.subr.bf16.mxu0 0
      %1223 = vmatpush2.bf16.msra.mxu0 0
      %1224 = vmatprep.subr.bf16.mxu0 0
      %1225 = vmatpush2.bf16.msra.mxu0 0
      %1226 = vmatprep.subr.bf16.mxu0 0
      %1227 = vmatpush2.bf16.msra.mxu0 0
      %1228 = vmatprep.subr.bf16.mxu0 0
      %1229 = vmatpush2.bf16.msra.mxu0 0
      %1230 = vmatprep.subr.bf16.mxu0 0
      %1231 = vmatpush2.bf16.msra.mxu0 0
      %1232 = vmatprep.subr.bf16.mxu0 0
      %1233 = vmatpush2.bf16.msra.mxu0 0
      %1234 = vmatprep.mubr.bf16.mxu0 0
      %1235 = vmatmul.mubr.bf16.gmra.mxu0 %v1200
      %v1236 = vpop.f32.mrf.mxu0
      %v1237 = vadd.f32 0.0, %v1236
      %v1238 = vpop.f32.mrf.mxu0
      %v1239 = vpop.f32.mrf.mxu0
      %v1240 = vpop.f32.mrf.mxu0
      %1241 = vdwg.mxu0
      %s1242 = scalar_lea.vmem [#allocation2], %s1175
      %v1243 = vld [vmem:[%s1242] sm:$0x1]
      %v1244 = vunpack.c.l.bf16 %v1243
      %v1245 = vadd.f32 %v1244, %v1237
      %s1246 = scalar_lea.vmem [#allocation3], %s1176
      %v1247 = vld [vmem:[%s1246] sm:$0x1]
      %v1248 = vunpack.c.l.bf16 %v1247
      %v1251 = vunpack.c.l.s4 1983009808
      %v1252 = vunpack.c.0.s8 %v1251
      %v1253 = vlaneseq
      %v1254 = vshrl.u32 %v1253, 7
      %v1255 = vsub.s32 %v1252, %v1254
      %v1256 = vrot.slane %v1237, %v1255
      %1257 = vrot.lane.b32.xlu0 %v1256, 64
      %v1258 = vpop.permute.xlu0 %1257
      %v1260 = vadd.f32 %v1248, %v1258
      %v1261 = vmul.f32 %v1245, 0.5
      %v1262 = vtanh.pop %v1261
      %v1263 = vmul.f32 %v1262, 0.5
      %v1264 = vadd.f32 %v1263, 0.5
      %v1265 = vtanh.pop %v1245
      %v1268 = vunpack.c.l.s4 1983009808
      %v1269 = vunpack.c.0.s8 %v1268
      %v1270 = vlaneseq
      %v1271 = vshrl.u32 %v1270, 7
      %v1272 = vsub.s32 %v1269, %v1271
      %v1273 = vrot.slane %v1161, %v1272
      %1274 = vrot.lane.b32.xlu0 %v1273, 16
      %v1275 = vpop.permute.xlu0 %1274
      %v1277 = vmul.f32 %v1264, %v1275
      %1279 = vrot.lane.b32.xlu0 %v1265, 96
      %v1280 = vpop.permute.xlu0 %1279
      %v1282 = vmul.f32 %v1264, %v1280
      %1284 = vrot.lane.b32.xlu0 %v1282, 16
      %v1285 = vpop.permute.xlu0 %1284
      %v1287 = vadd.f32 %v1277, %v1285
      %v1288 = vtanh.pop %v1287
      %1290 = vrot.lane.b32.xlu0 %v1288, 32
      %v1291 = vpop.permute.xlu0 %1290
      %v1293 = vmul.f32 %v1264, %v1291
      %v1294 = vmul.f32 %v1260, 0.5
      %v1295 = vtanh.pop %v1294
      %v1296 = vmul.f32 %v1295, 0.5
      %v1297 = vadd.f32 %v1296, 0.5
      %v1298 = vtanh.pop %v1260
      %v1301 = vunpack.c.l.s4 1983009808
      %v1302 = vunpack.c.0.s8 %v1301
      %v1303 = vlaneseq
      %v1304 = vshrl.u32 %v1303, 7
      %v1305 = vsub.s32 %v1302, %v1304
      %v1306 = vrot.slane %v1174, %v1305
      %1307 = vrot.lane.b32.xlu0 %v1306, 16
      %v1308 = vpop.permute.xlu0 %1307
      %v1310 = vmul.f32 %v1297, %v1308
      %1312 = vrot.lane.b32.xlu0 %v1298, 96
      %v1313 = vpop.permute.xlu0 %1312
      %v1315 = vmul.f32 %v1297, %v1313
      %1317 = vrot.lane.b32.xlu0 %v1315, 16
      %v1318 = vpop.permute.xlu0 %1317
      %v1320 = vadd.f32 %v1310, %v1318
      %v1321 = vtanh.pop %v1320
      %1323 = vrot.lane.b32.xlu0 %v1321, 32
      %v1324 = vpop.permute.xlu0 %1323
      %v1326 = vmul.f32 %v1297, %v1324
      %v1327 = vstv %s1175
      %vm1328 = vcmp.gt.s32.totalorder %v104, %v1327
      %v1329 = vstv %s1176
      %vm1330 = vcmp.gt.s32.totalorder %v104, %v1329
      %v1331 = vsel %vm1328, 1, 0
      %1332 = vset.pattern.permute.xlu0 0
      %1333 = vperm.xlu0 %1332, %v1331
      %v1334 = vpop.permute.xlu0 %1333
      %vm1335 = vcmp.eq.s32.totalorder %v1334, 1
      %v1338 = vunpack.c.l.s4 1983009808
      %v1339 = vunpack.c.0.s8 %v1338
      %v1340 = vlaneseq
      %v1341 = vshrl.u32 %v1340, 7
      %v1342 = vsub.s32 %v1339, %v1341
      %v1343 = vrot.slane %v1293, %v1342
      %1344 = vrot.lane.b32.xlu0 %v1343, 80
      %v1345 = vpop.permute.xlu0 %1344
      %v1347 = vsel %vm1335, %v1345, 0.0
      %v1348 = vpack.c.bf16 %v1347, %v1347
      %s1349 = scalar_lea.vmem [#allocation4], %s1175
      %1350 = vst.msk [vmem:[%s1349] sm:$0x1] %vm683, %v1348
      %v1351 = vsel %vm1330, 1, 0
      %1352 = vset.pattern.permute.xlu0 0
      %1353 = vperm.xlu0 %1352, %v1351
      %v1354 = vpop.permute.xlu0 %1353
      %vm1355 = vcmp.eq.s32.totalorder %v1354, 1
      %v1358 = vunpack.c.l.s4 1983009808
      %v1359 = vunpack.c.0.s8 %v1358
      %v1360 = vlaneseq
      %v1361 = vshrl.u32 %v1360, 7
      %v1362 = vsub.s32 %v1359, %v1361
      %v1363 = vrot.slane %v1326, %v1362
      %1364 = vrot.lane.b32.xlu0 %v1363, 80
      %v1365 = vpop.permute.xlu0 %1364
      %v1367 = vsel %vm1355, %v1365, 0.0
      %v1368 = vpack.c.bf16 %v1367, %v1367
      %s1369 = scalar_lea.vmem [#allocation5], %s1176
      %1370 = vst.msk [vmem:[%s1369] sm:$0x1] %vm683, %v1368
      %v1371 = vsel %vm1335, %v1345, %v1149
      %v1374 = vunpack.c.l.s4 1983009808
      %v1375 = vunpack.c.0.s8 %v1374
      %v1376 = vlaneseq
      %v1377 = vshrl.u32 %v1376, 7
      %v1378 = vsub.s32 %v1375, %v1377
      %v1379 = vrot.slane %v1287, %v1378
      %1380 = vrot.lane.b32.xlu0 %v1379, 112
      %v1381 = vpop.permute.xlu0 %1380
      %v1383 = vsel %vm1335, %v1381, %v1161
      %v1384 = vsel %vm1355, %v1365, %v1162
      %v1387 = vunpack.c.l.s4 1983009808
      %v1388 = vunpack.c.0.s8 %v1387
      %v1389 = vlaneseq
      %v1390 = vshrl.u32 %v1389, 7
      %v1391 = vsub.s32 %v1388, %v1390
      %v1392 = vrot.slane %v1320, %v1391
      %1393 = vrot.lane.b32.xlu0 %v1392, 112
      %v1394 = vpop.permute.xlu0 %1393
      %v1396 = vsel %vm1355, %v1394, %v1174
    $region74: #{_metaphor_forward.1} parent=1 // loop_footer
      %s501 = sadd.s32 1, %s497
    $region75: #{_metaphor_forward.1} parent=1 // loop_footer_branch
      %496 = sbr.rel target = $region71
    $region76: #{_metaphor_forward.1} parent=1 // loop_exit
      _
    %v1397 = vld [vmem:[#allocation4] sm:$0x1]
    %v1398 = vld [vmem:[#allocation4 + $0x1] sm:$0x1]
    %v1399 = vld [vmem:[#allocation4 + $0x2] sm:$0x1]
    %v1400 = vld [vmem:[#allocation4 + $0x3] sm:$0x1]
    %v1401 = vld [vmem:[#allocation4 + $0x4] sm:$0x1]
    %v1402 = vld [vmem:[#allocation4 + $0x5] sm:$0x1]
    %v1403 = vld [vmem:[#allocation4 + $0x6] sm:$0x1]
    %v1404 = vld [vmem:[#allocation4 + $0x7] sm:$0x1]
    %v1405 = vld [vmem:[#allocation5] sm:$0x1]
    %v1406 = vld [vmem:[#allocation5 + $0x1] sm:$0x1]
    %v1407 = vld [vmem:[#allocation5 + $0x2] sm:$0x1]
    %v1408 = vld [vmem:[#allocation5 + $0x3] sm:$0x1]
    %v1409 = vld [vmem:[#allocation5 + $0x4] sm:$0x1]
    %v1410 = vld [vmem:[#allocation5 + $0x5] sm:$0x1]
    %v1411 = vld [vmem:[#allocation5 + $0x6] sm:$0x1]
    %v1412 = vld [vmem:[#allocation5 + $0x7] sm:$0x1]
    %v1413 = vld [vmem:[#allocation7] sm:$0xf]
    %v1414 = vld [vmem:[#allocation7 + $0x4] sm:$0xf]
    %v1415 = vld [vmem:[#allocation9] sm:$0xf]
    %v1416 = vld [vmem:[#allocation9 + $0x4] sm:$0xf]
    %v1425 = vcombine.low %v1405, %v1406
    %v1426 = vcombine.low %v1407, %v1408
    %v1427 = vcombine.low %v1409, %v1410
    %v1428 = vcombine.low %v1411, %v1412
    %v1430 = vunpack.c.l.s4 1966171168
    %v1431 = vunpack.c.0.s8 %v1430
    %v1432 = vlaneseq
    %v1433 = vshrl.u32 %v1432, 7
    %v1434 = vsub.s32 %v1431, %v1433
    %v1435 = vrot.slane %v1425, %v1434
    %v1437 = vunpack.c.l.s4 1966171168
    %v1438 = vunpack.c.0.s8 %v1437
    %v1439 = vlaneseq
    %v1440 = vshrl.u32 %v1439, 7
    %v1441 = vsub.s32 %v1438, %v1440
    %v1442 = vrot.slane %v1426, %v1441
    %v1444 = vunpack.c.l.s4 1966171168
    %v1445 = vunpack.c.0.s8 %v1444
    %v1446 = vlaneseq
    %v1447 = vshrl.u32 %v1446, 7
    %v1448 = vsub.s32 %v1445, %v1447
    %v1449 = vrot.slane %v1427, %v1448
    %v1451 = vunpack.c.l.s4 1966171168
    %v1452 = vunpack.c.0.s8 %v1451
    %v1453 = vlaneseq
    %v1454 = vshrl.u32 %v1453, 7
    %v1455 = vsub.s32 %v1452, %v1454
    %v1456 = vrot.slane %v1428, %v1455
    %v1457 = vcombine.low %v1435, %v1442
    %v1458 = vcombine.low %v1449, %v1456
    %v1460 = vunpack.c.l.s4 1966171168
    %v1461 = vunpack.c.0.s8 %v1460
    %v1462 = vlaneseq
    %v1463 = vshrl.u32 %v1462, 7
    %v1464 = vsub.s32 %v1461, %v1463
    %v1465 = vrot.slane %v1457, %v1464
    %v1467 = vunpack.c.l.s4 1966171168
    %v1468 = vunpack.c.0.s8 %v1467
    %v1469 = vlaneseq
    %v1470 = vshrl.u32 %v1469, 7
    %v1471 = vsub.s32 %v1468, %v1470
    %v1472 = vrot.slane %v1458, %v1471
    %v1473 = vcombine.low %v1465, %v1472
    %v1476 = vunpack.c.l.b16 %v1415
    %v1477 = vunpack.c.l.b16 %v1416
    %v1478 = vpack.c.b16 %v1477, %v1476
    %vm1480 = vcmask 130048
    %v1482 = vsel %vm1480, %v1473, 0
    %1484 = vmatprep.subr.bf16.mxu0 0
    %1485 = vmatpush1.bf16.msra.mxu0 0
    %1486 = vmatprep.subr.bf16.mxu0 0
    %1487 = vmatpush1.bf16.msra.mxu0 0
    %1488 = vmatprep.subr.bf16.mxu0 0
    %1489 = vmatpush1.bf16.msra.mxu0 0
    %1490 = vmatprep.subr.bf16.mxu0 0
    %1491 = vmatpush1.bf16.msra.mxu0 0
    %1492 = vmatprep.subr.bf16.mxu0 0
    %1493 = vmatpush1.bf16.msra.mxu0 0
    %1494 = vmatprep.subr.bf16.mxu0 0
    %1495 = vmatpush1.bf16.msra.mxu0 0
    %1496 = vmatprep.subr.bf16.mxu0 0
    %1497 = vmatpush1.bf16.msra.mxu0 0
    %1498 = vmatprep.subr.bf16.mxu0 0
    %1499 = vmatpush1.bf16.msra.mxu0 %v1478
    %1500 = vmatprep.subr.bf16.mxu0 0
    %1501 = vmatpush2.bf16.msra.mxu0 0
    %1502 = vmatprep.subr.bf16.mxu0 0
    %1503 = vmatpush2.bf16.msra.mxu0 0
    %1504 = vmatprep.subr.bf16.mxu0 0
    %1505 = vmatpush2.bf16.msra.mxu0 0
    %1506 = vmatprep.subr.bf16.mxu0 0
    %1507 = vmatpush2.bf16.msra.mxu0 0
    %1508 = vmatprep.subr.bf16.mxu0 0
    %1509 = vmatpush2.bf16.msra.mxu0 0
    %1510 = vmatprep.subr.bf16.mxu0 0
    %1511 = vmatpush2.bf16.msra.mxu0 0
    %1512 = vmatprep.subr.bf16.mxu0 0
    %1513 = vmatpush2.bf16.msra.mxu0 0
    %1514 = vmatprep.subr.bf16.mxu0 0
    %1515 = vmatpush2.bf16.msra.mxu0 0
    %1516 = vmatprep.mubr.bf16.mxu0 0
    %1517 = vmatmul.mubr.bf16.gmra.mxu0 %v1482
    %v1518 = vpop.f32.mrf.mxu0
    %v1519 = vadd.f32 0.0, %v1518
    %v1520 = vpop.f32.mrf.mxu0
    %v1521 = vpop.f32.mrf.mxu0
    %v1522 = vadd.f32 0.0, %v1521
    %v1523 = vpop.f32.mrf.mxu0
    %1524 = vdwg.mxu0
    %v1533 = vcombine.low %v1397, %v1398
    %v1534 = vcombine.low %v1399, %v1400
    %v1535 = vcombine.low %v1401, %v1402
    %v1536 = vcombine.low %v1403, %v1404
    %v1538 = vunpack.c.l.s4 1966171168
    %v1539 = vunpack.c.0.s8 %v1538
    %v1540 = vlaneseq
    %v1541 = vshrl.u32 %v1540, 7
    %v1542 = vsub.s32 %v1539, %v1541
    %v1543 = vrot.slane %v1533, %v1542
    %v1545 = vunpack.c.l.s4 1966171168
    %v1546 = vunpack.c.0.s8 %v1545
    %v1547 = vlaneseq
    %v1548 = vshrl.u32 %v1547, 7
    %v1549 = vsub.s32 %v1546, %v1548
    %v1550 = vrot.slane %v1534, %v1549
    %v1552 = vunpack.c.l.s4 1966171168
    %v1553 = vunpack.c.0.s8 %v1552
    %v1554 = vlaneseq
    %v1555 = vshrl.u32 %v1554, 7
    %v1556 = vsub.s32 %v1553, %v1555
    %v1557 = vrot.slane %v1535, %v1556
    %v1559 = vunpack.c.l.s4 1966171168
    %v1560 = vunpack.c.0.s8 %v1559
    %v1561 = vlaneseq
    %v1562 = vshrl.u32 %v1561, 7
    %v1563 = vsub.s32 %v1560, %v1562
    %v1564 = vrot.slane %v1536, %v1563
    %v1565 = vcombine.low %v1543, %v1550
    %v1566 = vcombine.low %v1557, %v1564
    %v1568 = vunpack.c.l.s4 1966171168
    %v1569 = vunpack.c.0.s8 %v1568
    %v1570 = vlaneseq
    %v1571 = vshrl.u32 %v1570, 7
    %v1572 = vsub.s32 %v1569, %v1571
    %v1573 = vrot.slane %v1565, %v1572
    %v1575 = vunpack.c.l.s4 1966171168
    %v1576 = vunpack.c.0.s8 %v1575
    %v1577 = vlaneseq
    %v1578 = vshrl.u32 %v1577, 7
    %v1579 = vsub.s32 %v1576, %v1578
    %v1580 = vrot.slane %v1566, %v1579
    %v1581 = vcombine.low %v1573, %v1580
    %v1584 = vunpack.c.l.b16 %v1413
    %v1585 = vunpack.c.l.b16 %v1414
    %v1586 = vpack.c.b16 %v1585, %v1584
    %v1589 = vsel %vm1480, %v1581, 0
    %1591 = vmatprep.subr.bf16.mxu0 0
    %1592 = vmatpush1.bf16.msra.mxu0 0
    %1593 = vmatprep.subr.bf16.mxu0 0
    %1594 = vmatpush1.bf16.msra.mxu0 0
    %1595 = vmatprep.subr.bf16.mxu0 0
    %1596 = vmatpush1.bf16.msra.mxu0 0
    %1597 = vmatprep.subr.bf16.mxu0 0
    %1598 = vmatpush1.bf16.msra.mxu0 0
    %1599 = vmatprep.subr.bf16.mxu0 0
    %1600 = vmatpush1.bf16.msra.mxu0 0
    %1601 = vmatprep.subr.bf16.mxu0 0
    %1602 = vmatpush1.bf16.msra.mxu0 0
    %1603 = vmatprep.subr.bf16.mxu0 0
    %1604 = vmatpush1.bf16.msra.mxu0 0
    %1605 = vmatprep.subr.bf16.mxu0 0
    %1606 = vmatpush1.bf16.msra.mxu0 %v1586
    %1607 = vmatprep.subr.bf16.mxu0 0
    %1608 = vmatpush2.bf16.msra.mxu0 0
    %1609 = vmatprep.subr.bf16.mxu0 0
    %1610 = vmatpush2.bf16.msra.mxu0 0
    %1611 = vmatprep.subr.bf16.mxu0 0
    %1612 = vmatpush2.bf16.msra.mxu0 0
    %1613 = vmatprep.subr.bf16.mxu0 0
    %1614 = vmatpush2.bf16.msra.mxu0 0
    %1615 = vmatprep.subr.bf16.mxu0 0
    %1616 = vmatpush2.bf16.msra.mxu0 0
    %1617 = vmatprep.subr.bf16.mxu0 0
    %1618 = vmatpush2.bf16.msra.mxu0 0
    %1619 = vmatprep.subr.bf16.mxu0 0
    %1620 = vmatpush2.bf16.msra.mxu0 0
    %1621 = vmatprep.subr.bf16.mxu0 0
    %1622 = vmatpush2.bf16.msra.mxu0 0
    %1623 = vmatprep.mubr.bf16.mxu0 0
    %1624 = vmatmul.mubr.bf16.gmra.mxu0 %v1589
    %v1625 = vpop.f32.mrf.mxu0
    %v1626 = vadd.f32 %v1519, %v1625
    %v1627 = vpop.f32.mrf.mxu0
    %v1628 = vpop.f32.mrf.mxu0
    %v1629 = vadd.f32 %v1522, %v1628
    %v1630 = vpop.f32.mrf.mxu0
    %1631 = vdwg.mxu0
    %v1632 = vld [vmem:[#allocation11] sm:$0x1]
    %v1634 = vlaneseq
    %v1635 = vshrl.u32 %v1634, 7
    %v1636 = vsub.s32 0, %v1635
    %v1637 = vrot.slane %v1632, %v1636
    %v1639 = vadd.f32 %v1626, %v1637
    %v1640 = vadd.f32 %v1629, %v1637
    %v1641 = vtanh.pop %v1639
    %v1642 = vtanh.pop %v1640
    %v1645 = vcombine.high %v1641, %v1641
    %v1647 = vunpack.c.l.s4 1983009808
    %v1648 = vunpack.c.0.s8 %v1647
    %v1649 = vlaneseq
    %v1650 = vshrl.u32 %v1649, 7
    %v1651 = vsub.s32 %v1648, %v1650
    %v1652 = vrot.slane %v1641, %v1651
    %v1654 = vunpack.c.l.s4 1983009808
    %v1655 = vunpack.c.0.s8 %v1654
    %v1656 = vlaneseq
    %v1657 = vshrl.u32 %v1656, 7
    %v1658 = vsub.s32 %v1655, %v1657
    %v1659 = vrot.slane %v1645, %v1658
    %v1660 = vcombine.high %v1652, %v1652
    %v1661 = vcombine.high %v1659, %v1659
    %v1662 = vcombine.high %v1642, %v1642
    %v1664 = vunpack.c.l.s4 1983009808
    %v1665 = vunpack.c.0.s8 %v1664
    %v1666 = vlaneseq
    %v1667 = vshrl.u32 %v1666, 7
    %v1668 = vsub.s32 %v1665, %v1667
    %v1669 = vrot.slane %v1642, %v1668
    %v1671 = vunpack.c.l.s4 1983009808
    %v1672 = vunpack.c.0.s8 %v1671
    %v1673 = vlaneseq
    %v1674 = vshrl.u32 %v1673, 7
    %v1675 = vsub.s32 %v1672, %v1674
    %v1676 = vrot.slane %v1662, %v1675
    %v1677 = vcombine.high %v1669, %v1669
    %v1678 = vcombine.high %v1676, %v1676
    %v1687 = vld [vmem:[#allocation12] sm:$0x1]
    %v1689 = vlaneseq
    %v1690 = vshrl.u32 %v1689, 7
    %v1691 = vsub.s32 0, %v1690
    %v1692 = vrot.slane %v1687, %v1691
    %v1694 = vmul.f32 %v1652, %v1692
    %v1695 = vmul.f32 %v1660, %v1692
    %v1696 = vmul.f32 %v1659, %v1692
    %v1697 = vmul.f32 %v1661, %v1692
    %v1698 = vmul.f32 %v1669, %v1692
    %v1699 = vmul.f32 %v1677, %v1692
    %v1700 = vmul.f32 %v1676, %v1692
    %v1701 = vmul.f32 %v1678, %v1692
    %vm1702 = vcmask 123904
    %v1703 = vsel %vm1702, %v1694, 0.0
    %1704 = vadd.xlane.f32.xlu0 %v1703
    %v1705 = vpop.xlane.xlu0 %1704
    %v1706 = vsel %vm1702, %v1695, 0.0
    %1707 = vadd.xlane.f32.xlu0 %v1706
    %v1708 = vpop.xlane.xlu0 %1707
    %v1709 = vsel %vm1702, %v1696, 0.0
    %1710 = vadd.xlane.f32.xlu0 %v1709
    %v1711 = vpop.xlane.xlu0 %1710
    %v1712 = vsel %vm1702, %v1697, 0.0
    %1713 = vadd.xlane.f32.xlu0 %v1712
    %v1714 = vpop.xlane.xlu0 %1713
    %v1715 = vsel %vm1702, %v1698, 0.0
    %1716 = vadd.xlane.f32.xlu0 %v1715
    %v1717 = vpop.xlane.xlu0 %1716
    %v1718 = vsel %vm1702, %v1699, 0.0
    %1719 = vadd.xlane.f32.xlu0 %v1718
    %v1720 = vpop.xlane.xlu0 %1719
    %v1721 = vsel %vm1702, %v1700, 0.0
    %1722 = vadd.xlane.f32.xlu0 %v1721
    %v1723 = vpop.xlane.xlu0 %1722
    %v1724 = vsel %vm1702, %v1701, 0.0
    %1725 = vadd.xlane.f32.xlu0 %v1724
    %v1726 = vpop.xlane.xlu0 %1725
    %vm1727 = vcmp.gt.s32.totalorder %v104, 0
    %vm1728 = vcmp.gt.s32.totalorder %v104, 1
    %vm1729 = vcmp.gt.s32.totalorder %v104, 2
    %vm1730 = vcmp.gt.s32.totalorder %v104, 3
    %vm1731 = vcmp.gt.s32.totalorder %v104, 4
    %vm1732 = vcmp.gt.s32.totalorder %v104, 5
    %vm1733 = vcmp.gt.s32.totalorder %v104, 6
    %vm1734 = vcmp.gt.s32.totalorder %v104, 7
    %v1735 = vsel %vm1727, %v1705, -1e+30
    %v1736 = vsel %vm1728, %v1708, -1e+30
    %v1737 = vsel %vm1729, %v1711, -1e+30
    %v1738 = vsel %vm1730, %v1714, -1e+30
    %v1739 = vsel %vm1731, %v1717, -1e+30
    %v1740 = vsel %vm1732, %v1720, -1e+30
    %v1741 = vsel %vm1733, %v1723, -1e+30
    %v1742 = vsel %vm1734, %v1726, -1e+30
    %vm1743 = vcmask 1024
    %v1744 = vsel %vm1743, %v1735, -inf
    %v1745 = vsel %vm1743, %v1736, -inf
    %v1746 = vsel %vm1743, %v1737, -inf
    %v1747 = vsel %vm1743, %v1738, -inf
    %v1748 = vsel %vm1743, %v1739, -inf
    %v1749 = vmax.f32 %v1744, %v1748
    %v1750 = vsel %vm1743, %v1740, -inf
    %v1751 = vmax.f32 %v1745, %v1750
    %v1752 = vsel %vm1743, %v1741, -inf
    %v1753 = vmax.f32 %v1746, %v1752
    %v1754 = vsel %vm1743, %v1742, -inf
    %v1755 = vmax.f32 %v1747, %v1754
    %v1756 = vmax.f32 %v1749, %v1751
    %v1757 = vmax.f32 %v1753, %v1755
    %v1758 = vmax.f32 %v1756, %v1757
    %v1759 = vsub.f32 %v1735, %v1758
    %v1760 = vsub.f32 %v1736, %v1758
    %v1761 = vsub.f32 %v1737, %v1758
    %v1762 = vsub.f32 %v1738, %v1758
    %v1763 = vsub.f32 %v1739, %v1758
    %v1764 = vsub.f32 %v1740, %v1758
    %v1765 = vsub.f32 %v1741, %v1758
    %v1766 = vsub.f32 %v1742, %v1758
    %v1767 = vmul.f32 %v1759, 1.442695
    %v1768 = vpow.pop %v1767
    %v1769 = vmul.f32 %v1760, 1.442695
    %v1770 = vpow.pop %v1769
    %v1771 = vmul.f32 %v1761, 1.442695
    %v1772 = vpow.pop %v1771
    %v1773 = vmul.f32 %v1762, 1.442695
    %v1774 = vpow.pop %v1773
    %v1775 = vmul.f32 %v1763, 1.442695
    %v1776 = vpow.pop %v1775
    %v1777 = vmul.f32 %v1764, 1.442695
    %v1778 = vpow.pop %v1777
    %v1779 = vmul.f32 %v1765, 1.442695
    %v1780 = vpow.pop %v1779
    %v1781 = vmul.f32 %v1766, 1.442695
    %v1782 = vpow.pop %v1781
    %v1783 = vsel %vm1743, %v1768, 0.0
    %v1784 = vsel %vm1743, %v1770, 0.0
    %v1785 = vadd.f32 %v1783, %v1784
    %v1786 = vsel %vm1743, %v1772, 0.0
    %v1787 = vadd.f32 %v1785, %v1786
    %v1788 = vsel %vm1743, %v1774, 0.0
    %v1789 = vadd.f32 %v1787, %v1788
    %v1790 = vsel %vm1743, %v1776, 0.0
    %v1791 = vadd.f32 %v1789, %v1790
    %v1792 = vsel %vm1743, %v1778, 0.0
    %v1793 = vadd.f32 %v1791, %v1792
    %v1794 = vsel %vm1743, %v1780, 0.0
    %v1795 = vadd.f32 %v1793, %v1794
    %v1796 = vsel %vm1743, %v1782, 0.0
    %v1797 = vadd.f32 %v1795, %v1796
    %v1798 = vrcp.pop %v1797
    %v1799 = vmul.f32 %v1768, %v1798
    %v1800 = vmul.f32 %v1770, %v1798
    %v1801 = vmul.f32 %v1772, %v1798
    %v1802 = vmul.f32 %v1774, %v1798
    %v1803 = vmul.f32 %v1776, %v1798
    %v1804 = vmul.f32 %v1778, %v1798
    %v1805 = vmul.f32 %v1780, %v1798
    %v1806 = vmul.f32 %v1782, %v1798
    %1807 = vst.msk [vmem:[#allocation6] sm:$0x3] %vm1743, %v1799
    %1808 = vst.msk [vmem:[#allocation6 + $0x2] sm:$0x3] %vm1743, %v1800
    %1809 = vst.msk [vmem:[#allocation6 + $0x4] sm:$0x3] %vm1743, %v1801
    %1810 = vst.msk [vmem:[#allocation6 + $0x6] sm:$0x3] %vm1743, %v1802
    %1811 = vst.msk [vmem:[#allocation6 + $0x8] sm:$0x3] %vm1743, %v1803
    %1812 = vst.msk [vmem:[#allocation6 + $0xa] sm:$0x3] %vm1743, %v1804
    %1813 = vst.msk [vmem:[#allocation6 + $0xc] sm:$0x3] %vm1743, %v1805
    %1814 = vst.msk [vmem:[#allocation6 + $0xe] sm:$0x3] %vm1743, %v1806
    %s1815 = smul.u32 0, 2
    %s1816 = scalar_lea.vmem [#allocation6], %s1815
    %v1817 = vld [vmem:[%s1816] sm:$0x3]
    %v1818 = vld [vmem:[%s1816 + $0x2] sm:$0x3]
    %v1819 = vld [vmem:[%s1816 + $0x4] sm:$0x3]
    %v1820 = vld [vmem:[%s1816 + $0x6] sm:$0x3]
    %v1821 = vld [vmem:[%s1816 + $0x8] sm:$0x3]
    %v1822 = vld [vmem:[%s1816 + $0xa] sm:$0x3]
    %v1823 = vld [vmem:[%s1816 + $0xc] sm:$0x3]
    %v1824 = vld [vmem:[%s1816 + $0xe] sm:$0x3]
    %v1825 = vld [vmem:[#allocation4] sm:$0x1]
    %v1826 = vld [vmem:[#allocation4 + $0x1] sm:$0x1]
    %v1827 = vld [vmem:[#allocation4 + $0x2] sm:$0x1]
    %v1828 = vld [vmem:[#allocation4 + $0x3] sm:$0x1]
    %v1829 = vld [vmem:[#allocation4 + $0x4] sm:$0x1]
    %v1830 = vld [vmem:[#allocation4 + $0x5] sm:$0x1]
    %v1831 = vld [vmem:[#allocation4 + $0x6] sm:$0x1]
    %v1832 = vld [vmem:[#allocation4 + $0x7] sm:$0x1]
    %v1833 = vunpack.c.l.bf16 %v1825
    %v1834 = vunpack.c.l.bf16 %v1826
    %v1835 = vunpack.c.l.bf16 %v1827
    %v1836 = vunpack.c.l.bf16 %v1828
    %v1837 = vunpack.c.l.bf16 %v1829
    %v1838 = vunpack.c.l.bf16 %v1830
    %v1839 = vunpack.c.l.bf16 %v1831
    %v1840 = vunpack.c.l.bf16 %v1832
    %v1841 = vld [vmem:[#allocation5] sm:$0x1]
    %v1842 = vld [vmem:[#allocation5 + $0x1] sm:$0x1]
    %v1843 = vld [vmem:[#allocation5 + $0x2] sm:$0x1]
    %v1844 = vld [vmem:[#allocation5 + $0x3] sm:$0x1]
    %v1845 = vld [vmem:[#allocation5 + $0x4] sm:$0x1]
    %v1846 = vld [vmem:[#allocation5 + $0x5] sm:$0x1]
    %v1847 = vld [vmem:[#allocation5 + $0x6] sm:$0x1]
    %v1848 = vld [vmem:[#allocation5 + $0x7] sm:$0x1]
    %v1849 = vunpack.c.l.bf16 %v1841
    %v1850 = vunpack.c.l.bf16 %v1842
    %v1851 = vunpack.c.l.bf16 %v1843
    %v1852 = vunpack.c.l.bf16 %v1844
    %v1853 = vunpack.c.l.bf16 %v1845
    %v1854 = vunpack.c.l.bf16 %v1846
    %v1855 = vunpack.c.l.bf16 %v1847
    %v1856 = vunpack.c.l.bf16 %v1848
    %1858 = vset.pattern.permute.xlu0 0
    %1859 = vperm.xlu0 %1858, %v1817
    %v1860 = vpop.permute.xlu0 %1859
    %1863 = vset.pattern.permute.xlu0 0
    %1864 = vperm.xlu0 %1863, %v1818
    %v1865 = vpop.permute.xlu0 %1864
    %1868 = vset.pattern.permute.xlu0 0
    %1869 = vperm.xlu0 %1868, %v1819
    %v1870 = vpop.permute.xlu0 %1869
    %1873 = vset.pattern.permute.xlu0 0
    %1874 = vperm.xlu0 %1873, %v1820
    %v1875 = vpop.permute.xlu0 %1874
    %1878 = vset.pattern.permute.xlu0 0
    %1879 = vperm.xlu0 %1878, %v1821
    %v1880 = vpop.permute.xlu0 %1879
    %1883 = vset.pattern.permute.xlu0 0
    %1884 = vperm.xlu0 %1883, %v1822
    %v1885 = vpop.permute.xlu0 %1884
    %1888 = vset.pattern.permute.xlu0 0
    %1889 = vperm.xlu0 %1888, %v1823
    %v1890 = vpop.permute.xlu0 %1889
    %1893 = vset.pattern.permute.xlu0 0
    %1894 = vperm.xlu0 %1893, %v1824
    %v1895 = vpop.permute.xlu0 %1894
    %v1897 = vmul.f32 %v1860, %v1833
    %v1898 = vmul.f32 %v1865, %v1834
    %v1899 = vmul.f32 %v1870, %v1835
    %v1900 = vmul.f32 %v1875, %v1836
    %v1901 = vmul.f32 %v1880, %v1837
    %v1902 = vmul.f32 %v1885, %v1838
    %v1903 = vmul.f32 %v1890, %v1839
    %v1904 = vmul.f32 %v1895, %v1840
    %v1905 = vsel %vm1702, %v1897, 0.0
    %v1906 = vsel %vm1702, %v1898, 0.0
    %v1907 = vadd.f32 %v1905, %v1906
    %v1908 = vsel %vm1702, %v1899, 0.0
    %v1909 = vadd.f32 %v1907, %v1908
    %v1910 = vsel %vm1702, %v1900, 0.0
    %v1911 = vadd.f32 %v1909, %v1910
    %v1912 = vsel %vm1702, %v1901, 0.0
    %v1913 = vadd.f32 %v1911, %v1912
    %v1914 = vsel %vm1702, %v1902, 0.0
    %v1915 = vadd.f32 %v1913, %v1914
    %v1916 = vsel %vm1702, %v1903, 0.0
    %v1917 = vadd.f32 %v1915, %v1916
    %v1918 = vsel %vm1702, %v1904, 0.0
    %v1919 = vadd.f32 %v1917, %v1918
    %v1920 = vadd.f32 %v1919, 0.0
    %v1921 = vmul.f32 %v1860, %v1849
    %v1922 = vmul.f32 %v1865, %v1850
    %v1923 = vmul.f32 %v1870, %v1851
    %v1924 = vmul.f32 %v1875, %v1852
    %v1925 = vmul.f32 %v1880, %v1853
    %v1926 = vmul.f32 %v1885, %v1854
    %v1927 = vmul.f32 %v1890, %v1855
    %v1928 = vmul.f32 %v1895, %v1856
    %v1929 = vsel %vm1702, %v1921, 0.0
    %v1930 = vsel %vm1702, %v1922, 0.0
    %v1931 = vadd.f32 %v1929, %v1930
    %v1932 = vsel %vm1702, %v1923, 0.0
    %v1933 = vadd.f32 %v1931, %v1932
    %v1934 = vsel %vm1702, %v1924, 0.0
    %v1935 = vadd.f32 %v1933, %v1934
    %v1936 = vsel %vm1702, %v1925, 0.0
    %v1937 = vadd.f32 %v1935, %v1936
    %v1938 = vsel %vm1702, %v1926, 0.0
    %v1939 = vadd.f32 %v1937, %v1938
    %v1940 = vsel %vm1702, %v1927, 0.0
    %v1941 = vadd.f32 %v1939, %v1940
    %v1942 = vsel %vm1702, %v1928, 0.0
    %v1943 = vadd.f32 %v1941, %v1942
    %v1944 = vadd.f32 %v1943, 0.0
    %v1945 = vpack.c.bf16 %v1920, %v1920
    %v1946 = vld [vmem:[%s9] sm:$0xf]
    %v1947 = vld [vmem:[%s9 + $0x4] sm:$0xf]
    %v1948 = vpack.c.bf16 %v1944, %v1944
    %v1949 = vld [vmem:[%s10] sm:$0xf]
    %v1950 = vld [vmem:[%s10 + $0x4] sm:$0xf]
    %v1953 = vunpack.c.l.b16 %v1949
    %v1954 = vunpack.c.l.b16 %v1950
    %v1955 = vpack.c.b16 %v1954, %v1953
    %v1958 = vsel %vm1480, %v1948, 0
    %1960 = vmatprep.subr.bf16.mxu0 0
    %1961 = vmatpush1.bf16.msra.mxu0 0
    %1962 = vmatprep.subr.bf16.mxu0 0
    %1963 = vmatpush1.bf16.msra.mxu0 0
    %1964 = vmatprep.subr.bf16.mxu0 0
    %1965 = vmatpush1.bf16.msra.mxu0 0
    %1966 = vmatprep.subr.bf16.mxu0 0
    %1967 = vmatpush1.bf16.msra.mxu0 0
    %1968 = vmatprep.subr.bf16.mxu0 0
    %1969 = vmatpush1.bf16.msra.mxu0 0
    %1970 = vmatprep.subr.bf16.mxu0 0
    %1971 = vmatpush1.bf16.msra.mxu0 0
    %1972 = vmatprep.subr.bf16.mxu0 0
    %1973 = vmatpush1.bf16.msra.mxu0 0
    %1974 = vmatprep.subr.bf16.mxu0 0
    %1975 = vmatpush1.bf16.msra.mxu0 %v1955
    %1976 = vmatprep.subr.bf16.mxu0 0
    %1977 = vmatpush2.bf16.msra.mxu0 0
    %1978 = vmatprep.subr.bf16.mxu0 0
    %1979 = vmatpush2.bf16.msra.mxu0 0
    %1980 = vmatprep.subr.bf16.mxu0 0
    %1981 = vmatpush2.bf16.msra.mxu0 0
    %1982 = vmatprep.subr.bf16.mxu0 0
    %1983 = vmatpush2.bf16.msra.mxu0 0
    %1984 = vmatprep.subr.bf16.mxu0 0
    %1985 = vmatpush2.bf16.msra.mxu0 0
    %1986 = vmatprep.subr.bf16.mxu0 0
    %1987 = vmatpush2.bf16.msra.mxu0 0
    %1988 = vmatprep.subr.bf16.mxu0 0
    %1989 = vmatpush2.bf16.msra.mxu0 0
    %1990 = vmatprep.subr.bf16.mxu0 0
    %1991 = vmatpush2.bf16.msra.mxu0 0
    %1992 = vmatprep.mubr.bf16.mxu0 0
    %1993 = vmatmul.mubr.bf16.gmra.mxu0 %v1958
    %v1994 = vpop.f32.mrf.mxu0
    %v1995 = vadd.f32 0.0, %v1994
    %v1996 = vpop.f32.mrf.mxu0
    %v1997 = vpop.f32.mrf.mxu0
    %v1998 = vpop.f32.mrf.mxu0
    %1999 = vdwg.mxu0
    %v2002 = vunpack.c.l.b16 %v1946
    %v2003 = vunpack.c.l.b16 %v1947
    %v2004 = vpack.c.b16 %v2003, %v2002
    %v2007 = vsel %vm1480, %v1945, 0
    %2009 = vmatprep.subr.bf16.mxu0 0
    %2010 = vmatpush1.bf16.msra.mxu0 0
    %2011 = vmatprep.subr.bf16.mxu0 0
    %2012 = vmatpush1.bf16.msra.mxu0 0
    %2013 = vmatprep.subr.bf16.mxu0 0
    %2014 = vmatpush1.bf16.msra.mxu0 0
    %2015 = vmatprep.subr.bf16.mxu0 0
    %2016 = vmatpush1.bf16.msra.mxu0 0
    %2017 = vmatprep.subr.bf16.mxu0 0
    %2018 = vmatpush1.bf16.msra.mxu0 0
    %2019 = vmatprep.subr.bf16.mxu0 0
    %2020 = vmatpush1.bf16.msra.mxu0 0
    %2021 = vmatprep.subr.bf16.mxu0 0
    %2022 = vmatpush1.bf16.msra.mxu0 0
    %2023 = vmatprep.subr.bf16.mxu0 0
    %2024 = vmatpush1.bf16.msra.mxu0 %v2004
    %2025 = vmatprep.subr.bf16.mxu0 0
    %2026 = vmatpush2.bf16.msra.mxu0 0
    %2027 = vmatprep.subr.bf16.mxu0 0
    %2028 = vmatpush2.bf16.msra.mxu0 0
    %2029 = vmatprep.subr.bf16.mxu0 0
    %2030 = vmatpush2.bf16.msra.mxu0 0
    %2031 = vmatprep.subr.bf16.mxu0 0
    %2032 = vmatpush2.bf16.msra.mxu0 0
    %2033 = vmatprep.subr.bf16.mxu0 0
    %2034 = vmatpush2.bf16.msra.mxu0 0
    %2035 = vmatprep.subr.bf16.mxu0 0
    %2036 = vmatpush2.bf16.msra.mxu0 0
    %2037 = vmatprep.subr.bf16.mxu0 0
    %2038 = vmatpush2.bf16.msra.mxu0 0
    %2039 = vmatprep.subr.bf16.mxu0 0
    %2040 = vmatpush2.bf16.msra.mxu0 0
    %2041 = vmatprep.mubr.bf16.mxu0 0
    %2042 = vmatmul.mubr.bf16.gmra.mxu0 %v2007
    %v2043 = vpop.f32.mrf.mxu0
    %v2044 = vadd.f32 %v1995, %v2043
    %v2045 = vpop.f32.mrf.mxu0
    %v2046 = vpop.f32.mrf.mxu0
    %v2047 = vpop.f32.mrf.mxu0
    %2048 = vdwg.mxu0
    %v2051 = vcombine.high %v1626, %v1626
    %v2053 = vunpack.c.l.s4 1983009808
    %v2054 = vunpack.c.0.s8 %v2053
    %v2055 = vlaneseq
    %v2056 = vshrl.u32 %v2055, 7
    %v2057 = vsub.s32 %v2054, %v2056
    %v2058 = vrot.slane %v1626, %v2057
    %v2060 = vunpack.c.l.s4 1983009808
    %v2061 = vunpack.c.0.s8 %v2060
    %v2062 = vlaneseq
    %v2063 = vshrl.u32 %v2062, 7
    %v2064 = vsub.s32 %v2061, %v2063
    %v2065 = vrot.slane %v2051, %v2064
    %v2066 = vcombine.high %v2058, %v2058
    %v2067 = vcombine.high %v2065, %v2065
    %v2068 = vcombine.high %v1629, %v1629
    %v2070 = vunpack.c.l.s4 1983009808
    %v2071 = vunpack.c.0.s8 %v2070
    %v2072 = vlaneseq
    %v2073 = vshrl.u32 %v2072, 7
    %v2074 = vsub.s32 %v2071, %v2073
    %v2075 = vrot.slane %v1629, %v2074
    %v2077 = vunpack.c.l.s4 1983009808
    %v2078 = vunpack.c.0.s8 %v2077
    %v2079 = vlaneseq
    %v2080 = vshrl.u32 %v2079, 7
    %v2081 = vsub.s32 %v2078, %v2080
    %v2082 = vrot.slane %v2068, %v2081
    %v2083 = vcombine.high %v2075, %v2075
    %v2084 = vcombine.high %v2082, %v2082
    %v2095 = vunpack.c.l.s4 1983009808
    %v2096 = vunpack.c.0.s8 %v2095
    %v2097 = vlaneseq
    %v2098 = vshrl.u32 %v2097, 7
    %v2099 = vsub.s32 %v2096, %v2098
    %v2100 = vrot.slane %v2044, %v2099
    %2101 = vrot.lane.b32.xlu0 %v2100, 16
    %v2102 = vpop.permute.xlu0 %2101
    %v2104 = vadd.f32 %v2058, %v2102
    %v2105 = vadd.f32 %v2066, %v2102
    %v2106 = vadd.f32 %v2065, %v2102
    %v2107 = vadd.f32 %v2067, %v2102
    %v2108 = vadd.f32 %v2075, %v2102
    %v2109 = vadd.f32 %v2083, %v2102
    %v2110 = vadd.f32 %v2082, %v2102
    %v2111 = vadd.f32 %v2084, %v2102
    %v2112 = vld [vmem:[#allocation14] sm:$0x1]
    %v2114 = vlaneseq
    %v2115 = vshrl.u32 %v2114, 7
    %v2116 = vsub.s32 0, %v2115
    %v2117 = vrot.slane %v2112, %v2116
    %v2119 = vunpack.c.l.s4 1983009808
    %v2120 = vunpack.c.0.s8 %v2119
    %v2121 = vlaneseq
    %v2122 = vshrl.u32 %v2121, 7
    %v2123 = vsub.s32 %v2120, %v2122
    %v2124 = vrot.slane %v2117, %v2123
    %2125 = vrot.lane.b32.xlu0 %v2124, 16
    %v2126 = vpop.permute.xlu0 %2125
    %v2128 = vadd.f32 %v2104, %v2126
    %v2129 = vadd.f32 %v2105, %v2126
    %v2130 = vadd.f32 %v2106, %v2126
    %v2131 = vadd.f32 %v2107, %v2126
    %v2132 = vadd.f32 %v2108, %v2126
    %v2133 = vadd.f32 %v2109, %v2126
    %v2134 = vadd.f32 %v2110, %v2126
    %v2135 = vadd.f32 %v2111, %v2126
    %vm2136 = vcmask 140416
    %v2137 = vsel %vm2136, %v2128, -inf
    %2138 = vmax.xlane.f32.xlu0 %v2137
    %v2139 = vpop.xlane.xlu0 %2138
    %v2140 = vsel %vm2136, %v2129, -inf
    %2141 = vmax.xlane.f32.xlu0 %v2140
    %v2142 = vpop.xlane.xlu0 %2141
    %v2143 = vsel %vm2136, %v2130, -inf
    %2144 = vmax.xlane.f32.xlu0 %v2143
    %v2145 = vpop.xlane.xlu0 %2144
    %v2146 = vsel %vm2136, %v2131, -inf
    %2147 = vmax.xlane.f32.xlu0 %v2146
    %v2148 = vpop.xlane.xlu0 %2147
    %v2149 = vsel %vm2136, %v2132, -inf
    %2150 = vmax.xlane.f32.xlu0 %v2149
    %v2151 = vpop.xlane.xlu0 %2150
    %v2152 = vsel %vm2136, %v2133, -inf
    %2153 = vmax.xlane.f32.xlu0 %v2152
    %v2154 = vpop.xlane.xlu0 %2153
    %v2155 = vsel %vm2136, %v2134, -inf
    %2156 = vmax.xlane.f32.xlu0 %v2155
    %v2157 = vpop.xlane.xlu0 %2156
    %v2158 = vsel %vm2136, %v2135, -inf
    %2159 = vmax.xlane.f32.xlu0 %v2158
    %v2160 = vpop.xlane.xlu0 %2159
    %v2161 = vsub.f32 %v2128, %v2139
    %v2162 = vsub.f32 %v2129, %v2142
    %v2163 = vsub.f32 %v2130, %v2145
    %v2164 = vsub.f32 %v2131, %v2148
    %v2165 = vsub.f32 %v2132, %v2151
    %v2166 = vsub.f32 %v2133, %v2154
    %v2167 = vsub.f32 %v2134, %v2157
    %v2168 = vsub.f32 %v2135, %v2160
    %v2169 = vmul.f32 %v2161, 1.442695
    %v2170 = vpow.pop %v2169
    %v2171 = vmul.f32 %v2162, 1.442695
    %v2172 = vpow.pop %v2171
    %v2173 = vmul.f32 %v2163, 1.442695
    %v2174 = vpow.pop %v2173
    %v2175 = vmul.f32 %v2164, 1.442695
    %v2176 = vpow.pop %v2175
    %v2177 = vmul.f32 %v2165, 1.442695
    %v2178 = vpow.pop %v2177
    %v2179 = vmul.f32 %v2166, 1.442695
    %v2180 = vpow.pop %v2179
    %v2181 = vmul.f32 %v2167, 1.442695
    %v2182 = vpow.pop %v2181
    %v2183 = vmul.f32 %v2168, 1.442695
    %v2184 = vpow.pop %v2183
    %v2194 = vunpack.c.l.s4 1983009808
    %v2195 = vunpack.c.0.s8 %v2194
    %v2196 = vlaneseq
    %v2197 = vshrl.u32 %v2196, 7
    %v2198 = vsub.s32 %v2195, %v2197
    %v2199 = vrot.slane %v2170, %v2198
    %v2201 = vunpack.c.l.s4 1983009808
    %v2202 = vunpack.c.0.s8 %v2201
    %v2203 = vlaneseq
    %v2204 = vshrl.u32 %v2203, 7
    %v2205 = vsub.s32 %v2202, %v2204
    %v2206 = vrot.slane %v2172, %v2205
    %v2208 = vunpack.c.l.s4 1983009808
    %v2209 = vunpack.c.0.s8 %v2208
    %v2210 = vlaneseq
    %v2211 = vshrl.u32 %v2210, 7
    %v2212 = vsub.s32 %v2209, %v2211
    %v2213 = vrot.slane %v2174, %v2212
    %v2215 = vunpack.c.l.s4 1983009808
    %v2216 = vunpack.c.0.s8 %v2215
    %v2217 = vlaneseq
    %v2218 = vshrl.u32 %v2217, 7
    %v2219 = vsub.s32 %v2216, %v2218
    %v2220 = vrot.slane %v2176, %v2219
    %v2222 = vunpack.c.l.s4 1983009808
    %v2223 = vunpack.c.0.s8 %v2222
    %v2224 = vlaneseq
    %v2225 = vshrl.u32 %v2224, 7
    %v2226 = vsub.s32 %v2223, %v2225
    %v2227 = vrot.slane %v2178, %v2226
    %v2229 = vunpack.c.l.s4 1983009808
    %v2230 = vunpack.c.0.s8 %v2229
    %v2231 = vlaneseq
    %v2232 = vshrl.u32 %v2231, 7
    %v2233 = vsub.s32 %v2230, %v2232
    %v2234 = vrot.slane %v2180, %v2233
    %v2236 = vunpack.c.l.s4 1983009808
    %v2237 = vunpack.c.0.s8 %v2236
    %v2238 = vlaneseq
    %v2239 = vshrl.u32 %v2238, 7
    %v2240 = vsub.s32 %v2237, %v2239
    %v2241 = vrot.slane %v2182, %v2240
    %v2243 = vunpack.c.l.s4 1983009808
    %v2244 = vunpack.c.0.s8 %v2243
    %v2245 = vlaneseq
    %v2246 = vshrl.u32 %v2245, 7
    %v2247 = vsub.s32 %v2244, %v2246
    %v2248 = vrot.slane %v2184, %v2247
    %2249 = vrot.lane.b32.xlu0 %v2199, 112
    %v2250 = vpop.permute.xlu0 %2249
    %2251 = vrot.lane.b32.xlu0 %v2206, 112
    %v2252 = vpop.permute.xlu0 %2251
    %2253 = vrot.lane.b32.xlu0 %v2213, 112
    %v2254 = vpop.permute.xlu0 %2253
    %2255 = vrot.lane.b32.xlu0 %v2220, 112
    %v2256 = vpop.permute.xlu0 %2255
    %2257 = vrot.lane.b32.xlu0 %v2227, 112
    %v2258 = vpop.permute.xlu0 %2257
    %2259 = vrot.lane.b32.xlu0 %v2234, 112
    %v2260 = vpop.permute.xlu0 %2259
    %2261 = vrot.lane.b32.xlu0 %v2241, 112
    %v2262 = vpop.permute.xlu0 %2261
    %2263 = vrot.lane.b32.xlu0 %v2248, 112
    %v2264 = vpop.permute.xlu0 %2263
    %vm2273 = vcmask 9216
    %v2274 = vsel %vm2273, %v2250, 0.0
    %2275 = vadd.xlane.f32.xlu0 %v2274
    %v2276 = vpop.xlane.xlu0 %2275
    %v2277 = vsel %vm2273, %v2252, 0.0
    %2278 = vadd.xlane.f32.xlu0 %v2277
    %v2279 = vpop.xlane.xlu0 %2278
    %v2280 = vsel %vm2273, %v2254, 0.0
    %2281 = vadd.xlane.f32.xlu0 %v2280
    %v2282 = vpop.xlane.xlu0 %2281
    %v2283 = vsel %vm2273, %v2256, 0.0
    %2284 = vadd.xlane.f32.xlu0 %v2283
    %v2285 = vpop.xlane.xlu0 %2284
    %v2286 = vsel %vm2273, %v2258, 0.0
    %2287 = vadd.xlane.f32.xlu0 %v2286
    %v2288 = vpop.xlane.xlu0 %2287
    %v2289 = vsel %vm2273, %v2260, 0.0
    %2290 = vadd.xlane.f32.xlu0 %v2289
    %v2291 = vpop.xlane.xlu0 %2290
    %v2292 = vsel %vm2273, %v2262, 0.0
    %2293 = vadd.xlane.f32.xlu0 %v2292
    %v2294 = vpop.xlane.xlu0 %2293
    %v2295 = vsel %vm2273, %v2264, 0.0
    %2296 = vadd.xlane.f32.xlu0 %v2295
    %v2297 = vpop.xlane.xlu0 %2296
    %v2298 = vlog2.pop %v2276
    %v2299 = vmul.f32 %v2298, 0.6931472
    %v2300 = vlog2.pop %v2279
    %v2301 = vmul.f32 %v2300, 0.6931472
    %v2302 = vlog2.pop %v2282
    %v2303 = vmul.f32 %v2302, 0.6931472
    %v2304 = vlog2.pop %v2285
    %v2305 = vmul.f32 %v2304, 0.6931472
    %v2306 = vlog2.pop %v2288
    %v2307 = vmul.f32 %v2306, 0.6931472
    %v2308 = vlog2.pop %v2291
    %v2309 = vmul.f32 %v2308, 0.6931472
    %v2310 = vlog2.pop %v2294
    %v2311 = vmul.f32 %v2310, 0.6931472
    %v2312 = vlog2.pop %v2297
    %v2313 = vmul.f32 %v2312, 0.6931472
    %v2314 = vsub.f32 %v2161, %v2299
    %v2315 = vsub.f32 %v2162, %v2301
    %v2316 = vsub.f32 %v2163, %v2303
    %v2317 = vsub.f32 %v2164, %v2305
    %v2318 = vsub.f32 %v2165, %v2307
    %v2319 = vsub.f32 %v2166, %v2309
    %v2320 = vsub.f32 %v2167, %v2311
    %v2321 = vsub.f32 %v2168, %v2313
    %v2331 = vunpack.c.l.s4 1983009808
    %v2332 = vunpack.c.0.s8 %v2331
    %v2333 = vlaneseq
    %v2334 = vshrl.u32 %v2333, 7
    %v2335 = vsub.s32 %v2332, %v2334
    %v2336 = vrot.slane %v2314, %v2335
    %v2338 = vunpack.c.l.s4 1983009808
    %v2339 = vunpack.c.0.s8 %v2338
    %v2340 = vlaneseq
    %v2341 = vshrl.u32 %v2340, 7
    %v2342 = vsub.s32 %v2339, %v2341
    %v2343 = vrot.slane %v2315, %v2342
    %v2345 = vunpack.c.l.s4 1983009808
    %v2346 = vunpack.c.0.s8 %v2345
    %v2347 = vlaneseq
    %v2348 = vshrl.u32 %v2347, 7
    %v2349 = vsub.s32 %v2346, %v2348
    %v2350 = vrot.slane %v2316, %v2349
    %v2352 = vunpack.c.l.s4 1983009808
    %v2353 = vunpack.c.0.s8 %v2352
    %v2354 = vlaneseq
    %v2355 = vshrl.u32 %v2354, 7
    %v2356 = vsub.s32 %v2353, %v2355
    %v2357 = vrot.slane %v2317, %v2356
    %v2359 = vunpack.c.l.s4 1983009808
    %v2360 = vunpack.c.0.s8 %v2359
    %v2361 = vlaneseq
    %v2362 = vshrl.u32 %v2361, 7
    %v2363 = vsub.s32 %v2360, %v2362
    %v2364 = vrot.slane %v2318, %v2363
    %v2366 = vunpack.c.l.s4 1983009808
    %v2367 = vunpack.c.0.s8 %v2366
    %v2368 = vlaneseq
    %v2369 = vshrl.u32 %v2368, 7
    %v2370 = vsub.s32 %v2367, %v2369
    %v2371 = vrot.slane %v2319, %v2370
    %v2373 = vunpack.c.l.s4 1983009808
    %v2374 = vunpack.c.0.s8 %v2373
    %v2375 = vlaneseq
    %v2376 = vshrl.u32 %v2375, 7
    %v2377 = vsub.s32 %v2374, %v2376
    %v2378 = vrot.slane %v2320, %v2377
    %v2380 = vunpack.c.l.s4 1983009808
    %v2381 = vunpack.c.0.s8 %v2380
    %v2382 = vlaneseq
    %v2383 = vshrl.u32 %v2382, 7
    %v2384 = vsub.s32 %v2381, %v2383
    %v2385 = vrot.slane %v2321, %v2384
    %2386 = vrot.lane.b32.xlu0 %v2336, 112
    %v2387 = vpop.permute.xlu0 %2386
    %2388 = vrot.lane.b32.xlu0 %v2343, 112
    %v2389 = vpop.permute.xlu0 %2388
    %2390 = vrot.lane.b32.xlu0 %v2350, 112
    %v2391 = vpop.permute.xlu0 %2390
    %2392 = vrot.lane.b32.xlu0 %v2357, 112
    %v2393 = vpop.permute.xlu0 %2392
    %2394 = vrot.lane.b32.xlu0 %v2364, 112
    %v2395 = vpop.permute.xlu0 %2394
    %2396 = vrot.lane.b32.xlu0 %v2371, 112
    %v2397 = vpop.permute.xlu0 %2396
    %2398 = vrot.lane.b32.xlu0 %v2378, 112
    %v2399 = vpop.permute.xlu0 %2398
    %2400 = vrot.lane.b32.xlu0 %v2385, 112
    %v2401 = vpop.permute.xlu0 %2400
    %2410 = vst.msk [vmem:[%s12] sm:$0x3] %vm2273, %v2387
    %2411 = vst.msk [vmem:[%s12 + $0x2] sm:$0x3] %vm2273, %v2389
    %2412 = vst.msk [vmem:[%s12 + $0x4] sm:$0x3] %vm2273, %v2391
    %2413 = vst.msk [vmem:[%s12 + $0x6] sm:$0x3] %vm2273, %v2393
    %2414 = vst.msk [vmem:[%s12 + $0x8] sm:$0x3] %vm2273, %v2395
    %2415 = vst.msk [vmem:[%s12 + $0xa] sm:$0x3] %vm2273, %v2397
    %2416 = vst.msk [vmem:[%s12 + $0xc] sm:$0x3] %vm2273, %v2399
    %2417 = vst.msk [vmem:[%s12 + $0xe] sm:$0x3] %vm2273, %v2401
    // Predicated region
    $region77: #{_metaphor_forward.1} parent=1 // pred_check
      _
    $region78: #{_metaphor_forward.1} parent=1 // pred_check_branch
      %2419 = sbr.rel (0) target = $region80
    $region79: #{_metaphor_forward.1} parent=1 // pred_region
      _
    $region80: #{_metaphor_forward.1} parent=1 // pred_fallthru
      _
    // Predicated region
    $region81: #{_metaphor_forward.1} parent=1 // pred_check
      _
    $region82: #{_metaphor_forward.1} parent=1 // pred_check_branch
      %2421 = sbr.rel (0) target = $region84
    $region83: #{_metaphor_forward.1} parent=1 // pred_region
      _
    $region84: #{_metaphor_forward.1} parent=1 // pred_fallthru
      _
    %2422 = vsyncpa [#allocation8], 1
    %2423 = vsyncpa [#allocation10], 1
    %2424 = vsyncpa [#allocation13], 1

</llo_original>
